<compile_context>
chip_gen: v7x
topology: tpu7x:2x2x1
jax: 0.10.0
libtpu: 0.0.40
codegen_flags: <defaults>
</compile_context>

<pallas_src>
import functools

import numpy as np
import jax
import jax.numpy as jnp
from jax.experimental import pallas as pl
from jax.experimental.pallas import tpu as pltpu

EPS = 1e-5      # nn.BatchNorm2d default eps
C_PAD = 128     # lane-dense channel width for the resident activation


# ---------------------------------------------------------------------------
# In-kernel math helpers (traced inside the Pallas kernel body).
# ---------------------------------------------------------------------------
def _bn_train(x, gamma, beta):
    """Training-mode BatchNorm over rows; single-pass biased-variance stats (f32)."""
    mean = jnp.mean(x, axis=0, keepdims=True)
    ex2 = jnp.mean(x * x, axis=0, keepdims=True)
    var = jnp.maximum(ex2 - mean * mean, 0.0)          # guard f32 cancellation
    scale = jax.lax.rsqrt(var + EPS) * gamma           # (1, C), hoisted
    return (x - mean) * scale + beta


def _conv_block(x, g1, b1, g2, b2, c2, w1, w2):
    """BN -> ReLU -> 1x1 conv -> BN -> ReLU -> 1x1 conv (bf16 MXU operands).

    The first conv's bias (+c1) is omitted: it is immediately followed by a
    training-mode BN whose mean subtraction cancels it exactly.
    """
    h = jnp.maximum(_bn_train(x, g1, b1), 0.0)
    h = jnp.dot(h.astype(jnp.bfloat16), w1, preferred_element_type=jnp.float32)
    h = jnp.maximum(_bn_train(h, g2, b2), 0.0)
    h = jnp.dot(h.astype(jnp.bfloat16), w2, preferred_element_type=jnp.float32) + c2
    return h


# ---------------------------------------------------------------------------
# Fused kernel: block 0 (conv-skip) + all identity-skip blocks in one call.
# ---------------------------------------------------------------------------
def fused_resnet_kernel(x_ref, p0_ref, w0_ref, pr_ref, w1r_ref, w2r_ref,
                        o_ref, acc_ref, *, n_rest, c_out):
    # x_ref : (M, c_in)  f32         unpadded input activation
    # p0_ref: (8, C_PAD) f32         block-0 rows: g1,b1,g2,b2,c2,gs,bs,0
    # w0_ref: (3, C_PAD, C_PAD) bf16  block-0 weights: w1, w2, ws (zero-padded)
    # pr_ref: (max(n_rest,1), 8, C_PAD) f32   inner rows: g1,b1,g2,b2,c2,0,0,0
    # w1r_ref/w2r_ref: (max(n_rest,1), C_PAD, C_PAD) bf16
    # o_ref : (M, c_out) f32         unpadded output
    # acc_ref: (M, C_PAD) f32        lane-dense resident accumulator scratch
    c_in = x_ref.shape[1]

    # Zero-pad the input into the lane-dense resident accumulator (in VMEM).
    # Padded lanes carry gamma=beta=bias=0 and zero weight rows/cols, so they
    # stay exactly 0 through every block (exact in bf16 as well).
    acc_ref[...] = jnp.zeros_like(acc_ref)
    acc_ref[:, 0:c_in] = x_ref[...]
    x = acc_ref[...]

    # Block-0 per-channel params: one (8,128) vreg load, sliced as a value.
    p0 = p0_ref[...]
    g1, b1 = p0[0:1, :], p0[1:2, :]
    g2, b2, c2 = p0[2:3, :], p0[3:4, :], p0[4:5, :]
    gs, bs = p0[5:6, :], p0[6:7, :]

    # ---- block 0: ResidualConv with conv-skip (Cin != Cout) ----
    h = _conv_block(x, g1, b1, g2, b2, c2, w0_ref[0], w0_ref[1])
    s = jnp.dot(x.astype(jnp.bfloat16), w0_ref[2],
                preferred_element_type=jnp.float32)     # +cs omitted (cancelled by BN)
    s = _bn_train(s, gs, bs)
    acc_ref[...] = h + s

    # ---- inner blocks: identity skip; activation stays resident in acc_ref ----
    def body(i, carry):
        y = acc_ref[...]
        pp = pr_ref[i]                                  # (8, C_PAD)
        hh = _conv_block(y,
                         pp[0:1, :], pp[1:2, :],
                         pp[2:3, :], pp[3:4, :], pp[4:5, :],
                         w1r_ref[i], w2r_ref[i])
        acc_ref[...] = y + hh
        return carry

    jax.lax.fori_loop(0, n_rest, body, 0, unroll=True)

    # Final masked slice-copy: only the real c_out channels leave VMEM.
    o_ref[...] = acc_ref[:, 0:c_out]


# ---------------------------------------------------------------------------
# Parameter init (deterministic, synthetic) — 1x1 conv weights as (Cin, Cout).
# ---------------------------------------------------------------------------
def init_params(key, channel, depth, output_dim):
    assert depth % 2 == 0
    n_blocks = depth // 2
    params = []
    block_keys = jax.random.split(key, n_blocks)
    for i, bk in enumerate(block_keys):
        cin = channel if i == 0 else output_dim
        cout = output_dim
        ks = jax.random.split(bk, 12)
        p = {
            "g1": (1.0 + 0.1 * jax.random.normal(ks[0], (1, cin))).astype(jnp.float32),
            "b1": (0.1 * jax.random.normal(ks[1], (1, cin))).astype(jnp.float32),
            "w1": (jax.random.normal(ks[2], (cin, cout)) / np.sqrt(cin)).astype(jnp.float32),
            "c1": (0.1 * jax.random.normal(ks[3], (1, cout))).astype(jnp.float32),
            "g2": (1.0 + 0.1 * jax.random.normal(ks[4], (1, cout))).astype(jnp.float32),
            "b2": (0.1 * jax.random.normal(ks[5], (1, cout))).astype(jnp.float32),
            "w2": (jax.random.normal(ks[6], (cout, cout)) / np.sqrt(cout)).astype(jnp.float32),
            "c2": (0.1 * jax.random.normal(ks[7], (1, cout))).astype(jnp.float32),
        }
        if i == 0:
            p.update({
                "ws": (jax.random.normal(ks[8], (cin, cout)) / np.sqrt(cin)).astype(jnp.float32),
                "cs": (0.1 * jax.random.normal(ks[9], (1, cout))).astype(jnp.float32),
                "gs": (1.0 + 0.1 * jax.random.normal(ks[10], (1, cout))).astype(jnp.float32),
                "bs": (0.1 * jax.random.normal(ks[11], (1, cout))).astype(jnp.float32),
            })
        params.append(p)
    return params


# ---------------------------------------------------------------------------
# Packing: zero-pad params/weights to 128 lanes; weights stored as bf16.
# (c1 / cs are NOT packed: they are cancelled by the following training-mode BN.)
# ---------------------------------------------------------------------------
def _pad_row(v, width):
    return jnp.pad(v, ((0, 0), (0, width - v.shape[1])))


def _pad_mat(w, width):
    return jnp.pad(w, ((0, width - w.shape[0]), (0, width - w.shape[1])))


def pack_params(params):
    p0d = params[0]
    rows0 = [_pad_row(p0d[k], C_PAD)
             for k in ("g1", "b1", "g2", "b2", "c2", "gs", "bs")]
    p0 = jnp.concatenate(
        rows0 + [jnp.zeros((8 - len(rows0), C_PAD), jnp.float32)], axis=0)
    w0 = jnp.stack([_pad_mat(p0d["w1"], C_PAD),
                    _pad_mat(p0d["w2"], C_PAD),
                    _pad_mat(p0d["ws"], C_PAD)], axis=0).astype(jnp.bfloat16)

    rest = params[1:]
    n_rest = len(rest)
    if n_rest == 0:   # keep leading dims >= 1; in-kernel loop runs 0 times
        pr = jnp.zeros((1, 8, C_PAD), jnp.float32)
        w1r = jnp.zeros((1, C_PAD, C_PAD), jnp.bfloat16)
        w2r = jnp.zeros((1, C_PAD, C_PAD), jnp.bfloat16)
    else:
        pr = jnp.stack([
            jnp.concatenate(
                [_pad_row(p[k], C_PAD) for k in ("g1", "b1", "g2", "b2", "c2")]
                + [jnp.zeros((3, C_PAD), jnp.float32)], axis=0)
            for p in rest], axis=0)
        w1r = jnp.stack([_pad_mat(p["w1"], C_PAD) for p in rest], axis=0).astype(jnp.bfloat16)
        w2r = jnp.stack([_pad_mat(p["w2"], C_PAD) for p in rest], axis=0).astype(jnp.bfloat16)
    return p0, w0, pr, w1r, w2r, n_rest


def _vmem_limit_bytes():
    """Per-generation VMEM budget: capacity minus headroom, capped; 32 MiB fallback."""
    try:
        cap = int(pltpu.get_tpu_info().vmem_capacity_bytes)
    except Exception:
        return 32 * 1024 * 1024
    return int(max(32 * 1024 * 1024, min(cap - 16 * 1024 * 1024, 112 * 1024 * 1024)))


# ---------------------------------------------------------------------------
# Forward wrappers.
# ---------------------------------------------------------------------------
@jax.jit
def kernel_one_resnet_forward(x_nchw, params):
    """x_nchw: (N, C, H, W) float32 -> (N, output_dim, H, W) float32."""
    N, C, H, W = x_nchw.shape
    M = N * H * W
    cout = params[0]["w1"].shape[1]
    p0, w0, pr, w1r, w2r, n_rest = pack_params(params)

    # NCHW -> channels-last (M, C).  No HBM-side channel padding: the kernel
    # reads the raw (M, C) slab and pads to 128 lanes once inside VMEM.
    x = jnp.transpose(x_nchw, (0, 2, 3, 1)).reshape(M, C)

    kernel = functools.partial(fused_resnet_kernel, n_rest=n_rest, c_out=cout)
    out = pl.pallas_call(
        kernel,
        out_shape=jax.ShapeDtypeStruct((M, cout), jnp.float32),
        in_specs=[pl.BlockSpec(memory_space=pltpu.MemorySpace.VMEM)] * 6,
        out_specs=pl.BlockSpec(memory_space=pltpu.MemorySpace.VMEM),
        scratch_shapes=[pltpu.VMEM((M, C_PAD), jnp.float32)],
        compiler_params=pltpu.CompilerParams(
            vmem_limit_bytes=_vmem_limit_bytes()),
    )(x, p0, w0, pr, w1r, w2r)

    return jnp.transpose(out.reshape(N, H, W, cout), (0, 3, 1, 2))


def reference_forward(x_nchw, params, matmul_dtype=jnp.float32):
    """Pure-JAX reference (training-mode BN, centered variance, 1x1 convs).

    matmul_dtype=jnp.bfloat16 mirrors the kernel's MXU operand policy (f32 accum);
    matmul_dtype=jnp.float32 is the exact module semantics.
    """
    def mm(a, w):
        return jnp.dot(a.astype(matmul_dtype), w.astype(matmul_dtype),
                       preferred_element_type=jnp.float32)

    def bn(t, g, b):
        m = jnp.mean(t, axis=0, keepdims=True)
        v = jnp.mean((t - m) ** 2, axis=0, keepdims=True)
        return (t - m) * jax.lax.rsqrt(v + EPS) * g + b

    N, C, H, W = x_nchw.shape
    M = N * H * W
    x = jnp.transpose(x_nchw, (0, 2, 3, 1)).reshape(M, C)
    for i, p in enumerate(params):
        h = jnp.maximum(bn(x, p["g1"], p["b1"]), 0.0)
        h = mm(h, p["w1"]) + p["c1"]
        h = jnp.maximum(bn(h, p["g2"], p["b2"]), 0.0)
        h = mm(h, p["w2"]) + p["c2"]
        s = bn(mm(x, p["ws"]) + p["cs"], p["gs"], p["bs"]) if i == 0 else x
        x = h + s
    cout = params[0]["w1"].shape[1]
    return jnp.transpose(x.reshape(N, H, W, cout), (0, 3, 1, 2))


if __name__ == "__main__":
    # Small shapes: channel=4, depth=4 (2 residual blocks), output_dim=32
    channel, depth, output_dim = 4, 4, 32
    N, H, W = 2, 16, 16

    key = jax.random.PRNGKey(0)
    kx, kp = jax.random.split(key)
    x = jax.random.normal(kx, (N, channel, H, W), dtype=jnp.float32)
    params = init_params(kp, channel, depth, output_dim)

    out = jax.block_until_ready(kernel_one_resnet_forward(x, params))
    assert out.shape == (N, output_dim, H, W), out.shape

    # Tight check against a reference using the same bf16-matmul-operand policy.
    ref_bf16 = jax.block_until_ready(reference_forward(x, params, jnp.bfloat16))
    np.testing.assert_allclose(np.asarray(out), np.asarray(ref_bf16),
                               rtol=2e-3, atol=2e-3)

    # Coarse sanity check against the exact f32 module semantics
    # (bounds the bf16-MXU quantization error of the conv matmuls).
    ref_f32 = jax.block_until_ready(reference_forward(x, params, jnp.float32))
    np.testing.assert_allclose(np.asarray(out), np.asarray(ref_f32),
                               rtol=1e-1, atol=1e-1)

    print("KERNEL_OK")
</pallas_src>

<mosaic_0001>
module attributes {stable_mosaic.version = 11 : i64} {
  func.func @fused_resnet_kernel(%arg0: memref<512x4xf32, #tpu.memory_space<vmem>>, %arg1: memref<8x128xf32, #tpu.memory_space<vmem>>, %arg2: memref<3x128x128xbf16, #tpu.memory_space<vmem>>, %arg3: memref<1x8x128xf32, #tpu.memory_space<vmem>>, %arg4: memref<1x128x128xbf16, #tpu.memory_space<vmem>>, %arg5: memref<1x128x128xbf16, #tpu.memory_space<vmem>>, %arg6: memref<512x32xf32, #tpu.memory_space<vmem>>, %arg7: memref<512x128xf32, #tpu.memory_space<vmem>>) attributes {dimension_semantics = [], scalar_prefetch = 0 : i64, scratch_operands = 1 : i64, tpu.core_type = #tpu.core_type<tc>} {
    %cst = arith.constant 0.000000e+00 : f32
    %0 = vector.broadcast %cst : f32 to vector<512x128xf32>
    %c0 = arith.constant 0 : index
    %c0_0 = arith.constant 0 : index
    %1 = vector.load %arg7[%c0, %c0_0] : memref<512x128xf32, #tpu.memory_space<vmem>>, vector<512x128xf32>
    tpu.vector_store %arg7[%c0, %c0_0], %0 {strides = array<i32>} : memref<512x128xf32, #tpu.memory_space<vmem>>, vector<512x128xf32>,
    %c0_1 = arith.constant 0 : index
    %c0_2 = arith.constant 0 : index
    %2 = vector.load %arg0[%c0_1, %c0_2] : memref<512x4xf32, #tpu.memory_space<vmem>>, vector<512x4xf32>
    %c0_3 = arith.constant 0 : index
    %c0_4 = arith.constant 0 : index
    %3 = vector.load %arg7[%c0_3, %c0_4] : memref<512x128xf32, #tpu.memory_space<vmem>>, vector<512x4xf32>
    tpu.vector_store %arg7[%c0_3, %c0_4], %2 {strides = array<i32>} : memref<512x128xf32, #tpu.memory_space<vmem>>, vector<512x4xf32>,
    %c0_5 = arith.constant 0 : index
    %c0_6 = arith.constant 0 : index
    %4 = vector.load %arg7[%c0_5, %c0_6] : memref<512x128xf32, #tpu.memory_space<vmem>>, vector<512x128xf32>
    %c0_7 = arith.constant 0 : index
    %c0_8 = arith.constant 0 : index
    %5 = vector.load %arg1[%c0_7, %c0_8] : memref<8x128xf32, #tpu.memory_space<vmem>>, vector<8x128xf32>
    %6 = vector.extract_strided_slice %5 {offsets = [0, 0], sizes = [1, 128], strides = [1, 1]} : vector<8x128xf32> to vector<1x128xf32>
    %7 = vector.extract_strided_slice %5 {offsets = [1, 0], sizes = [1, 128], strides = [1, 1]} : vector<8x128xf32> to vector<1x128xf32>
    %8 = vector.extract_strided_slice %5 {offsets = [2, 0], sizes = [1, 128], strides = [1, 1]} : vector<8x128xf32> to vector<1x128xf32>
    %9 = vector.extract_strided_slice %5 {offsets = [3, 0], sizes = [1, 128], strides = [1, 1]} : vector<8x128xf32> to vector<1x128xf32>
    %10 = vector.extract_strided_slice %5 {offsets = [4, 0], sizes = [1, 128], strides = [1, 1]} : vector<8x128xf32> to vector<1x128xf32>
    %11 = vector.extract_strided_slice %5 {offsets = [5, 0], sizes = [1, 128], strides = [1, 1]} : vector<8x128xf32> to vector<1x128xf32>
    %12 = vector.extract_strided_slice %5 {offsets = [6, 0], sizes = [1, 128], strides = [1, 1]} : vector<8x128xf32> to vector<1x128xf32>
    %c0_9 = arith.constant 0 : index
    %c0_10 = arith.constant 0 : index
    %c0_11 = arith.constant 0 : index
    %13 = vector.load %arg2[%c0_9, %c0_10, %c0_11] : memref<3x128x128xbf16, #tpu.memory_space<vmem>>, vector<1x128x128xbf16>
    %14 = vector.shape_cast %13 : vector<1x128x128xbf16> to vector<128x128xbf16>
    %c1 = arith.constant 1 : index
    %c0_12 = arith.constant 0 : index
    %c0_13 = arith.constant 0 : index
    %15 = vector.load %arg2[%c1, %c0_12, %c0_13] : memref<3x128x128xbf16, #tpu.memory_space<vmem>>, vector<1x128x128xbf16>
    %16 = vector.shape_cast %15 : vector<1x128x128xbf16> to vector<128x128xbf16>
    %cst_14 = arith.constant dense<0.000000e+00> : vector<128xf32>
    %17 = vector.multi_reduction <add>, %4, %cst_14 [0] : vector<512x128xf32> to vector<128xf32>
    %18 = vector.shape_cast %17 : vector<128xf32> to vector<1x128xf32>
    %cst_15 = arith.constant 5.120000e+02 : f32
    %19 = vector.broadcast %cst_15 : f32 to vector<1x128xf32>
    %20 = arith.divf %18, %19 : vector<1x128xf32>
    %21 = arith.mulf %4, %4 : vector<512x128xf32>
    %cst_16 = arith.constant dense<0.000000e+00> : vector<128xf32>
    %22 = vector.multi_reduction <add>, %21, %cst_16 [0] : vector<512x128xf32> to vector<128xf32>
    %23 = vector.shape_cast %22 : vector<128xf32> to vector<1x128xf32>
    %cst_17 = arith.constant 5.120000e+02 : f32
    %24 = vector.broadcast %cst_17 : f32 to vector<1x128xf32>
    %25 = arith.divf %23, %24 : vector<1x128xf32>
    %26 = arith.mulf %20, %20 : vector<1x128xf32>
    %27 = arith.subf %25, %26 : vector<1x128xf32>
    %cst_18 = arith.constant 0.000000e+00 : f32
    %28 = vector.broadcast %cst_18 : f32 to vector<1x128xf32>
    %29 = arith.maximumf %27, %28 : vector<1x128xf32>
    %cst_19 = arith.constant 9.99999974E-6 : f32
    %30 = vector.broadcast %cst_19 : f32 to vector<1x128xf32>
    %31 = arith.addf %29, %30 : vector<1x128xf32>
    %32 = math.rsqrt %31 : vector<1x128xf32>
    %33 = arith.mulf %32, %6 : vector<1x128xf32>
    %34 = vector.broadcast %20 : vector<1x128xf32> to vector<512x128xf32>
    %35 = arith.subf %4, %34 : vector<512x128xf32>
    %36 = vector.broadcast %33 : vector<1x128xf32> to vector<512x128xf32>
    %37 = arith.mulf %35, %36 : vector<512x128xf32>
    %38 = vector.broadcast %7 : vector<1x128xf32> to vector<512x128xf32>
    %39 = arith.addf %37, %38 : vector<512x128xf32>
    %cst_20 = arith.constant 0.000000e+00 : f32
    %40 = vector.broadcast %cst_20 : f32 to vector<512x128xf32>
    %41 = arith.maximumf %39, %40 : vector<512x128xf32>
    %42 = arith.truncf %41 : vector<512x128xf32> to vector<512x128xbf16>
    %cst_21 = arith.constant dense<0.000000e+00> : vector<512x128xf32>
    %43 = tpu.matmul %42, %14, %cst_21 {dimension_numbers = #tpu.dot_dimension_numbers<[1], [0], [0], [1], [0, 0, 1, 1], [], []>} : vector<512x128xbf16>, vector<128x128xbf16>, vector<512x128xf32> -> vector<512x128xf32>
    %cst_22 = arith.constant dense<0.000000e+00> : vector<128xf32>
    %44 = vector.multi_reduction <add>, %43, %cst_22 [0] : vector<512x128xf32> to vector<128xf32>
    %45 = vector.shape_cast %44 : vector<128xf32> to vector<1x128xf32>
    %cst_23 = arith.constant 5.120000e+02 : f32
    %46 = vector.broadcast %cst_23 : f32 to vector<1x128xf32>
    %47 = arith.divf %45, %46 : vector<1x128xf32>
    %48 = arith.mulf %43, %43 : vector<512x128xf32>
    %cst_24 = arith.constant dense<0.000000e+00> : vector<128xf32>
    %49 = vector.multi_reduction <add>, %48, %cst_24 [0] : vector<512x128xf32> to vector<128xf32>
    %50 = vector.shape_cast %49 : vector<128xf32> to vector<1x128xf32>
    %cst_25 = arith.constant 5.120000e+02 : f32
    %51 = vector.broadcast %cst_25 : f32 to vector<1x128xf32>
    %52 = arith.divf %50, %51 : vector<1x128xf32>
    %53 = arith.mulf %47, %47 : vector<1x128xf32>
    %54 = arith.subf %52, %53 : vector<1x128xf32>
    %cst_26 = arith.constant 0.000000e+00 : f32
    %55 = vector.broadcast %cst_26 : f32 to vector<1x128xf32>
    %56 = arith.maximumf %54, %55 : vector<1x128xf32>
    %cst_27 = arith.constant 9.99999974E-6 : f32
    %57 = vector.broadcast %cst_27 : f32 to vector<1x128xf32>
    %58 = arith.addf %56, %57 : vector<1x128xf32>
    %59 = math.rsqrt %58 : vector<1x128xf32>
    %60 = arith.mulf %59, %8 : vector<1x128xf32>
    %61 = vector.broadcast %47 : vector<1x128xf32> to vector<512x128xf32>
    %62 = arith.subf %43, %61 : vector<512x128xf32>
    %63 = vector.broadcast %60 : vector<1x128xf32> to vector<512x128xf32>
    %64 = arith.mulf %62, %63 : vector<512x128xf32>
    %65 = vector.broadcast %9 : vector<1x128xf32> to vector<512x128xf32>
    %66 = arith.addf %64, %65 : vector<512x128xf32>
    %cst_28 = arith.constant 0.000000e+00 : f32
    %67 = vector.broadcast %cst_28 : f32 to vector<512x128xf32>
    %68 = arith.maximumf %66, %67 : vector<512x128xf32>
    %69 = arith.truncf %68 : vector<512x128xf32> to vector<512x128xbf16>
    %cst_29 = arith.constant dense<0.000000e+00> : vector<512x128xf32>
    %70 = tpu.matmul %69, %16, %cst_29 {dimension_numbers = #tpu.dot_dimension_numbers<[1], [0], [0], [1], [0, 0, 1, 1], [], []>} : vector<512x128xbf16>, vector<128x128xbf16>, vector<512x128xf32> -> vector<512x128xf32>
    %71 = vector.broadcast %10 : vector<1x128xf32> to vector<512x128xf32>
    %72 = arith.addf %70, %71 : vector<512x128xf32>
    %73 = arith.truncf %4 : vector<512x128xf32> to vector<512x128xbf16>
    %c2 = arith.constant 2 : index
    %c0_30 = arith.constant 0 : index
    %c0_31 = arith.constant 0 : index
    %74 = vector.load %arg2[%c2, %c0_30, %c0_31] : memref<3x128x128xbf16, #tpu.memory_space<vmem>>, vector<1x128x128xbf16>
    %75 = vector.shape_cast %74 : vector<1x128x128xbf16> to vector<128x128xbf16>
    %cst_32 = arith.constant dense<0.000000e+00> : vector<512x128xf32>
    %76 = tpu.matmul %73, %75, %cst_32 {dimension_numbers = #tpu.dot_dimension_numbers<[1], [0], [0], [1], [0, 0, 1, 1], [], []>} : vector<512x128xbf16>, vector<128x128xbf16>, vector<512x128xf32> -> vector<512x128xf32>
    %cst_33 = arith.constant dense<0.000000e+00> : vector<128xf32>
    %77 = vector.multi_reduction <add>, %76, %cst_33 [0] : vector<512x128xf32> to vector<128xf32>
    %78 = vector.shape_cast %77 : vector<128xf32> to vector<1x128xf32>
    %cst_34 = arith.constant 5.120000e+02 : f32
    %79 = vector.broadcast %cst_34 : f32 to vector<1x128xf32>
    %80 = arith.divf %78, %79 : vector<1x128xf32>
    %81 = arith.mulf %76, %76 : vector<512x128xf32>
    %cst_35 = arith.constant dense<0.000000e+00> : vector<128xf32>
    %82 = vector.multi_reduction <add>, %81, %cst_35 [0] : vector<512x128xf32> to vector<128xf32>
    %83 = vector.shape_cast %82 : vector<128xf32> to vector<1x128xf32>
    %cst_36 = arith.constant 5.120000e+02 : f32
    %84 = vector.broadcast %cst_36 : f32 to vector<1x128xf32>
    %85 = arith.divf %83, %84 : vector<1x128xf32>
    %86 = arith.mulf %80, %80 : vector<1x128xf32>
    %87 = arith.subf %85, %86 : vector<1x128xf32>
    %cst_37 = arith.constant 0.000000e+00 : f32
    %88 = vector.broadcast %cst_37 : f32 to vector<1x128xf32>
    %89 = arith.maximumf %87, %88 : vector<1x128xf32>
    %cst_38 = arith.constant 9.99999974E-6 : f32
    %90 = vector.broadcast %cst_38 : f32 to vector<1x128xf32>
    %91 = arith.addf %89, %90 : vector<1x128xf32>
    %92 = math.rsqrt %91 : vector<1x128xf32>
    %93 = arith.mulf %92, %11 : vector<1x128xf32>
    %94 = vector.broadcast %80 : vector<1x128xf32> to vector<512x128xf32>
    %95 = arith.subf %76, %94 : vector<512x128xf32>
    %96 = vector.broadcast %93 : vector<1x128xf32> to vector<512x128xf32>
    %97 = arith.mulf %95, %96 : vector<512x128xf32>
    %98 = vector.broadcast %12 : vector<1x128xf32> to vector<512x128xf32>
    %99 = arith.addf %97, %98 : vector<512x128xf32>
    %100 = arith.addf %72, %99 : vector<512x128xf32>
    %c0_39 = arith.constant 0 : index
    %c0_40 = arith.constant 0 : index
    %101 = vector.load %arg7[%c0_39, %c0_40] : memref<512x128xf32, #tpu.memory_space<vmem>>, vector<512x128xf32>
    tpu.vector_store %arg7[%c0_39, %c0_40], %100 {strides = array<i32>} : memref<512x128xf32, #tpu.memory_space<vmem>>, vector<512x128xf32>,
    %c0_i32 = arith.constant 0 : i32
    %c0_41 = arith.constant 0 : index
    %c0_42 = arith.constant 0 : index
    %102 = vector.load %arg7[%c0_41, %c0_42] : memref<512x128xf32, #tpu.memory_space<vmem>>, vector<512x128xf32>
    %103 = arith.index_cast %c0_i32 : i32 to index
    %c0_43 = arith.constant 0 : index
    %c0_44 = arith.constant 0 : index
    %104 = vector.load %arg3[%103, %c0_43, %c0_44] : memref<1x8x128xf32, #tpu.memory_space<vmem>>, vector<1x8x128xf32>
    %105 = vector.shape_cast %104 : vector<1x8x128xf32> to vector<8x128xf32>
    %106 = vector.extract_strided_slice %105 {offsets = [0, 0], sizes = [1, 128], strides = [1, 1]} : vector<8x128xf32> to vector<1x128xf32>
    %107 = vector.extract_strided_slice %105 {offsets = [1, 0], sizes = [1, 128], strides = [1, 1]} : vector<8x128xf32> to vector<1x128xf32>
    %108 = vector.extract_strided_slice %105 {offsets = [2, 0], sizes = [1, 128], strides = [1, 1]} : vector<8x128xf32> to vector<1x128xf32>
    %109 = vector.extract_strided_slice %105 {offsets = [3, 0], sizes = [1, 128], strides = [1, 1]} : vector<8x128xf32> to vector<1x128xf32>
    %110 = vector.extract_strided_slice %105 {offsets = [4, 0], sizes = [1, 128], strides = [1, 1]} : vector<8x128xf32> to vector<1x128xf32>
    %111 = arith.index_cast %c0_i32 : i32 to index
    %c0_45 = arith.constant 0 : index
    %c0_46 = arith.constant 0 : index
    %112 = vector.load %arg4[%111, %c0_45, %c0_46] : memref<1x128x128xbf16, #tpu.memory_space<vmem>>, vector<1x128x128xbf16>
    %113 = vector.shape_cast %112 : vector<1x128x128xbf16> to vector<128x128xbf16>
    %114 = arith.index_cast %c0_i32 : i32 to index
    %c0_47 = arith.constant 0 : index
    %c0_48 = arith.constant 0 : index
    %115 = vector.load %arg5[%114, %c0_47, %c0_48] : memref<1x128x128xbf16, #tpu.memory_space<vmem>>, vector<1x128x128xbf16>
    %116 = vector.shape_cast %115 : vector<1x128x128xbf16> to vector<128x128xbf16>
    %cst_49 = arith.constant dense<0.000000e+00> : vector<128xf32>
    %117 = vector.multi_reduction <add>, %102, %cst_49 [0] : vector<512x128xf32> to vector<128xf32>
    %118 = vector.shape_cast %117 : vector<128xf32> to vector<1x128xf32>
    %cst_50 = arith.constant 5.120000e+02 : f32
    %119 = vector.broadcast %cst_50 : f32 to vector<1x128xf32>
    %120 = arith.divf %118, %119 : vector<1x128xf32>
    %121 = arith.mulf %102, %102 : vector<512x128xf32>
    %cst_51 = arith.constant dense<0.000000e+00> : vector<128xf32>
    %122 = vector.multi_reduction <add>, %121, %cst_51 [0] : vector<512x128xf32> to vector<128xf32>
    %123 = vector.shape_cast %122 : vector<128xf32> to vector<1x128xf32>
    %cst_52 = arith.constant 5.120000e+02 : f32
    %124 = vector.broadcast %cst_52 : f32 to vector<1x128xf32>
    %125 = arith.divf %123, %124 : vector<1x128xf32>
    %126 = arith.mulf %120, %120 : vector<1x128xf32>
    %127 = arith.subf %125, %126 : vector<1x128xf32>
    %cst_53 = arith.constant 0.000000e+00 : f32
    %128 = vector.broadcast %cst_53 : f32 to vector<1x128xf32>
    %129 = arith.maximumf %127, %128 : vector<1x128xf32>
    %cst_54 = arith.constant 9.99999974E-6 : f32
    %130 = vector.broadcast %cst_54 : f32 to vector<1x128xf32>
    %131 = arith.addf %129, %130 : vector<1x128xf32>
    %132 = math.rsqrt %131 : vector<1x128xf32>
    %133 = arith.mulf %132, %106 : vector<1x128xf32>
    %134 = vector.broadcast %120 : vector<1x128xf32> to vector<512x128xf32>
    %135 = arith.subf %102, %134 : vector<512x128xf32>
    %136 = vector.broadcast %133 : vector<1x128xf32> to vector<512x128xf32>
    %137 = arith.mulf %135, %136 : vector<512x128xf32>
    %138 = vector.broadcast %107 : vector<1x128xf32> to vector<512x128xf32>
    %139 = arith.addf %137, %138 : vector<512x128xf32>
    %cst_55 = arith.constant 0.000000e+00 : f32
    %140 = vector.broadcast %cst_55 : f32 to vector<512x128xf32>
    %141 = arith.maximumf %139, %140 : vector<512x128xf32>
    %142 = arith.truncf %141 : vector<512x128xf32> to vector<512x128xbf16>
    %cst_56 = arith.constant dense<0.000000e+00> : vector<512x128xf32>
    %143 = tpu.matmul %142, %113, %cst_56 {dimension_numbers = #tpu.dot_dimension_numbers<[1], [0], [0], [1], [0, 0, 1, 1], [], []>} : vector<512x128xbf16>, vector<128x128xbf16>, vector<512x128xf32> -> vector<512x128xf32>
    %cst_57 = arith.constant dense<0.000000e+00> : vector<128xf32>
    %144 = vector.multi_reduction <add>, %143, %cst_57 [0] : vector<512x128xf32> to vector<128xf32>
    %145 = vector.shape_cast %144 : vector<128xf32> to vector<1x128xf32>
    %cst_58 = arith.constant 5.120000e+02 : f32
    %146 = vector.broadcast %cst_58 : f32 to vector<1x128xf32>
    %147 = arith.divf %145, %146 : vector<1x128xf32>
    %148 = arith.mulf %143, %143 : vector<512x128xf32>
    %cst_59 = arith.constant dense<0.000000e+00> : vector<128xf32>
    %149 = vector.multi_reduction <add>, %148, %cst_59 [0] : vector<512x128xf32> to vector<128xf32>
    %150 = vector.shape_cast %149 : vector<128xf32> to vector<1x128xf32>
    %cst_60 = arith.constant 5.120000e+02 : f32
    %151 = vector.broadcast %cst_60 : f32 to vector<1x128xf32>
    %152 = arith.divf %150, %151 : vector<1x128xf32>
    %153 = arith.mulf %147, %147 : vector<1x128xf32>
    %154 = arith.subf %152, %153 : vector<1x128xf32>
    %cst_61 = arith.constant 0.000000e+00 : f32
    %155 = vector.broadcast %cst_61 : f32 to vector<1x128xf32>
    %156 = arith.maximumf %154, %155 : vector<1x128xf32>
    %cst_62 = arith.constant 9.99999974E-6 : f32
    %157 = vector.broadcast %cst_62 : f32 to vector<1x128xf32>
    %158 = arith.addf %156, %157 : vector<1x128xf32>
    %159 = math.rsqrt %158 : vector<1x128xf32>
    %160 = arith.mulf %159, %108 : vector<1x128xf32>
    %161 = vector.broadcast %147 : vector<1x128xf32> to vector<512x128xf32>
    %162 = arith.subf %143, %161 : vector<512x128xf32>
    %163 = vector.broadcast %160 : vector<1x128xf32> to vector<512x128xf32>
    %164 = arith.mulf %162, %163 : vector<512x128xf32>
    %165 = vector.broadcast %109 : vector<1x128xf32> to vector<512x128xf32>
    %166 = arith.addf %164, %165 : vector<512x128xf32>
    %cst_63 = arith.constant 0.000000e+00 : f32
    %167 = vector.broadcast %cst_63 : f32 to vector<512x128xf32>
    %168 = arith.maximumf %166, %167 : vector<512x128xf32>
    %169 = arith.truncf %168 : vector<512x128xf32> to vector<512x128xbf16>
    %cst_64 = arith.constant dense<0.000000e+00> : vector<512x128xf32>
    %170 = tpu.matmul %169, %116, %cst_64 {dimension_numbers = #tpu.dot_dimension_numbers<[1], [0], [0], [1], [0, 0, 1, 1], [], []>} : vector<512x128xbf16>, vector<128x128xbf16>, vector<512x128xf32> -> vector<512x128xf32>
    %171 = vector.broadcast %110 : vector<1x128xf32> to vector<512x128xf32>
    %172 = arith.addf %170, %171 : vector<512x128xf32>
    %173 = arith.addf %102, %172 : vector<512x128xf32>
    %c0_65 = arith.constant 0 : index
    %c0_66 = arith.constant 0 : index
    %174 = vector.load %arg7[%c0_65, %c0_66] : memref<512x128xf32, #tpu.memory_space<vmem>>, vector<512x128xf32>
    tpu.vector_store %arg7[%c0_65, %c0_66], %173 {strides = array<i32>} : memref<512x128xf32, #tpu.memory_space<vmem>>, vector<512x128xf32>,
    %c1_i32 = arith.constant 1 : i32
    %c0_67 = arith.constant 0 : index
    %c0_68 = arith.constant 0 : index
    %175 = vector.load %arg7[%c0_67, %c0_68] : memref<512x128xf32, #tpu.memory_space<vmem>>, vector<512x32xf32>
    %c0_69 = arith.constant 0 : index
    %c0_70 = arith.constant 0 : index
    %176 = vector.load %arg6[%c0_69, %c0_70] : memref<512x32xf32, #tpu.memory_space<vmem>>, vector<512x32xf32>
    tpu.vector_store %arg6[%c0_69, %c0_70], %175 {strides = array<i32>} : memref<512x32xf32, #tpu.memory_space<vmem>>, vector<512x32xf32>,
    return
  }
}

</mosaic_0001>

<llo_original>
// kernel: kernel_one_resnet_forward.1
$region0: #{kernel_one_resnet_forward.1}
  #allocation0 [shape = 'u32[]', space=smem, size = 0x4, offset = 0x4, fixed_abs, tag = 'smem constant byte address 0x4 - core index']
  #allocation1 [shape = 'u32[144,128]{1,0:T(1,128)}', space=vmem, size = 0x12000, scoped, tag = 'internal scratch']
  #allocation2 [shape = 'f32[512,128]{1,0:T(8,128)}', space=vmem, size = 0x40000, scoped, tag = 'scratch operand']
  %s0 = inlined_call_operand.vmem [shape: f32[512,4], index: 0, kind: input, shape index: {}]
  %s1 = inlined_call_operand.vmem [shape: f32[8,128], index: 1, kind: input, shape index: {}]
  %s2 = inlined_call_operand.vmem [shape: bf16[3,128,128], index: 2, kind: input, shape index: {}]
  %s3 = inlined_call_operand.vmem [shape: f32[1,8,128], index: 3, kind: input, shape index: {}]
  %s4 = inlined_call_operand.vmem [shape: bf16[1,128,128], index: 4, kind: input, shape index: {}]
  %s5 = inlined_call_operand.vmem [shape: bf16[1,128,128], index: 5, kind: input, shape index: {}]
  %s6 = inlined_call_operand.hbm [shape: f32[512,32], index: 6, kind: output, shape index: {}]
  %s7 = sld [smem:[#allocation0]]
  $region34: #{kernel_one_resnet_forward.1} parent=0
    _
  %s9 = ssub.s32 1, %s7
  %s10 = scalar_select 0, %s9, %s7
  $region1: #{kernel_one_resnet_forward.1} parent=0
    #allocation3 [shape = 'u8[262144]{0}', space=vmem, size = 0x40000, scoped, tag = 'output window, operand 0, single buffered']
    #allocation4 [shape = 's32[1]{0}', space=sflag, size = 0x4, scoped, tag = 'scoped memory for kernel_one_resnet_forward.1']
    %11 = vsyncpa [#allocation4], 0
    // Predicated region
    $region2: #{kernel_one_resnet_forward.1} parent=1 // pred_check
      _
    $region3: #{kernel_one_resnet_forward.1} parent=1 // pred_check_branch
      %13 = sbr.rel (0) target = $region5
    $region4: #{kernel_one_resnet_forward.1} parent=1 // pred_region
      _
    $region5: #{kernel_one_resnet_forward.1} parent=1 // pred_fallthru
      _
    // Predicated region
    $region6: #{kernel_one_resnet_forward.1} parent=1 // pred_check
      _
    $region7: #{kernel_one_resnet_forward.1} parent=1 // pred_check_branch
      %15 = sbr.rel (0) target = $region9
    $region8: #{kernel_one_resnet_forward.1} parent=1 // pred_region
      _
    $region9: #{kernel_one_resnet_forward.1} parent=1 // pred_fallthru
      _
    // Predicated region
    $region10: #{kernel_one_resnet_forward.1} parent=1 // pred_check
      _
    $region11: #{kernel_one_resnet_forward.1} parent=1 // pred_check_branch
      %17 = sbr.rel (0) target = $region13
    $region12: #{kernel_one_resnet_forward.1} parent=1 // pred_region
      _
    $region13: #{kernel_one_resnet_forward.1} parent=1 // pred_fallthru
      _
    // Predicated region
    $region14: #{kernel_one_resnet_forward.1} parent=1 // pred_check
      _
    $region15: #{kernel_one_resnet_forward.1} parent=1 // pred_check_branch
      %19 = sbr.rel (0) target = $region17
    $region16: #{kernel_one_resnet_forward.1} parent=1 // pred_region
      _
    $region17: #{kernel_one_resnet_forward.1} parent=1 // pred_fallthru
      _
    // Predicated region
    $region18: #{kernel_one_resnet_forward.1} parent=1 // pred_check
      _
    $region19: #{kernel_one_resnet_forward.1} parent=1 // pred_check_branch
      %21 = sbr.rel (0) target = $region21
    $region20: #{kernel_one_resnet_forward.1} parent=1 // pred_region
      _
    $region21: #{kernel_one_resnet_forward.1} parent=1 // pred_fallthru
      _
    // Predicated region
    $region22: #{kernel_one_resnet_forward.1} parent=1 // pred_check
      _
    $region23: #{kernel_one_resnet_forward.1} parent=1 // pred_check_branch
      %23 = sbr.rel (0) target = $region25
    $region24: #{kernel_one_resnet_forward.1} parent=1 // pred_region
      _
    $region25: #{kernel_one_resnet_forward.1} parent=1 // pred_fallthru
      _
    %25 = vst [vmem:[#allocation2] sm:$0xff] 0.0
    %26 = vst [vmem:[#allocation2 + $0x8] sm:$0xff] 0.0
    %27 = vst [vmem:[#allocation2 + $0x10] sm:$0xff] 0.0
    %28 = vst [vmem:[#allocation2 + $0x18] sm:$0xff] 0.0
    %29 = vst [vmem:[#allocation2 + $0x20] sm:$0xff] 0.0
    %30 = vst [vmem:[#allocation2 + $0x28] sm:$0xff] 0.0
    %31 = vst [vmem:[#allocation2 + $0x30] sm:$0xff] 0.0
    %32 = vst [vmem:[#allocation2 + $0x38] sm:$0xff] 0.0
    %33 = vst [vmem:[#allocation2 + $0x40] sm:$0xff] 0.0
    %34 = vst [vmem:[#allocation2 + $0x48] sm:$0xff] 0.0
    %35 = vst [vmem:[#allocation2 + $0x50] sm:$0xff] 0.0
    %36 = vst [vmem:[#allocation2 + $0x58] sm:$0xff] 0.0
    %37 = vst [vmem:[#allocation2 + $0x60] sm:$0xff] 0.0
    %38 = vst [vmem:[#allocation2 + $0x68] sm:$0xff] 0.0
    %39 = vst [vmem:[#allocation2 + $0x70] sm:$0xff] 0.0
    %40 = vst [vmem:[#allocation2 + $0x78] sm:$0xff] 0.0
    %41 = vst [vmem:[#allocation2 + $0x80] sm:$0xff] 0.0
    %42 = vst [vmem:[#allocation2 + $0x88] sm:$0xff] 0.0
    %43 = vst [vmem:[#allocation2 + $0x90] sm:$0xff] 0.0
    %44 = vst [vmem:[#allocation2 + $0x98] sm:$0xff] 0.0
    %45 = vst [vmem:[#allocation2 + $0xa0] sm:$0xff] 0.0
    %46 = vst [vmem:[#allocation2 + $0xa8] sm:$0xff] 0.0
    %47 = vst [vmem:[#allocation2 + $0xb0] sm:$0xff] 0.0
    %48 = vst [vmem:[#allocation2 + $0xb8] sm:$0xff] 0.0
    %49 = vst [vmem:[#allocation2 + $0xc0] sm:$0xff] 0.0
    %50 = vst [vmem:[#allocation2 + $0xc8] sm:$0xff] 0.0
    %51 = vst [vmem:[#allocation2 + $0xd0] sm:$0xff] 0.0
    %52 = vst [vmem:[#allocation2 + $0xd8] sm:$0xff] 0.0
    %53 = vst [vmem:[#allocation2 + $0xe0] sm:$0xff] 0.0
    %54 = vst [vmem:[#allocation2 + $0xe8] sm:$0xff] 0.0
    %55 = vst [vmem:[#allocation2 + $0xf0] sm:$0xff] 0.0
    %56 = vst [vmem:[#allocation2 + $0xf8] sm:$0xff] 0.0
    %57 = vst [vmem:[#allocation2 + $0x100] sm:$0xff] 0.0
    %58 = vst [vmem:[#allocation2 + $0x108] sm:$0xff] 0.0
    %59 = vst [vmem:[#allocation2 + $0x110] sm:$0xff] 0.0
    %60 = vst [vmem:[#allocation2 + $0x118] sm:$0xff] 0.0
    %61 = vst [vmem:[#allocation2 + $0x120] sm:$0xff] 0.0
    %62 = vst [vmem:[#allocation2 + $0x128] sm:$0xff] 0.0
    %63 = vst [vmem:[#allocation2 + $0x130] sm:$0xff] 0.0
    %64 = vst [vmem:[#allocation2 + $0x138] sm:$0xff] 0.0
    %65 = vst [vmem:[#allocation2 + $0x140] sm:$0xff] 0.0
    %66 = vst [vmem:[#allocation2 + $0x148] sm:$0xff] 0.0
    %67 = vst [vmem:[#allocation2 + $0x150] sm:$0xff] 0.0
    %68 = vst [vmem:[#allocation2 + $0x158] sm:$0xff] 0.0
    %69 = vst [vmem:[#allocation2 + $0x160] sm:$0xff] 0.0
    %70 = vst [vmem:[#allocation2 + $0x168] sm:$0xff] 0.0
    %71 = vst [vmem:[#allocation2 + $0x170] sm:$0xff] 0.0
    %72 = vst [vmem:[#allocation2 + $0x178] sm:$0xff] 0.0
    %73 = vst [vmem:[#allocation2 + $0x180] sm:$0xff] 0.0
    %74 = vst [vmem:[#allocation2 + $0x188] sm:$0xff] 0.0
    %75 = vst [vmem:[#allocation2 + $0x190] sm:$0xff] 0.0
    %76 = vst [vmem:[#allocation2 + $0x198] sm:$0xff] 0.0
    %77 = vst [vmem:[#allocation2 + $0x1a0] sm:$0xff] 0.0
    %78 = vst [vmem:[#allocation2 + $0x1a8] sm:$0xff] 0.0
    %79 = vst [vmem:[#allocation2 + $0x1b0] sm:$0xff] 0.0
    %80 = vst [vmem:[#allocation2 + $0x1b8] sm:$0xff] 0.0
    %81 = vst [vmem:[#allocation2 + $0x1c0] sm:$0xff] 0.0
    %82 = vst [vmem:[#allocation2 + $0x1c8] sm:$0xff] 0.0
    %83 = vst [vmem:[#allocation2 + $0x1d0] sm:$0xff] 0.0
    %84 = vst [vmem:[#allocation2 + $0x1d8] sm:$0xff] 0.0
    %85 = vst [vmem:[#allocation2 + $0x1e0] sm:$0xff] 0.0
    %86 = vst [vmem:[#allocation2 + $0x1e8] sm:$0xff] 0.0
    %87 = vst [vmem:[#allocation2 + $0x1f0] sm:$0xff] 0.0
    %88 = vst [vmem:[#allocation2 + $0x1f8] sm:$0xff] 0.0
    %v89 = vld [vmem:[%s0] sm:$0xff]
    %v90 = vld [vmem:[%s0 + $0x8] sm:$0xff]
    %v91 = vld [vmem:[%s0 + $0x10] sm:$0xff]
    %v92 = vld [vmem:[%s0 + $0x18] sm:$0xff]
    %v93 = vld [vmem:[%s0 + $0x20] sm:$0xff]
    %v94 = vld [vmem:[%s0 + $0x28] sm:$0xff]
    %v95 = vld [vmem:[%s0 + $0x30] sm:$0xff]
    %v96 = vld [vmem:[%s0 + $0x38] sm:$0xff]
    %v97 = vld [vmem:[%s0 + $0x40] sm:$0xff]
    %v98 = vld [vmem:[%s0 + $0x48] sm:$0xff]
    %v99 = vld [vmem:[%s0 + $0x50] sm:$0xff]
    %v100 = vld [vmem:[%s0 + $0x58] sm:$0xff]
    %v101 = vld [vmem:[%s0 + $0x60] sm:$0xff]
    %v102 = vld [vmem:[%s0 + $0x68] sm:$0xff]
    %v103 = vld [vmem:[%s0 + $0x70] sm:$0xff]
    %v104 = vld [vmem:[%s0 + $0x78] sm:$0xff]
    %v105 = vld [vmem:[%s0 + $0x80] sm:$0xff]
    %v106 = vld [vmem:[%s0 + $0x88] sm:$0xff]
    %v107 = vld [vmem:[%s0 + $0x90] sm:$0xff]
    %v108 = vld [vmem:[%s0 + $0x98] sm:$0xff]
    %v109 = vld [vmem:[%s0 + $0xa0] sm:$0xff]
    %v110 = vld [vmem:[%s0 + $0xa8] sm:$0xff]
    %v111 = vld [vmem:[%s0 + $0xb0] sm:$0xff]
    %v112 = vld [vmem:[%s0 + $0xb8] sm:$0xff]
    %v113 = vld [vmem:[%s0 + $0xc0] sm:$0xff]
    %v114 = vld [vmem:[%s0 + $0xc8] sm:$0xff]
    %v115 = vld [vmem:[%s0 + $0xd0] sm:$0xff]
    %v116 = vld [vmem:[%s0 + $0xd8] sm:$0xff]
    %v117 = vld [vmem:[%s0 + $0xe0] sm:$0xff]
    %v118 = vld [vmem:[%s0 + $0xe8] sm:$0xff]
    %v119 = vld [vmem:[%s0 + $0xf0] sm:$0xff]
    %v120 = vld [vmem:[%s0 + $0xf8] sm:$0xff]
    %v121 = vld [vmem:[%s0 + $0x100] sm:$0xff]
    %v122 = vld [vmem:[%s0 + $0x108] sm:$0xff]
    %v123 = vld [vmem:[%s0 + $0x110] sm:$0xff]
    %v124 = vld [vmem:[%s0 + $0x118] sm:$0xff]
    %v125 = vld [vmem:[%s0 + $0x120] sm:$0xff]
    %v126 = vld [vmem:[%s0 + $0x128] sm:$0xff]
    %v127 = vld [vmem:[%s0 + $0x130] sm:$0xff]
    %v128 = vld [vmem:[%s0 + $0x138] sm:$0xff]
    %v129 = vld [vmem:[%s0 + $0x140] sm:$0xff]
    %v130 = vld [vmem:[%s0 + $0x148] sm:$0xff]
    %v131 = vld [vmem:[%s0 + $0x150] sm:$0xff]
    %v132 = vld [vmem:[%s0 + $0x158] sm:$0xff]
    %v133 = vld [vmem:[%s0 + $0x160] sm:$0xff]
    %v134 = vld [vmem:[%s0 + $0x168] sm:$0xff]
    %v135 = vld [vmem:[%s0 + $0x170] sm:$0xff]
    %v136 = vld [vmem:[%s0 + $0x178] sm:$0xff]
    %v137 = vld [vmem:[%s0 + $0x180] sm:$0xff]
    %v138 = vld [vmem:[%s0 + $0x188] sm:$0xff]
    %v139 = vld [vmem:[%s0 + $0x190] sm:$0xff]
    %v140 = vld [vmem:[%s0 + $0x198] sm:$0xff]
    %v141 = vld [vmem:[%s0 + $0x1a0] sm:$0xff]
    %v142 = vld [vmem:[%s0 + $0x1a8] sm:$0xff]
    %v143 = vld [vmem:[%s0 + $0x1b0] sm:$0xff]
    %v144 = vld [vmem:[%s0 + $0x1b8] sm:$0xff]
    %v145 = vld [vmem:[%s0 + $0x1c0] sm:$0xff]
    %v146 = vld [vmem:[%s0 + $0x1c8] sm:$0xff]
    %v147 = vld [vmem:[%s0 + $0x1d0] sm:$0xff]
    %v148 = vld [vmem:[%s0 + $0x1d8] sm:$0xff]
    %v149 = vld [vmem:[%s0 + $0x1e0] sm:$0xff]
    %v150 = vld [vmem:[%s0 + $0x1e8] sm:$0xff]
    %v151 = vld [vmem:[%s0 + $0x1f0] sm:$0xff]
    %v152 = vld [vmem:[%s0 + $0x1f8] sm:$0xff]
    %vm153 = vcmask 31744
    %154 = vst.msk [vmem:[#allocation2] sm:$0xff] %vm153, %v89
    %155 = vst.msk [vmem:[#allocation2 + $0x8] sm:$0xff] %vm153, %v90
    %156 = vst.msk [vmem:[#allocation2 + $0x10] sm:$0xff] %vm153, %v91
    %157 = vst.msk [vmem:[#allocation2 + $0x18] sm:$0xff] %vm153, %v92
    %158 = vst.msk [vmem:[#allocation2 + $0x20] sm:$0xff] %vm153, %v93
    %159 = vst.msk [vmem:[#allocation2 + $0x28] sm:$0xff] %vm153, %v94
    %160 = vst.msk [vmem:[#allocation2 + $0x30] sm:$0xff] %vm153, %v95
    %161 = vst.msk [vmem:[#allocation2 + $0x38] sm:$0xff] %vm153, %v96
    %162 = vst.msk [vmem:[#allocation2 + $0x40] sm:$0xff] %vm153, %v97
    %163 = vst.msk [vmem:[#allocation2 + $0x48] sm:$0xff] %vm153, %v98
    %164 = vst.msk [vmem:[#allocation2 + $0x50] sm:$0xff] %vm153, %v99
    %165 = vst.msk [vmem:[#allocation2 + $0x58] sm:$0xff] %vm153, %v100
    %166 = vst.msk [vmem:[#allocation2 + $0x60] sm:$0xff] %vm153, %v101
    %167 = vst.msk [vmem:[#allocation2 + $0x68] sm:$0xff] %vm153, %v102
    %168 = vst.msk [vmem:[#allocation2 + $0x70] sm:$0xff] %vm153, %v103
    %169 = vst.msk [vmem:[#allocation2 + $0x78] sm:$0xff] %vm153, %v104
    %170 = vst.msk [vmem:[#allocation2 + $0x80] sm:$0xff] %vm153, %v105
    %171 = vst.msk [vmem:[#allocation2 + $0x88] sm:$0xff] %vm153, %v106
    %172 = vst.msk [vmem:[#allocation2 + $0x90] sm:$0xff] %vm153, %v107
    %173 = vst.msk [vmem:[#allocation2 + $0x98] sm:$0xff] %vm153, %v108
    %174 = vst.msk [vmem:[#allocation2 + $0xa0] sm:$0xff] %vm153, %v109
    %175 = vst.msk [vmem:[#allocation2 + $0xa8] sm:$0xff] %vm153, %v110
    %176 = vst.msk [vmem:[#allocation2 + $0xb0] sm:$0xff] %vm153, %v111
    %177 = vst.msk [vmem:[#allocation2 + $0xb8] sm:$0xff] %vm153, %v112
    %178 = vst.msk [vmem:[#allocation2 + $0xc0] sm:$0xff] %vm153, %v113
    %179 = vst.msk [vmem:[#allocation2 + $0xc8] sm:$0xff] %vm153, %v114
    %180 = vst.msk [vmem:[#allocation2 + $0xd0] sm:$0xff] %vm153, %v115
    %181 = vst.msk [vmem:[#allocation2 + $0xd8] sm:$0xff] %vm153, %v116
    %182 = vst.msk [vmem:[#allocation2 + $0xe0] sm:$0xff] %vm153, %v117
    %183 = vst.msk [vmem:[#allocation2 + $0xe8] sm:$0xff] %vm153, %v118
    %184 = vst.msk [vmem:[#allocation2 + $0xf0] sm:$0xff] %vm153, %v119
    %185 = vst.msk [vmem:[#allocation2 + $0xf8] sm:$0xff] %vm153, %v120
    %186 = vst.msk [vmem:[#allocation2 + $0x100] sm:$0xff] %vm153, %v121
    %187 = vst.msk [vmem:[#allocation2 + $0x108] sm:$0xff] %vm153, %v122
    %188 = vst.msk [vmem:[#allocation2 + $0x110] sm:$0xff] %vm153, %v123
    %189 = vst.msk [vmem:[#allocation2 + $0x118] sm:$0xff] %vm153, %v124
    %190 = vst.msk [vmem:[#allocation2 + $0x120] sm:$0xff] %vm153, %v125
    %191 = vst.msk [vmem:[#allocation2 + $0x128] sm:$0xff] %vm153, %v126
    %192 = vst.msk [vmem:[#allocation2 + $0x130] sm:$0xff] %vm153, %v127
    %193 = vst.msk [vmem:[#allocation2 + $0x138] sm:$0xff] %vm153, %v128
    %194 = vst.msk [vmem:[#allocation2 + $0x140] sm:$0xff] %vm153, %v129
    %195 = vst.msk [vmem:[#allocation2 + $0x148] sm:$0xff] %vm153, %v130
    %196 = vst.msk [vmem:[#allocation2 + $0x150] sm:$0xff] %vm153, %v131
    %197 = vst.msk [vmem:[#allocation2 + $0x158] sm:$0xff] %vm153, %v132
    %198 = vst.msk [vmem:[#allocation2 + $0x160] sm:$0xff] %vm153, %v133
    %199 = vst.msk [vmem:[#allocation2 + $0x168] sm:$0xff] %vm153, %v134
    %200 = vst.msk [vmem:[#allocation2 + $0x170] sm:$0xff] %vm153, %v135
    %201 = vst.msk [vmem:[#allocation2 + $0x178] sm:$0xff] %vm153, %v136
    %202 = vst.msk [vmem:[#allocation2 + $0x180] sm:$0xff] %vm153, %v137
    %203 = vst.msk [vmem:[#allocation2 + $0x188] sm:$0xff] %vm153, %v138
    %204 = vst.msk [vmem:[#allocation2 + $0x190] sm:$0xff] %vm153, %v139
    %205 = vst.msk [vmem:[#allocation2 + $0x198] sm:$0xff] %vm153, %v140
    %206 = vst.msk [vmem:[#allocation2 + $0x1a0] sm:$0xff] %vm153, %v141
    %207 = vst.msk [vmem:[#allocation2 + $0x1a8] sm:$0xff] %vm153, %v142
    %208 = vst.msk [vmem:[#allocation2 + $0x1b0] sm:$0xff] %vm153, %v143
    %209 = vst.msk [vmem:[#allocation2 + $0x1b8] sm:$0xff] %vm153, %v144
    %210 = vst.msk [vmem:[#allocation2 + $0x1c0] sm:$0xff] %vm153, %v145
    %211 = vst.msk [vmem:[#allocation2 + $0x1c8] sm:$0xff] %vm153, %v146
    %212 = vst.msk [vmem:[#allocation2 + $0x1d0] sm:$0xff] %vm153, %v147
    %213 = vst.msk [vmem:[#allocation2 + $0x1d8] sm:$0xff] %vm153, %v148
    %214 = vst.msk [vmem:[#allocation2 + $0x1e0] sm:$0xff] %vm153, %v149
    %215 = vst.msk [vmem:[#allocation2 + $0x1e8] sm:$0xff] %vm153, %v150
    %216 = vst.msk [vmem:[#allocation2 + $0x1f0] sm:$0xff] %vm153, %v151
    %217 = vst.msk [vmem:[#allocation2 + $0x1f8] sm:$0xff] %vm153, %v152
    %v218 = vld [vmem:[#allocation2] sm:$0xff]
    %v219 = vld [vmem:[#allocation2 + $0x8] sm:$0xff]
    %v220 = vld [vmem:[#allocation2 + $0x10] sm:$0xff]
    %v221 = vld [vmem:[#allocation2 + $0x18] sm:$0xff]
    %v222 = vld [vmem:[#allocation2 + $0x20] sm:$0xff]
    %v223 = vld [vmem:[#allocation2 + $0x28] sm:$0xff]
    %v224 = vld [vmem:[#allocation2 + $0x30] sm:$0xff]
    %v225 = vld [vmem:[#allocation2 + $0x38] sm:$0xff]
    %v226 = vld [vmem:[#allocation2 + $0x40] sm:$0xff]
    %v227 = vld [vmem:[#allocation2 + $0x48] sm:$0xff]
    %v228 = vld [vmem:[#allocation2 + $0x50] sm:$0xff]
    %v229 = vld [vmem:[#allocation2 + $0x58] sm:$0xff]
    %v230 = vld [vmem:[#allocation2 + $0x60] sm:$0xff]
    %v231 = vld [vmem:[#allocation2 + $0x68] sm:$0xff]
    %v232 = vld [vmem:[#allocation2 + $0x70] sm:$0xff]
    %v233 = vld [vmem:[#allocation2 + $0x78] sm:$0xff]
    %v234 = vld [vmem:[#allocation2 + $0x80] sm:$0xff]
    %v235 = vld [vmem:[#allocation2 + $0x88] sm:$0xff]
    %v236 = vld [vmem:[#allocation2 + $0x90] sm:$0xff]
    %v237 = vld [vmem:[#allocation2 + $0x98] sm:$0xff]
    %v238 = vld [vmem:[#allocation2 + $0xa0] sm:$0xff]
    %v239 = vld [vmem:[#allocation2 + $0xa8] sm:$0xff]
    %v240 = vld [vmem:[#allocation2 + $0xb0] sm:$0xff]
    %v241 = vld [vmem:[#allocation2 + $0xb8] sm:$0xff]
    %v242 = vld [vmem:[#allocation2 + $0xc0] sm:$0xff]
    %v243 = vld [vmem:[#allocation2 + $0xc8] sm:$0xff]
    %v244 = vld [vmem:[#allocation2 + $0xd0] sm:$0xff]
    %v245 = vld [vmem:[#allocation2 + $0xd8] sm:$0xff]
    %v246 = vld [vmem:[#allocation2 + $0xe0] sm:$0xff]
    %v247 = vld [vmem:[#allocation2 + $0xe8] sm:$0xff]
    %v248 = vld [vmem:[#allocation2 + $0xf0] sm:$0xff]
    %v249 = vld [vmem:[#allocation2 + $0xf8] sm:$0xff]
    %v250 = vld [vmem:[#allocation2 + $0x100] sm:$0xff]
    %v251 = vld [vmem:[#allocation2 + $0x108] sm:$0xff]
    %v252 = vld [vmem:[#allocation2 + $0x110] sm:$0xff]
    %v253 = vld [vmem:[#allocation2 + $0x118] sm:$0xff]
    %v254 = vld [vmem:[#allocation2 + $0x120] sm:$0xff]
    %v255 = vld [vmem:[#allocation2 + $0x128] sm:$0xff]
    %v256 = vld [vmem:[#allocation2 + $0x130] sm:$0xff]
    %v257 = vld [vmem:[#allocation2 + $0x138] sm:$0xff]
    %v258 = vld [vmem:[#allocation2 + $0x140] sm:$0xff]
    %v259 = vld [vmem:[#allocation2 + $0x148] sm:$0xff]
    %v260 = vld [vmem:[#allocation2 + $0x150] sm:$0xff]
    %v261 = vld [vmem:[#allocation2 + $0x158] sm:$0xff]
    %v262 = vld [vmem:[#allocation2 + $0x160] sm:$0xff]
    %v263 = vld [vmem:[#allocation2 + $0x168] sm:$0xff]
    %v264 = vld [vmem:[#allocation2 + $0x170] sm:$0xff]
    %v265 = vld [vmem:[#allocation2 + $0x178] sm:$0xff]
    %v266 = vld [vmem:[#allocation2 + $0x180] sm:$0xff]
    %v267 = vld [vmem:[#allocation2 + $0x188] sm:$0xff]
    %v268 = vld [vmem:[#allocation2 + $0x190] sm:$0xff]
    %v269 = vld [vmem:[#allocation2 + $0x198] sm:$0xff]
    %v270 = vld [vmem:[#allocation2 + $0x1a0] sm:$0xff]
    %v271 = vld [vmem:[#allocation2 + $0x1a8] sm:$0xff]
    %v272 = vld [vmem:[#allocation2 + $0x1b0] sm:$0xff]
    %v273 = vld [vmem:[#allocation2 + $0x1b8] sm:$0xff]
    %v274 = vld [vmem:[#allocation2 + $0x1c0] sm:$0xff]
    %v275 = vld [vmem:[#allocation2 + $0x1c8] sm:$0xff]
    %v276 = vld [vmem:[#allocation2 + $0x1d0] sm:$0xff]
    %v277 = vld [vmem:[#allocation2 + $0x1d8] sm:$0xff]
    %v278 = vld [vmem:[#allocation2 + $0x1e0] sm:$0xff]
    %v279 = vld [vmem:[#allocation2 + $0x1e8] sm:$0xff]
    %v280 = vld [vmem:[#allocation2 + $0x1f0] sm:$0xff]
    %v281 = vld [vmem:[#allocation2 + $0x1f8] sm:$0xff]
    %v282 = vld [vmem:[%s1] sm:$0xff]
    %v283 = vld [vmem:[%s2] sm:$0xf]
    %v284 = vld [vmem:[%s2 + $0x4] sm:$0xf]
    %v285 = vld [vmem:[%s2 + $0x8] sm:$0xf]
    %v286 = vld [vmem:[%s2 + $0xc] sm:$0xf]
    %v287 = vld [vmem:[%s2 + $0x10] sm:$0xf]
    %v288 = vld [vmem:[%s2 + $0x14] sm:$0xf]
    %v289 = vld [vmem:[%s2 + $0x18] sm:$0xf]
    %v290 = vld [vmem:[%s2 + $0x1c] sm:$0xf]
    %v291 = vld [vmem:[%s2 + $0x20] sm:$0xf]
    %v292 = vld [vmem:[%s2 + $0x24] sm:$0xf]
    %v293 = vld [vmem:[%s2 + $0x28] sm:$0xf]
    %v294 = vld [vmem:[%s2 + $0x2c] sm:$0xf]
    %v295 = vld [vmem:[%s2 + $0x30] sm:$0xf]
    %v296 = vld [vmem:[%s2 + $0x34] sm:$0xf]
    %v297 = vld [vmem:[%s2 + $0x38] sm:$0xf]
    %v298 = vld [vmem:[%s2 + $0x3c] sm:$0xf]
    %s299 = scalar_lea.vmem %s2, 64
    %v300 = vld [vmem:[%s299] sm:$0xf]
    %v301 = vld [vmem:[%s299 + $0x4] sm:$0xf]
    %v302 = vld [vmem:[%s299 + $0x8] sm:$0xf]
    %v303 = vld [vmem:[%s299 + $0xc] sm:$0xf]
    %v304 = vld [vmem:[%s299 + $0x10] sm:$0xf]
    %v305 = vld [vmem:[%s299 + $0x14] sm:$0xf]
    %v306 = vld [vmem:[%s299 + $0x18] sm:$0xf]
    %v307 = vld [vmem:[%s299 + $0x1c] sm:$0xf]
    %v308 = vld [vmem:[%s299 + $0x20] sm:$0xf]
    %v309 = vld [vmem:[%s299 + $0x24] sm:$0xf]
    %v310 = vld [vmem:[%s299 + $0x28] sm:$0xf]
    %v311 = vld [vmem:[%s299 + $0x2c] sm:$0xf]
    %v312 = vld [vmem:[%s299 + $0x30] sm:$0xf]
    %v313 = vld [vmem:[%s299 + $0x34] sm:$0xf]
    %v314 = vld [vmem:[%s299 + $0x38] sm:$0xf]
    %v315 = vld [vmem:[%s299 + $0x3c] sm:$0xf]
    %v316 = vadd.f32 %v218, %v219
    %v317 = vadd.f32 %v316, %v220
    %v318 = vadd.f32 %v317, %v221
    %v319 = vadd.f32 %v318, %v222
    %v320 = vadd.f32 %v319, %v223
    %v321 = vadd.f32 %v320, %v224
    %v322 = vadd.f32 %v321, %v225
    %v323 = vadd.f32 %v322, %v226
    %v324 = vadd.f32 %v323, %v227
    %v325 = vadd.f32 %v324, %v228
    %v326 = vadd.f32 %v325, %v229
    %v327 = vadd.f32 %v326, %v230
    %v328 = vadd.f32 %v327, %v231
    %v329 = vadd.f32 %v328, %v232
    %v330 = vadd.f32 %v329, %v233
    %v331 = vadd.f32 %v330, %v234
    %v332 = vadd.f32 %v331, %v235
    %v333 = vadd.f32 %v332, %v236
    %v334 = vadd.f32 %v333, %v237
    %v335 = vadd.f32 %v334, %v238
    %v336 = vadd.f32 %v335, %v239
    %v337 = vadd.f32 %v336, %v240
    %v338 = vadd.f32 %v337, %v241
    %v339 = vadd.f32 %v338, %v242
    %v340 = vadd.f32 %v339, %v243
    %v341 = vadd.f32 %v340, %v244
    %v342 = vadd.f32 %v341, %v245
    %v343 = vadd.f32 %v342, %v246
    %v344 = vadd.f32 %v343, %v247
    %v345 = vadd.f32 %v344, %v248
    %v346 = vadd.f32 %v345, %v249
    %v347 = vadd.f32 %v346, %v250
    %v348 = vadd.f32 %v347, %v251
    %v349 = vadd.f32 %v348, %v252
    %v350 = vadd.f32 %v349, %v253
    %v351 = vadd.f32 %v350, %v254
    %v352 = vadd.f32 %v351, %v255
    %v353 = vadd.f32 %v352, %v256
    %v354 = vadd.f32 %v353, %v257
    %v355 = vadd.f32 %v354, %v258
    %v356 = vadd.f32 %v355, %v259
    %v357 = vadd.f32 %v356, %v260
    %v358 = vadd.f32 %v357, %v261
    %v359 = vadd.f32 %v358, %v262
    %v360 = vadd.f32 %v359, %v263
    %v361 = vadd.f32 %v360, %v264
    %v362 = vadd.f32 %v361, %v265
    %v363 = vadd.f32 %v362, %v266
    %v364 = vadd.f32 %v363, %v267
    %v365 = vadd.f32 %v364, %v268
    %v366 = vadd.f32 %v365, %v269
    %v367 = vadd.f32 %v366, %v270
    %v368 = vadd.f32 %v367, %v271
    %v369 = vadd.f32 %v368, %v272
    %v370 = vadd.f32 %v369, %v273
    %v371 = vadd.f32 %v370, %v274
    %v372 = vadd.f32 %v371, %v275
    %v373 = vadd.f32 %v372, %v276
    %v374 = vadd.f32 %v373, %v277
    %v375 = vadd.f32 %v374, %v278
    %v376 = vadd.f32 %v375, %v279
    %v377 = vadd.f32 %v376, %v280
    %v378 = vadd.f32 %v377, %v281
    %v379 = vrot.slane %v378, 4
    %v380 = vadd.f32 %v378, %v379
    %v381 = vrot.slane %v380, 2
    %v382 = vadd.f32 %v380, %v381
    %v383 = vrot.slane %v382, 1
    %v384 = vadd.f32 %v382, %v383
    %v385 = vrcp.pop 512.0
    %v386 = vmul.f32 %v384, %v385
    %v387 = vmul.f32 %v218, %v218
    %v388 = vmul.f32 %v219, %v219
    %v389 = vmul.f32 %v220, %v220
    %v390 = vmul.f32 %v221, %v221
    %v391 = vmul.f32 %v222, %v222
    %v392 = vmul.f32 %v223, %v223
    %v393 = vmul.f32 %v224, %v224
    %v394 = vmul.f32 %v225, %v225
    %v395 = vmul.f32 %v226, %v226
    %v396 = vmul.f32 %v227, %v227
    %v397 = vmul.f32 %v228, %v228
    %v398 = vmul.f32 %v229, %v229
    %v399 = vmul.f32 %v230, %v230
    %v400 = vmul.f32 %v231, %v231
    %v401 = vmul.f32 %v232, %v232
    %v402 = vmul.f32 %v233, %v233
    %v403 = vmul.f32 %v234, %v234
    %v404 = vmul.f32 %v235, %v235
    %v405 = vmul.f32 %v236, %v236
    %v406 = vmul.f32 %v237, %v237
    %v407 = vmul.f32 %v238, %v238
    %v408 = vmul.f32 %v239, %v239
    %v409 = vmul.f32 %v240, %v240
    %v410 = vmul.f32 %v241, %v241
    %v411 = vmul.f32 %v242, %v242
    %v412 = vmul.f32 %v243, %v243
    %v413 = vmul.f32 %v244, %v244
    %v414 = vmul.f32 %v245, %v245
    %v415 = vmul.f32 %v246, %v246
    %v416 = vmul.f32 %v247, %v247
    %v417 = vmul.f32 %v248, %v248
    %v418 = vmul.f32 %v249, %v249
    %v419 = vmul.f32 %v250, %v250
    %v420 = vmul.f32 %v251, %v251
    %v421 = vmul.f32 %v252, %v252
    %v422 = vmul.f32 %v253, %v253
    %v423 = vmul.f32 %v254, %v254
    %v424 = vmul.f32 %v255, %v255
    %v425 = vmul.f32 %v256, %v256
    %v426 = vmul.f32 %v257, %v257
    %v427 = vmul.f32 %v258, %v258
    %v428 = vmul.f32 %v259, %v259
    %v429 = vmul.f32 %v260, %v260
    %v430 = vmul.f32 %v261, %v261
    %v431 = vmul.f32 %v262, %v262
    %v432 = vmul.f32 %v263, %v263
    %v433 = vmul.f32 %v264, %v264
    %v434 = vmul.f32 %v265, %v265
    %v435 = vmul.f32 %v266, %v266
    %v436 = vmul.f32 %v267, %v267
    %v437 = vmul.f32 %v268, %v268
    %v438 = vmul.f32 %v269, %v269
    %v439 = vmul.f32 %v270, %v270
    %v440 = vmul.f32 %v271, %v271
    %v441 = vmul.f32 %v272, %v272
    %v442 = vmul.f32 %v273, %v273
    %v443 = vmul.f32 %v274, %v274
    %v444 = vmul.f32 %v275, %v275
    %v445 = vmul.f32 %v276, %v276
    %v446 = vmul.f32 %v277, %v277
    %v447 = vmul.f32 %v278, %v278
    %v448 = vmul.f32 %v279, %v279
    %v449 = vmul.f32 %v280, %v280
    %v450 = vmul.f32 %v281, %v281
    %v451 = vadd.f32 %v387, %v388
    %v452 = vadd.f32 %v451, %v389
    %v453 = vadd.f32 %v452, %v390
    %v454 = vadd.f32 %v453, %v391
    %v455 = vadd.f32 %v454, %v392
    %v456 = vadd.f32 %v455, %v393
    %v457 = vadd.f32 %v456, %v394
    %v458 = vadd.f32 %v457, %v395
    %v459 = vadd.f32 %v458, %v396
    %v460 = vadd.f32 %v459, %v397
    %v461 = vadd.f32 %v460, %v398
    %v462 = vadd.f32 %v461, %v399
    %v463 = vadd.f32 %v462, %v400
    %v464 = vadd.f32 %v463, %v401
    %v465 = vadd.f32 %v464, %v402
    %v466 = vadd.f32 %v465, %v403
    %v467 = vadd.f32 %v466, %v404
    %v468 = vadd.f32 %v467, %v405
    %v469 = vadd.f32 %v468, %v406
    %v470 = vadd.f32 %v469, %v407
    %v471 = vadd.f32 %v470, %v408
    %v472 = vadd.f32 %v471, %v409
    %v473 = vadd.f32 %v472, %v410
    %v474 = vadd.f32 %v473, %v411
    %v475 = vadd.f32 %v474, %v412
    %v476 = vadd.f32 %v475, %v413
    %v477 = vadd.f32 %v476, %v414
    %v478 = vadd.f32 %v477, %v415
    %v479 = vadd.f32 %v478, %v416
    %v480 = vadd.f32 %v479, %v417
    %v481 = vadd.f32 %v480, %v418
    %v482 = vadd.f32 %v481, %v419
    %v483 = vadd.f32 %v482, %v420
    %v484 = vadd.f32 %v483, %v421
    %v485 = vadd.f32 %v484, %v422
    %v486 = vadd.f32 %v485, %v423
    %v487 = vadd.f32 %v486, %v424
    %v488 = vadd.f32 %v487, %v425
    %v489 = vadd.f32 %v488, %v426
    %v490 = vadd.f32 %v489, %v427
    %v491 = vadd.f32 %v490, %v428
    %v492 = vadd.f32 %v491, %v429
    %v493 = vadd.f32 %v492, %v430
    %v494 = vadd.f32 %v493, %v431
    %v495 = vadd.f32 %v494, %v432
    %v496 = vadd.f32 %v495, %v433
    %v497 = vadd.f32 %v496, %v434
    %v498 = vadd.f32 %v497, %v435
    %v499 = vadd.f32 %v498, %v436
    %v500 = vadd.f32 %v499, %v437
    %v501 = vadd.f32 %v500, %v438
    %v502 = vadd.f32 %v501, %v439
    %v503 = vadd.f32 %v502, %v440
    %v504 = vadd.f32 %v503, %v441
    %v505 = vadd.f32 %v504, %v442
    %v506 = vadd.f32 %v505, %v443
    %v507 = vadd.f32 %v506, %v444
    %v508 = vadd.f32 %v507, %v445
    %v509 = vadd.f32 %v508, %v446
    %v510 = vadd.f32 %v509, %v447
    %v511 = vadd.f32 %v510, %v448
    %v512 = vadd.f32 %v511, %v449
    %v513 = vadd.f32 %v512, %v450
    %v514 = vrot.slane %v513, 4
    %v515 = vadd.f32 %v513, %v514
    %v516 = vrot.slane %v515, 2
    %v517 = vadd.f32 %v515, %v516
    %v518 = vrot.slane %v517, 1
    %v519 = vadd.f32 %v517, %v518
    %v520 = vmul.f32 %v519, %v385
    %v521 = vmul.f32 %v386, %v386
    %v522 = vsub.f32 %v520, %v521
    %v523 = vmax.f32 %v522, 0.0
    %v524 = vadd.f32 %v523, 1e-05
    %v525 = vrsqrt.pop %v524
    %v526 = vmul.f32 %v525, %v282
    %v527 = vsub.f32 %v218, %v386
    %v528 = vsub.f32 %v219, %v386
    %v529 = vsub.f32 %v220, %v386
    %v530 = vsub.f32 %v221, %v386
    %v531 = vsub.f32 %v222, %v386
    %v532 = vsub.f32 %v223, %v386
    %v533 = vsub.f32 %v224, %v386
    %v534 = vsub.f32 %v225, %v386
    %v535 = vsub.f32 %v226, %v386
    %v536 = vsub.f32 %v227, %v386
    %v537 = vsub.f32 %v228, %v386
    %v538 = vsub.f32 %v229, %v386
    %v539 = vsub.f32 %v230, %v386
    %v540 = vsub.f32 %v231, %v386
    %v541 = vsub.f32 %v232, %v386
    %v542 = vsub.f32 %v233, %v386
    %v543 = vsub.f32 %v234, %v386
    %v544 = vsub.f32 %v235, %v386
    %v545 = vsub.f32 %v236, %v386
    %v546 = vsub.f32 %v237, %v386
    %v547 = vsub.f32 %v238, %v386
    %v548 = vsub.f32 %v239, %v386
    %v549 = vsub.f32 %v240, %v386
    %v550 = vsub.f32 %v241, %v386
    %v551 = vsub.f32 %v242, %v386
    %v552 = vsub.f32 %v243, %v386
    %v553 = vsub.f32 %v244, %v386
    %v554 = vsub.f32 %v245, %v386
    %v555 = vsub.f32 %v246, %v386
    %v556 = vsub.f32 %v247, %v386
    %v557 = vsub.f32 %v248, %v386
    %v558 = vsub.f32 %v249, %v386
    %v559 = vsub.f32 %v250, %v386
    %v560 = vsub.f32 %v251, %v386
    %v561 = vsub.f32 %v252, %v386
    %v562 = vsub.f32 %v253, %v386
    %v563 = vsub.f32 %v254, %v386
    %v564 = vsub.f32 %v255, %v386
    %v565 = vsub.f32 %v256, %v386
    %v566 = vsub.f32 %v257, %v386
    %v567 = vsub.f32 %v258, %v386
    %v568 = vsub.f32 %v259, %v386
    %v569 = vsub.f32 %v260, %v386
    %v570 = vsub.f32 %v261, %v386
    %v571 = vsub.f32 %v262, %v386
    %v572 = vsub.f32 %v263, %v386
    %v573 = vsub.f32 %v264, %v386
    %v574 = vsub.f32 %v265, %v386
    %v575 = vsub.f32 %v266, %v386
    %v576 = vsub.f32 %v267, %v386
    %v577 = vsub.f32 %v268, %v386
    %v578 = vsub.f32 %v269, %v386
    %v579 = vsub.f32 %v270, %v386
    %v580 = vsub.f32 %v271, %v386
    %v581 = vsub.f32 %v272, %v386
    %v582 = vsub.f32 %v273, %v386
    %v583 = vsub.f32 %v274, %v386
    %v584 = vsub.f32 %v275, %v386
    %v585 = vsub.f32 %v276, %v386
    %v586 = vsub.f32 %v277, %v386
    %v587 = vsub.f32 %v278, %v386
    %v588 = vsub.f32 %v279, %v386
    %v589 = vsub.f32 %v280, %v386
    %v590 = vsub.f32 %v281, %v386
    %v591 = vlaneseq
    %v592 = vshrl.u32 %v591, 7
    %v593 = vsub.s32 0, %v592
    %v594 = vrot.slane %v526, %v593
    %v595 = vmul.f32 %v527, %v594
    %v596 = vmul.f32 %v528, %v594
    %v597 = vmul.f32 %v529, %v594
    %v598 = vmul.f32 %v530, %v594
    %v599 = vmul.f32 %v531, %v594
    %v600 = vmul.f32 %v532, %v594
    %v601 = vmul.f32 %v533, %v594
    %v602 = vmul.f32 %v534, %v594
    %v603 = vmul.f32 %v535, %v594
    %v604 = vmul.f32 %v536, %v594
    %v605 = vmul.f32 %v537, %v594
    %v606 = vmul.f32 %v538, %v594
    %v607 = vmul.f32 %v539, %v594
    %v608 = vmul.f32 %v540, %v594
    %v609 = vmul.f32 %v541, %v594
    %v610 = vmul.f32 %v542, %v594
    %v611 = vmul.f32 %v543, %v594
    %v612 = vmul.f32 %v544, %v594
    %v613 = vmul.f32 %v545, %v594
    %v614 = vmul.f32 %v546, %v594
    %v615 = vmul.f32 %v547, %v594
    %v616 = vmul.f32 %v548, %v594
    %v617 = vmul.f32 %v549, %v594
    %v618 = vmul.f32 %v550, %v594
    %v619 = vmul.f32 %v551, %v594
    %v620 = vmul.f32 %v552, %v594
    %v621 = vmul.f32 %v553, %v594
    %v622 = vmul.f32 %v554, %v594
    %v623 = vmul.f32 %v555, %v594
    %v624 = vmul.f32 %v556, %v594
    %v625 = vmul.f32 %v557, %v594
    %v626 = vmul.f32 %v558, %v594
    %v627 = vmul.f32 %v559, %v594
    %v628 = vmul.f32 %v560, %v594
    %v629 = vmul.f32 %v561, %v594
    %v630 = vmul.f32 %v562, %v594
    %v631 = vmul.f32 %v563, %v594
    %v632 = vmul.f32 %v564, %v594
    %v633 = vmul.f32 %v565, %v594
    %v634 = vmul.f32 %v566, %v594
    %v635 = vmul.f32 %v567, %v594
    %v636 = vmul.f32 %v568, %v594
    %v637 = vmul.f32 %v569, %v594
    %v638 = vmul.f32 %v570, %v594
    %v639 = vmul.f32 %v571, %v594
    %v640 = vmul.f32 %v572, %v594
    %v641 = vmul.f32 %v573, %v594
    %v642 = vmul.f32 %v574, %v594
    %v643 = vmul.f32 %v575, %v594
    %v644 = vmul.f32 %v576, %v594
    %v645 = vmul.f32 %v577, %v594
    %v646 = vmul.f32 %v578, %v594
    %v647 = vmul.f32 %v579, %v594
    %v648 = vmul.f32 %v580, %v594
    %v649 = vmul.f32 %v581, %v594
    %v650 = vmul.f32 %v582, %v594
    %v651 = vmul.f32 %v583, %v594
    %v652 = vmul.f32 %v584, %v594
    %v653 = vmul.f32 %v585, %v594
    %v654 = vmul.f32 %v586, %v594
    %v655 = vmul.f32 %v587, %v594
    %v656 = vmul.f32 %v588, %v594
    %v657 = vmul.f32 %v589, %v594
    %v658 = vmul.f32 %v590, %v594
    %v659 = vlaneseq
    %v660 = vshrl.u32 %v659, 7
    %v661 = vsub.s32 1, %v660
    %v662 = vrot.slane %v282, %v661
    %v663 = vadd.f32 %v595, %v662
    %v664 = vadd.f32 %v596, %v662
    %v665 = vadd.f32 %v597, %v662
    %v666 = vadd.f32 %v598, %v662
    %v667 = vadd.f32 %v599, %v662
    %v668 = vadd.f32 %v600, %v662
    %v669 = vadd.f32 %v601, %v662
    %v670 = vadd.f32 %v602, %v662
    %v671 = vadd.f32 %v603, %v662
    %v672 = vadd.f32 %v604, %v662
    %v673 = vadd.f32 %v605, %v662
    %v674 = vadd.f32 %v606, %v662
    %v675 = vadd.f32 %v607, %v662
    %v676 = vadd.f32 %v608, %v662
    %v677 = vadd.f32 %v609, %v662
    %v678 = vadd.f32 %v610, %v662
    %v679 = vadd.f32 %v611, %v662
    %v680 = vadd.f32 %v612, %v662
    %v681 = vadd.f32 %v613, %v662
    %v682 = vadd.f32 %v614, %v662
    %v683 = vadd.f32 %v615, %v662
    %v684 = vadd.f32 %v616, %v662
    %v685 = vadd.f32 %v617, %v662
    %v686 = vadd.f32 %v618, %v662
    %v687 = vadd.f32 %v619, %v662
    %v688 = vadd.f32 %v620, %v662
    %v689 = vadd.f32 %v621, %v662
    %v690 = vadd.f32 %v622, %v662
    %v691 = vadd.f32 %v623, %v662
    %v692 = vadd.f32 %v624, %v662
    %v693 = vadd.f32 %v625, %v662
    %v694 = vadd.f32 %v626, %v662
    %v695 = vadd.f32 %v627, %v662
    %v696 = vadd.f32 %v628, %v662
    %v697 = vadd.f32 %v629, %v662
    %v698 = vadd.f32 %v630, %v662
    %v699 = vadd.f32 %v631, %v662
    %v700 = vadd.f32 %v632, %v662
    %v701 = vadd.f32 %v633, %v662
    %v702 = vadd.f32 %v634, %v662
    %v703 = vadd.f32 %v635, %v662
    %v704 = vadd.f32 %v636, %v662
    %v705 = vadd.f32 %v637, %v662
    %v706 = vadd.f32 %v638, %v662
    %v707 = vadd.f32 %v639, %v662
    %v708 = vadd.f32 %v640, %v662
    %v709 = vadd.f32 %v641, %v662
    %v710 = vadd.f32 %v642, %v662
    %v711 = vadd.f32 %v643, %v662
    %v712 = vadd.f32 %v644, %v662
    %v713 = vadd.f32 %v645, %v662
    %v714 = vadd.f32 %v646, %v662
    %v715 = vadd.f32 %v647, %v662
    %v716 = vadd.f32 %v648, %v662
    %v717 = vadd.f32 %v649, %v662
    %v718 = vadd.f32 %v650, %v662
    %v719 = vadd.f32 %v651, %v662
    %v720 = vadd.f32 %v652, %v662
    %v721 = vadd.f32 %v653, %v662
    %v722 = vadd.f32 %v654, %v662
    %v723 = vadd.f32 %v655, %v662
    %v724 = vadd.f32 %v656, %v662
    %v725 = vadd.f32 %v657, %v662
    %v726 = vadd.f32 %v658, %v662
    %v727 = vmax.f32 %v663, 0.0
    %v728 = vmax.f32 %v664, 0.0
    %v729 = vmax.f32 %v665, 0.0
    %v730 = vmax.f32 %v666, 0.0
    %v731 = vmax.f32 %v667, 0.0
    %v732 = vmax.f32 %v668, 0.0
    %v733 = vmax.f32 %v669, 0.0
    %v734 = vmax.f32 %v670, 0.0
    %v735 = vmax.f32 %v671, 0.0
    %v736 = vmax.f32 %v672, 0.0
    %v737 = vmax.f32 %v673, 0.0
    %v738 = vmax.f32 %v674, 0.0
    %v739 = vmax.f32 %v675, 0.0
    %v740 = vmax.f32 %v676, 0.0
    %v741 = vmax.f32 %v677, 0.0
    %v742 = vmax.f32 %v678, 0.0
    %v743 = vmax.f32 %v679, 0.0
    %v744 = vmax.f32 %v680, 0.0
    %v745 = vmax.f32 %v681, 0.0
    %v746 = vmax.f32 %v682, 0.0
    %v747 = vmax.f32 %v683, 0.0
    %v748 = vmax.f32 %v684, 0.0
    %v749 = vmax.f32 %v685, 0.0
    %v750 = vmax.f32 %v686, 0.0
    %v751 = vmax.f32 %v687, 0.0
    %v752 = vmax.f32 %v688, 0.0
    %v753 = vmax.f32 %v689, 0.0
    %v754 = vmax.f32 %v690, 0.0
    %v755 = vmax.f32 %v691, 0.0
    %v756 = vmax.f32 %v692, 0.0
    %v757 = vmax.f32 %v693, 0.0
    %v758 = vmax.f32 %v694, 0.0
    %v759 = vmax.f32 %v695, 0.0
    %v760 = vmax.f32 %v696, 0.0
    %v761 = vmax.f32 %v697, 0.0
    %v762 = vmax.f32 %v698, 0.0
    %v763 = vmax.f32 %v699, 0.0
    %v764 = vmax.f32 %v700, 0.0
    %v765 = vmax.f32 %v701, 0.0
    %v766 = vmax.f32 %v702, 0.0
    %v767 = vmax.f32 %v703, 0.0
    %v768 = vmax.f32 %v704, 0.0
    %v769 = vmax.f32 %v705, 0.0
    %v770 = vmax.f32 %v706, 0.0
    %v771 = vmax.f32 %v707, 0.0
    %v772 = vmax.f32 %v708, 0.0
    %v773 = vmax.f32 %v709, 0.0
    %v774 = vmax.f32 %v710, 0.0
    %v775 = vmax.f32 %v711, 0.0
    %v776 = vmax.f32 %v712, 0.0
    %v777 = vmax.f32 %v713, 0.0
    %v778 = vmax.f32 %v714, 0.0
    %v779 = vmax.f32 %v715, 0.0
    %v780 = vmax.f32 %v716, 0.0
    %v781 = vmax.f32 %v717, 0.0
    %v782 = vmax.f32 %v718, 0.0
    %v783 = vmax.f32 %v719, 0.0
    %v784 = vmax.f32 %v720, 0.0
    %v785 = vmax.f32 %v721, 0.0
    %v786 = vmax.f32 %v722, 0.0
    %v787 = vmax.f32 %v723, 0.0
    %v788 = vmax.f32 %v724, 0.0
    %v789 = vmax.f32 %v725, 0.0
    %v790 = vmax.f32 %v726, 0.0
    %v791 = vpack.c.bf16 %v728, %v727
    %v792 = vpack.c.bf16 %v730, %v729
    %v793 = vpack.c.bf16 %v732, %v731
    %v794 = vpack.c.bf16 %v734, %v733
    %v795 = vpack.c.bf16 %v736, %v735
    %v796 = vpack.c.bf16 %v738, %v737
    %v797 = vpack.c.bf16 %v740, %v739
    %v798 = vpack.c.bf16 %v742, %v741
    %v799 = vpack.c.bf16 %v744, %v743
    %v800 = vpack.c.bf16 %v746, %v745
    %v801 = vpack.c.bf16 %v748, %v747
    %v802 = vpack.c.bf16 %v750, %v749
    %v803 = vpack.c.bf16 %v752, %v751
    %v804 = vpack.c.bf16 %v754, %v753
    %v805 = vpack.c.bf16 %v756, %v755
    %v806 = vpack.c.bf16 %v758, %v757
    %v807 = vpack.c.bf16 %v760, %v759
    %v808 = vpack.c.bf16 %v762, %v761
    %v809 = vpack.c.bf16 %v764, %v763
    %v810 = vpack.c.bf16 %v766, %v765
    %v811 = vpack.c.bf16 %v768, %v767
    %v812 = vpack.c.bf16 %v770, %v769
    %v813 = vpack.c.bf16 %v772, %v771
    %v814 = vpack.c.bf16 %v774, %v773
    %v815 = vpack.c.bf16 %v776, %v775
    %v816 = vpack.c.bf16 %v778, %v777
    %v817 = vpack.c.bf16 %v780, %v779
    %v818 = vpack.c.bf16 %v782, %v781
    %v819 = vpack.c.bf16 %v784, %v783
    %v820 = vpack.c.bf16 %v786, %v785
    %v821 = vpack.c.bf16 %v788, %v787
    %v822 = vpack.c.bf16 %v790, %v789
    %v839 = vunpack.c.l.b16 %v283
    %v840 = vunpack.c.l.b16 %v284
    %v841 = vunpack.c.l.b16 %v285
    %v842 = vunpack.c.l.b16 %v286
    %v843 = vunpack.c.l.b16 %v287
    %v844 = vunpack.c.l.b16 %v288
    %v845 = vunpack.c.l.b16 %v289
    %v846 = vunpack.c.l.b16 %v290
    %v847 = vunpack.c.l.b16 %v291
    %v848 = vunpack.c.l.b16 %v292
    %v849 = vunpack.c.l.b16 %v293
    %v850 = vunpack.c.l.b16 %v294
    %v851 = vunpack.c.l.b16 %v295
    %v852 = vunpack.c.l.b16 %v296
    %v853 = vunpack.c.l.b16 %v297
    %v854 = vunpack.c.l.b16 %v298
    %v855 = vpack.c.b16 %v840, %v839
    %v856 = vpack.c.b16 %v842, %v841
    %v857 = vpack.c.b16 %v844, %v843
    %v858 = vpack.c.b16 %v846, %v845
    %v859 = vpack.c.b16 %v848, %v847
    %v860 = vpack.c.b16 %v850, %v849
    %v861 = vpack.c.b16 %v852, %v851
    %v862 = vpack.c.b16 %v854, %v853
    %871 = vmatprep.subr.bf16.mxu0 0
    %872 = vmatpush1.bf16.msra.mxu0 %v855
    %873 = vmatprep.subr.bf16.mxu0 0
    %874 = vmatpush1.bf16.msra.mxu0 %v856
    %875 = vmatprep.subr.bf16.mxu0 0
    %876 = vmatpush1.bf16.msra.mxu0 %v857
    %877 = vmatprep.subr.bf16.mxu0 0
    %878 = vmatpush1.bf16.msra.mxu0 %v858
    %879 = vmatprep.subr.bf16.mxu0 0
    %880 = vmatpush1.bf16.msra.mxu0 %v859
    %881 = vmatprep.subr.bf16.mxu0 0
    %882 = vmatpush1.bf16.msra.mxu0 %v860
    %883 = vmatprep.subr.bf16.mxu0 0
    %884 = vmatpush1.bf16.msra.mxu0 %v861
    %885 = vmatprep.subr.bf16.mxu0 0
    %886 = vmatpush1.bf16.msra.mxu0 %v862
    %887 = vmatprep.subr.bf16.mxu0 0
    %888 = vmatpush1.bf16.msra.mxu0 0
    %889 = vmatprep.subr.bf16.mxu0 0
    %890 = vmatpush1.bf16.msra.mxu0 0
    %891 = vmatprep.subr.bf16.mxu0 0
    %892 = vmatpush1.bf16.msra.mxu0 0
    %893 = vmatprep.subr.bf16.mxu0 0
    %894 = vmatpush1.bf16.msra.mxu0 0
    %895 = vmatprep.subr.bf16.mxu0 0
    %896 = vmatpush1.bf16.msra.mxu0 0
    %897 = vmatprep.subr.bf16.mxu0 0
    %898 = vmatpush1.bf16.msra.mxu0 0
    %899 = vmatprep.subr.bf16.mxu0 0
    %900 = vmatpush1.bf16.msra.mxu0 0
    %901 = vmatprep.subr.bf16.mxu0 0
    %902 = vmatpush1.bf16.msra.mxu0 0
    %903 = vmatprep.mubr.bf16.mxu0 0
    %904 = vmatmul.mubr.bf16.gmra.mrb[0].mxu0 %v791
    %v905 = vpop.f32.mrb[0].mxu0
    %v906 = vadd.f32 0.0, %v905
    %v907 = vpop.f32.mrb[0].mxu0
    %v908 = vpop.f32.mrb[0].mxu0
    %v909 = vadd.f32 0.0, %v908
    %v910 = vpop.f32.mrb[0].mxu0
    %911 = vmatprep.mubr.bf16.mxu0 0
    %912 = vmatmul.mubr.bf16.gmra.mrb[0].mxu0 %v792
    %v913 = vpop.f32.mrb[0].mxu0
    %v914 = vadd.f32 0.0, %v913
    %v915 = vpop.f32.mrb[0].mxu0
    %v916 = vpop.f32.mrb[0].mxu0
    %v917 = vadd.f32 0.0, %v916
    %v918 = vpop.f32.mrb[0].mxu0
    %919 = vmatprep.mubr.bf16.mxu0 0
    %920 = vmatmul.mubr.bf16.gmra.mrb[0].mxu0 %v793
    %v921 = vpop.f32.mrb[0].mxu0
    %v922 = vadd.f32 0.0, %v921
    %v923 = vpop.f32.mrb[0].mxu0
    %v924 = vpop.f32.mrb[0].mxu0
    %v925 = vadd.f32 0.0, %v924
    %v926 = vpop.f32.mrb[0].mxu0
    %927 = vmatprep.mubr.bf16.mxu0 0
    %928 = vmatmul.mubr.bf16.gmra.mrb[0].mxu0 %v794
    %v929 = vpop.f32.mrb[0].mxu0
    %v930 = vadd.f32 0.0, %v929
    %v931 = vpop.f32.mrb[0].mxu0
    %v932 = vpop.f32.mrb[0].mxu0
    %v933 = vadd.f32 0.0, %v932
    %v934 = vpop.f32.mrb[0].mxu0
    %935 = vmatprep.mubr.bf16.mxu0 0
    %936 = vmatmul.mubr.bf16.gmra.mrb[0].mxu0 %v795
    %v937 = vpop.f32.mrb[0].mxu0
    %v938 = vadd.f32 0.0, %v937
    %v939 = vpop.f32.mrb[0].mxu0
    %v940 = vpop.f32.mrb[0].mxu0
    %v941 = vadd.f32 0.0, %v940
    %v942 = vpop.f32.mrb[0].mxu0
    %943 = vmatprep.mubr.bf16.mxu0 0
    %944 = vmatmul.mubr.bf16.gmra.mrb[0].mxu0 %v796
    %v945 = vpop.f32.mrb[0].mxu0
    %v946 = vadd.f32 0.0, %v945
    %v947 = vpop.f32.mrb[0].mxu0
    %v948 = vpop.f32.mrb[0].mxu0
    %v949 = vadd.f32 0.0, %v948
    %v950 = vpop.f32.mrb[0].mxu0
    %951 = vmatprep.mubr.bf16.mxu0 0
    %952 = vmatmul.mubr.bf16.gmra.mrb[0].mxu0 %v797
    %v953 = vpop.f32.mrb[0].mxu0
    %v954 = vadd.f32 0.0, %v953
    %v955 = vpop.f32.mrb[0].mxu0
    %v956 = vpop.f32.mrb[0].mxu0
    %v957 = vadd.f32 0.0, %v956
    %v958 = vpop.f32.mrb[0].mxu0
    %959 = vmatprep.mubr.bf16.mxu0 0
    %960 = vmatmul.mubr.bf16.gmra.mrb[0].mxu0 %v798
    %v961 = vpop.f32.mrb[0].mxu0
    %v962 = vadd.f32 0.0, %v961
    %v963 = vpop.f32.mrb[0].mxu0
    %v964 = vpop.f32.mrb[0].mxu0
    %v965 = vadd.f32 0.0, %v964
    %v966 = vpop.f32.mrb[0].mxu0
    %967 = vmatprep.mubr.bf16.mxu0 0
    %968 = vmatmul.mubr.bf16.gmra.mrb[0].mxu0 %v799
    %v969 = vpop.f32.mrb[0].mxu0
    %v970 = vadd.f32 0.0, %v969
    %v971 = vpop.f32.mrb[0].mxu0
    %v972 = vpop.f32.mrb[0].mxu0
    %v973 = vadd.f32 0.0, %v972
    %v974 = vpop.f32.mrb[0].mxu0
    %975 = vmatprep.mubr.bf16.mxu0 0
    %976 = vmatmul.mubr.bf16.gmra.mrb[0].mxu0 %v800
    %v977 = vpop.f32.mrb[0].mxu0
    %v978 = vadd.f32 0.0, %v977
    %v979 = vpop.f32.mrb[0].mxu0
    %v980 = vpop.f32.mrb[0].mxu0
    %v981 = vadd.f32 0.0, %v980
    %v982 = vpop.f32.mrb[0].mxu0
    %983 = vmatprep.mubr.bf16.mxu0 0
    %984 = vmatmul.mubr.bf16.gmra.mrb[0].mxu0 %v801
    %v985 = vpop.f32.mrb[0].mxu0
    %v986 = vadd.f32 0.0, %v985
    %v987 = vpop.f32.mrb[0].mxu0
    %v988 = vpop.f32.mrb[0].mxu0
    %v989 = vadd.f32 0.0, %v988
    %v990 = vpop.f32.mrb[0].mxu0
    %991 = vmatprep.mubr.bf16.mxu0 0
    %992 = vmatmul.mubr.bf16.gmra.mrb[0].mxu0 %v802
    %v993 = vpop.f32.mrb[0].mxu0
    %v994 = vadd.f32 0.0, %v993
    %v995 = vpop.f32.mrb[0].mxu0
    %v996 = vpop.f32.mrb[0].mxu0
    %v997 = vadd.f32 0.0, %v996
    %v998 = vpop.f32.mrb[0].mxu0
    %999 = vmatprep.mubr.bf16.mxu0 0
    %1000 = vmatmul.mubr.bf16.gmra.mrb[0].mxu0 %v803
    %v1001 = vpop.f32.mrb[0].mxu0
    %v1002 = vadd.f32 0.0, %v1001
    %v1003 = vpop.f32.mrb[0].mxu0
    %v1004 = vpop.f32.mrb[0].mxu0
    %v1005 = vadd.f32 0.0, %v1004
    %v1006 = vpop.f32.mrb[0].mxu0
    %1007 = vmatprep.mubr.bf16.mxu0 0
    %1008 = vmatmul.mubr.bf16.gmra.mrb[0].mxu0 %v804
    %v1009 = vpop.f32.mrb[0].mxu0
    %v1010 = vadd.f32 0.0, %v1009
    %v1011 = vpop.f32.mrb[0].mxu0
    %v1012 = vpop.f32.mrb[0].mxu0
    %v1013 = vadd.f32 0.0, %v1012
    %v1014 = vpop.f32.mrb[0].mxu0
    %1015 = vmatprep.mubr.bf16.mxu0 0
    %1016 = vmatmul.mubr.bf16.gmra.mrb[0].mxu0 %v805
    %v1017 = vpop.f32.mrb[0].mxu0
    %v1018 = vadd.f32 0.0, %v1017
    %v1019 = vpop.f32.mrb[0].mxu0
    %v1020 = vpop.f32.mrb[0].mxu0
    %v1021 = vadd.f32 0.0, %v1020
    %v1022 = vpop.f32.mrb[0].mxu0
    %1023 = vmatprep.mubr.bf16.mxu0 0
    %1024 = vmatmul.mubr.bf16.gmra.mrb[0].mxu0 %v806
    %v1025 = vpop.f32.mrb[0].mxu0
    %v1026 = vadd.f32 0.0, %v1025
    %v1027 = vpop.f32.mrb[0].mxu0
    %v1028 = vpop.f32.mrb[0].mxu0
    %v1029 = vadd.f32 0.0, %v1028
    %v1030 = vpop.f32.mrb[0].mxu0
    %1031 = vmatprep.mubr.bf16.mxu0 0
    %1032 = vmatmul.mubr.bf16.gmra.mrb[0].mxu0 %v807
    %v1033 = vpop.f32.mrb[0].mxu0
    %v1034 = vadd.f32 0.0, %v1033
    %v1035 = vpop.f32.mrb[0].mxu0
    %v1036 = vpop.f32.mrb[0].mxu0
    %v1037 = vadd.f32 0.0, %v1036
    %v1038 = vpop.f32.mrb[0].mxu0
    %1039 = vmatprep.mubr.bf16.mxu0 0
    %1040 = vmatmul.mubr.bf16.gmra.mrb[0].mxu0 %v808
    %v1041 = vpop.f32.mrb[0].mxu0
    %v1042 = vadd.f32 0.0, %v1041
    %v1043 = vpop.f32.mrb[0].mxu0
    %v1044 = vpop.f32.mrb[0].mxu0
    %v1045 = vadd.f32 0.0, %v1044
    %v1046 = vpop.f32.mrb[0].mxu0
    %1047 = vmatprep.mubr.bf16.mxu0 0
    %1048 = vmatmul.mubr.bf16.gmra.mrb[0].mxu0 %v809
    %v1049 = vpop.f32.mrb[0].mxu0
    %v1050 = vadd.f32 0.0, %v1049
    %v1051 = vpop.f32.mrb[0].mxu0
    %v1052 = vpop.f32.mrb[0].mxu0
    %v1053 = vadd.f32 0.0, %v1052
    %v1054 = vpop.f32.mrb[0].mxu0
    %1055 = vmatprep.mubr.bf16.mxu0 0
    %1056 = vmatmul.mubr.bf16.gmra.mrb[0].mxu0 %v810
    %v1057 = vpop.f32.mrb[0].mxu0
    %v1058 = vadd.f32 0.0, %v1057
    %v1059 = vpop.f32.mrb[0].mxu0
    %v1060 = vpop.f32.mrb[0].mxu0
    %v1061 = vadd.f32 0.0, %v1060
    %v1062 = vpop.f32.mrb[0].mxu0
    %1063 = vmatprep.mubr.bf16.mxu0 0
    %1064 = vmatmul.mubr.bf16.gmra.mrb[0].mxu0 %v811
    %v1065 = vpop.f32.mrb[0].mxu0
    %v1066 = vadd.f32 0.0, %v1065
    %v1067 = vpop.f32.mrb[0].mxu0
    %v1068 = vpop.f32.mrb[0].mxu0
    %v1069 = vadd.f32 0.0, %v1068
    %v1070 = vpop.f32.mrb[0].mxu0
    %1071 = vmatprep.mubr.bf16.mxu0 0
    %1072 = vmatmul.mubr.bf16.gmra.mrb[0].mxu0 %v812
    %v1073 = vpop.f32.mrb[0].mxu0
    %v1074 = vadd.f32 0.0, %v1073
    %v1075 = vpop.f32.mrb[0].mxu0
    %v1076 = vpop.f32.mrb[0].mxu0
    %v1077 = vadd.f32 0.0, %v1076
    %v1078 = vpop.f32.mrb[0].mxu0
    %1079 = vmatprep.mubr.bf16.mxu0 0
    %1080 = vmatmul.mubr.bf16.gmra.mrb[0].mxu0 %v813
    %v1081 = vpop.f32.mrb[0].mxu0
    %v1082 = vadd.f32 0.0, %v1081
    %v1083 = vpop.f32.mrb[0].mxu0
    %v1084 = vpop.f32.mrb[0].mxu0
    %v1085 = vadd.f32 0.0, %v1084
    %v1086 = vpop.f32.mrb[0].mxu0
    %1087 = vmatprep.mubr.bf16.mxu0 0
    %1088 = vmatmul.mubr.bf16.gmra.mrb[0].mxu0 %v814
    %v1089 = vpop.f32.mrb[0].mxu0
    %v1090 = vadd.f32 0.0, %v1089
    %v1091 = vpop.f32.mrb[0].mxu0
    %v1092 = vpop.f32.mrb[0].mxu0
    %v1093 = vadd.f32 0.0, %v1092
    %v1094 = vpop.f32.mrb[0].mxu0
    %1095 = vmatprep.mubr.bf16.mxu0 0
    %1096 = vmatmul.mubr.bf16.gmra.mrb[0].mxu0 %v815
    %v1097 = vpop.f32.mrb[0].mxu0
    %v1098 = vadd.f32 0.0, %v1097
    %v1099 = vpop.f32.mrb[0].mxu0
    %v1100 = vpop.f32.mrb[0].mxu0
    %v1101 = vadd.f32 0.0, %v1100
    %v1102 = vpop.f32.mrb[0].mxu0
    %1103 = vmatprep.mubr.bf16.mxu0 0
    %1104 = vmatmul.mubr.bf16.gmra.mrb[0].mxu0 %v816
    %v1105 = vpop.f32.mrb[0].mxu0
    %v1106 = vadd.f32 0.0, %v1105
    %v1107 = vpop.f32.mrb[0].mxu0
    %v1108 = vpop.f32.mrb[0].mxu0
    %v1109 = vadd.f32 0.0, %v1108
    %v1110 = vpop.f32.mrb[0].mxu0
    %1111 = vmatprep.mubr.bf16.mxu0 0
    %1112 = vmatmul.mubr.bf16.gmra.mrb[0].mxu0 %v817
    %v1113 = vpop.f32.mrb[0].mxu0
    %v1114 = vadd.f32 0.0, %v1113
    %v1115 = vpop.f32.mrb[0].mxu0
    %v1116 = vpop.f32.mrb[0].mxu0
    %v1117 = vadd.f32 0.0, %v1116
    %v1118 = vpop.f32.mrb[0].mxu0
    %1119 = vmatprep.mubr.bf16.mxu0 0
    %1120 = vmatmul.mubr.bf16.gmra.mrb[0].mxu0 %v818
    %v1121 = vpop.f32.mrb[0].mxu0
    %v1122 = vadd.f32 0.0, %v1121
    %v1123 = vpop.f32.mrb[0].mxu0
    %v1124 = vpop.f32.mrb[0].mxu0
    %v1125 = vadd.f32 0.0, %v1124
    %v1126 = vpop.f32.mrb[0].mxu0
    %1127 = vmatprep.mubr.bf16.mxu0 0
    %1128 = vmatmul.mubr.bf16.gmra.mrb[0].mxu0 %v819
    %v1129 = vpop.f32.mrb[0].mxu0
    %v1130 = vadd.f32 0.0, %v1129
    %v1131 = vpop.f32.mrb[0].mxu0
    %v1132 = vpop.f32.mrb[0].mxu0
    %v1133 = vadd.f32 0.0, %v1132
    %v1134 = vpop.f32.mrb[0].mxu0
    %1135 = vmatprep.mubr.bf16.mxu0 0
    %1136 = vmatmul.mubr.bf16.gmra.mrb[0].mxu0 %v820
    %v1137 = vpop.f32.mrb[0].mxu0
    %v1138 = vadd.f32 0.0, %v1137
    %v1139 = vpop.f32.mrb[0].mxu0
    %v1140 = vpop.f32.mrb[0].mxu0
    %v1141 = vadd.f32 0.0, %v1140
    %v1142 = vpop.f32.mrb[0].mxu0
    %1143 = vmatprep.mubr.bf16.mxu0 0
    %1144 = vmatmul.mubr.bf16.gmra.mrb[0].mxu0 %v821
    %v1145 = vpop.f32.mrb[0].mxu0
    %v1146 = vadd.f32 0.0, %v1145
    %v1147 = vpop.f32.mrb[0].mxu0
    %v1148 = vpop.f32.mrb[0].mxu0
    %v1149 = vadd.f32 0.0, %v1148
    %v1150 = vpop.f32.mrb[0].mxu0
    %1151 = vmatprep.mubr.bf16.mxu0 0
    %1152 = vmatmul.mubr.bf16.gmra.mrb[0].mxu0 %v822
    %v1153 = vpop.f32.mrb[0].mxu0
    %v1154 = vadd.f32 0.0, %v1153
    %v1155 = vpop.f32.mrb[0].mxu0
    %v1156 = vpop.f32.mrb[0].mxu0
    %v1157 = vadd.f32 0.0, %v1156
    %v1158 = vpop.f32.mrb[0].mxu0
    %1159 = vdwg.mxu0
    %v1160 = vadd.f32 %v906, %v909
    %v1161 = vadd.f32 %v1160, %v914
    %v1162 = vadd.f32 %v1161, %v917
    %v1163 = vadd.f32 %v1162, %v922
    %v1164 = vadd.f32 %v1163, %v925
    %v1165 = vadd.f32 %v1164, %v930
    %v1166 = vadd.f32 %v1165, %v933
    %v1167 = vadd.f32 %v1166, %v938
    %v1168 = vadd.f32 %v1167, %v941
    %v1169 = vadd.f32 %v1168, %v946
    %v1170 = vadd.f32 %v1169, %v949
    %v1171 = vadd.f32 %v1170, %v954
    %v1172 = vadd.f32 %v1171, %v957
    %v1173 = vadd.f32 %v1172, %v962
    %v1174 = vadd.f32 %v1173, %v965
    %v1175 = vadd.f32 %v1174, %v970
    %v1176 = vadd.f32 %v1175, %v973
    %v1177 = vadd.f32 %v1176, %v978
    %v1178 = vadd.f32 %v1177, %v981
    %v1179 = vadd.f32 %v1178, %v986
    %v1180 = vadd.f32 %v1179, %v989
    %v1181 = vadd.f32 %v1180, %v994
    %v1182 = vadd.f32 %v1181, %v997
    %v1183 = vadd.f32 %v1182, %v1002
    %v1184 = vadd.f32 %v1183, %v1005
    %v1185 = vadd.f32 %v1184, %v1010
    %v1186 = vadd.f32 %v1185, %v1013
    %v1187 = vadd.f32 %v1186, %v1018
    %v1188 = vadd.f32 %v1187, %v1021
    %v1189 = vadd.f32 %v1188, %v1026
    %v1190 = vadd.f32 %v1189, %v1029
    %v1191 = vadd.f32 %v1190, %v1034
    %v1192 = vadd.f32 %v1191, %v1037
    %v1193 = vadd.f32 %v1192, %v1042
    %v1194 = vadd.f32 %v1193, %v1045
    %v1195 = vadd.f32 %v1194, %v1050
    %v1196 = vadd.f32 %v1195, %v1053
    %v1197 = vadd.f32 %v1196, %v1058
    %v1198 = vadd.f32 %v1197, %v1061
    %v1199 = vadd.f32 %v1198, %v1066
    %v1200 = vadd.f32 %v1199, %v1069
    %v1201 = vadd.f32 %v1200, %v1074
    %v1202 = vadd.f32 %v1201, %v1077
    %v1203 = vadd.f32 %v1202, %v1082
    %v1204 = vadd.f32 %v1203, %v1085
    %v1205 = vadd.f32 %v1204, %v1090
    %v1206 = vadd.f32 %v1205, %v1093
    %v1207 = vadd.f32 %v1206, %v1098
    %v1208 = vadd.f32 %v1207, %v1101
    %v1209 = vadd.f32 %v1208, %v1106
    %v1210 = vadd.f32 %v1209, %v1109
    %v1211 = vadd.f32 %v1210, %v1114
    %v1212 = vadd.f32 %v1211, %v1117
    %v1213 = vadd.f32 %v1212, %v1122
    %v1214 = vadd.f32 %v1213, %v1125
    %v1215 = vadd.f32 %v1214, %v1130
    %v1216 = vadd.f32 %v1215, %v1133
    %v1217 = vadd.f32 %v1216, %v1138
    %v1218 = vadd.f32 %v1217, %v1141
    %v1219 = vadd.f32 %v1218, %v1146
    %v1220 = vadd.f32 %v1219, %v1149
    %v1221 = vadd.f32 %v1220, %v1154
    %v1222 = vadd.f32 %v1221, %v1157
    %v1223 = vrot.slane %v1222, 4
    %v1224 = vadd.f32 %v1222, %v1223
    %v1225 = vrot.slane %v1224, 2
    %v1226 = vadd.f32 %v1224, %v1225
    %v1227 = vrot.slane %v1226, 1
    %v1228 = vadd.f32 %v1226, %v1227
    %v1229 = vmul.f32 %v1228, %v385
    %v1230 = vmul.f32 %v906, %v906
    %v1231 = vmul.f32 %v909, %v909
    %v1232 = vmul.f32 %v914, %v914
    %v1233 = vmul.f32 %v917, %v917
    %v1234 = vmul.f32 %v922, %v922
    %v1235 = vmul.f32 %v925, %v925
    %v1236 = vmul.f32 %v930, %v930
    %v1237 = vmul.f32 %v933, %v933
    %v1238 = vmul.f32 %v938, %v938
    %v1239 = vmul.f32 %v941, %v941
    %v1240 = vmul.f32 %v946, %v946
    %v1241 = vmul.f32 %v949, %v949
    %v1242 = vmul.f32 %v954, %v954
    %v1243 = vmul.f32 %v957, %v957
    %v1244 = vmul.f32 %v962, %v962
    %v1245 = vmul.f32 %v965, %v965
    %v1246 = vmul.f32 %v970, %v970
    %v1247 = vmul.f32 %v973, %v973
    %v1248 = vmul.f32 %v978, %v978
    %v1249 = vmul.f32 %v981, %v981
    %v1250 = vmul.f32 %v986, %v986
    %v1251 = vmul.f32 %v989, %v989
    %v1252 = vmul.f32 %v994, %v994
    %v1253 = vmul.f32 %v997, %v997
    %v1254 = vmul.f32 %v1002, %v1002
    %v1255 = vmul.f32 %v1005, %v1005
    %v1256 = vmul.f32 %v1010, %v1010
    %v1257 = vmul.f32 %v1013, %v1013
    %v1258 = vmul.f32 %v1018, %v1018
    %v1259 = vmul.f32 %v1021, %v1021
    %v1260 = vmul.f32 %v1026, %v1026
    %v1261 = vmul.f32 %v1029, %v1029
    %v1262 = vmul.f32 %v1034, %v1034
    %v1263 = vmul.f32 %v1037, %v1037
    %v1264 = vmul.f32 %v1042, %v1042
    %v1265 = vmul.f32 %v1045, %v1045
    %v1266 = vmul.f32 %v1050, %v1050
    %v1267 = vmul.f32 %v1053, %v1053
    %v1268 = vmul.f32 %v1058, %v1058
    %v1269 = vmul.f32 %v1061, %v1061
    %v1270 = vmul.f32 %v1066, %v1066
    %v1271 = vmul.f32 %v1069, %v1069
    %v1272 = vmul.f32 %v1074, %v1074
    %v1273 = vmul.f32 %v1077, %v1077
    %v1274 = vmul.f32 %v1082, %v1082
    %v1275 = vmul.f32 %v1085, %v1085
    %v1276 = vmul.f32 %v1090, %v1090
    %v1277 = vmul.f32 %v1093, %v1093
    %v1278 = vmul.f32 %v1098, %v1098
    %v1279 = vmul.f32 %v1101, %v1101
    %v1280 = vmul.f32 %v1106, %v1106
    %v1281 = vmul.f32 %v1109, %v1109
    %v1282 = vmul.f32 %v1114, %v1114
    %v1283 = vmul.f32 %v1117, %v1117
    %v1284 = vmul.f32 %v1122, %v1122
    %v1285 = vmul.f32 %v1125, %v1125
    %v1286 = vmul.f32 %v1130, %v1130
    %v1287 = vmul.f32 %v1133, %v1133
    %v1288 = vmul.f32 %v1138, %v1138
    %v1289 = vmul.f32 %v1141, %v1141
    %v1290 = vmul.f32 %v1146, %v1146
    %v1291 = vmul.f32 %v1149, %v1149
    %v1292 = vmul.f32 %v1154, %v1154
    %v1293 = vmul.f32 %v1157, %v1157
    %v1294 = vadd.f32 %v1230, %v1231
    %v1295 = vadd.f32 %v1294, %v1232
    %v1296 = vadd.f32 %v1295, %v1233
    %v1297 = vadd.f32 %v1296, %v1234
    %v1298 = vadd.f32 %v1297, %v1235
    %v1299 = vadd.f32 %v1298, %v1236
    %v1300 = vadd.f32 %v1299, %v1237
    %v1301 = vadd.f32 %v1300, %v1238
    %v1302 = vadd.f32 %v1301, %v1239
    %v1303 = vadd.f32 %v1302, %v1240
    %v1304 = vadd.f32 %v1303, %v1241
    %v1305 = vadd.f32 %v1304, %v1242
    %v1306 = vadd.f32 %v1305, %v1243
    %v1307 = vadd.f32 %v1306, %v1244
    %v1308 = vadd.f32 %v1307, %v1245
    %v1309 = vadd.f32 %v1308, %v1246
    %v1310 = vadd.f32 %v1309, %v1247
    %v1311 = vadd.f32 %v1310, %v1248
    %v1312 = vadd.f32 %v1311, %v1249
    %v1313 = vadd.f32 %v1312, %v1250
    %v1314 = vadd.f32 %v1313, %v1251
    %v1315 = vadd.f32 %v1314, %v1252
    %v1316 = vadd.f32 %v1315, %v1253
    %v1317 = vadd.f32 %v1316, %v1254
    %v1318 = vadd.f32 %v1317, %v1255
    %v1319 = vadd.f32 %v1318, %v1256
    %v1320 = vadd.f32 %v1319, %v1257
    %v1321 = vadd.f32 %v1320, %v1258
    %v1322 = vadd.f32 %v1321, %v1259
    %v1323 = vadd.f32 %v1322, %v1260
    %v1324 = vadd.f32 %v1323, %v1261
    %v1325 = vadd.f32 %v1324, %v1262
    %v1326 = vadd.f32 %v1325, %v1263
    %v1327 = vadd.f32 %v1326, %v1264
    %v1328 = vadd.f32 %v1327, %v1265
    %v1329 = vadd.f32 %v1328, %v1266
    %v1330 = vadd.f32 %v1329, %v1267
    %v1331 = vadd.f32 %v1330, %v1268
    %v1332 = vadd.f32 %v1331, %v1269
    %v1333 = vadd.f32 %v1332, %v1270
    %v1334 = vadd.f32 %v1333, %v1271
    %v1335 = vadd.f32 %v1334, %v1272
    %v1336 = vadd.f32 %v1335, %v1273
    %v1337 = vadd.f32 %v1336, %v1274
    %v1338 = vadd.f32 %v1337, %v1275
    %v1339 = vadd.f32 %v1338, %v1276
    %v1340 = vadd.f32 %v1339, %v1277
    %v1341 = vadd.f32 %v1340, %v1278
    %v1342 = vadd.f32 %v1341, %v1279
    %v1343 = vadd.f32 %v1342, %v1280
    %v1344 = vadd.f32 %v1343, %v1281
    %v1345 = vadd.f32 %v1344, %v1282
    %v1346 = vadd.f32 %v1345, %v1283
    %v1347 = vadd.f32 %v1346, %v1284
    %v1348 = vadd.f32 %v1347, %v1285
    %v1349 = vadd.f32 %v1348, %v1286
    %v1350 = vadd.f32 %v1349, %v1287
    %v1351 = vadd.f32 %v1350, %v1288
    %v1352 = vadd.f32 %v1351, %v1289
    %v1353 = vadd.f32 %v1352, %v1290
    %v1354 = vadd.f32 %v1353, %v1291
    %v1355 = vadd.f32 %v1354, %v1292
    %v1356 = vadd.f32 %v1355, %v1293
    %v1357 = vrot.slane %v1356, 4
    %v1358 = vadd.f32 %v1356, %v1357
    %v1359 = vrot.slane %v1358, 2
    %v1360 = vadd.f32 %v1358, %v1359
    %v1361 = vrot.slane %v1360, 1
    %v1362 = vadd.f32 %v1360, %v1361
    %v1363 = vmul.f32 %v1362, %v385
    %v1364 = vmul.f32 %v1229, %v1229
    %v1365 = vsub.f32 %v1363, %v1364
    %v1366 = vmax.f32 %v1365, 0.0
    %v1367 = vadd.f32 %v1366, 1e-05
    %v1368 = vrsqrt.pop %v1367
    %v1369 = vmul.f32 %v1368, %v282
    %v1370 = vsub.f32 %v906, %v1229
    %v1371 = vsub.f32 %v909, %v1229
    %v1372 = vsub.f32 %v914, %v1229
    %v1373 = vsub.f32 %v917, %v1229
    %v1374 = vsub.f32 %v922, %v1229
    %v1375 = vsub.f32 %v925, %v1229
    %v1376 = vsub.f32 %v930, %v1229
    %v1377 = vsub.f32 %v933, %v1229
    %v1378 = vsub.f32 %v938, %v1229
    %v1379 = vsub.f32 %v941, %v1229
    %v1380 = vsub.f32 %v946, %v1229
    %v1381 = vsub.f32 %v949, %v1229
    %v1382 = vsub.f32 %v954, %v1229
    %v1383 = vsub.f32 %v957, %v1229
    %v1384 = vsub.f32 %v962, %v1229
    %v1385 = vsub.f32 %v965, %v1229
    %v1386 = vsub.f32 %v970, %v1229
    %v1387 = vsub.f32 %v973, %v1229
    %v1388 = vsub.f32 %v978, %v1229
    %v1389 = vsub.f32 %v981, %v1229
    %v1390 = vsub.f32 %v986, %v1229
    %v1391 = vsub.f32 %v989, %v1229
    %v1392 = vsub.f32 %v994, %v1229
    %v1393 = vsub.f32 %v997, %v1229
    %v1394 = vsub.f32 %v1002, %v1229
    %v1395 = vsub.f32 %v1005, %v1229
    %v1396 = vsub.f32 %v1010, %v1229
    %v1397 = vsub.f32 %v1013, %v1229
    %v1398 = vsub.f32 %v1018, %v1229
    %v1399 = vsub.f32 %v1021, %v1229
    %v1400 = vsub.f32 %v1026, %v1229
    %v1401 = vsub.f32 %v1029, %v1229
    %v1402 = vsub.f32 %v1034, %v1229
    %v1403 = vsub.f32 %v1037, %v1229
    %v1404 = vsub.f32 %v1042, %v1229
    %v1405 = vsub.f32 %v1045, %v1229
    %v1406 = vsub.f32 %v1050, %v1229
    %v1407 = vsub.f32 %v1053, %v1229
    %v1408 = vsub.f32 %v1058, %v1229
    %v1409 = vsub.f32 %v1061, %v1229
    %v1410 = vsub.f32 %v1066, %v1229
    %v1411 = vsub.f32 %v1069, %v1229
    %v1412 = vsub.f32 %v1074, %v1229
    %v1413 = vsub.f32 %v1077, %v1229
    %v1414 = vsub.f32 %v1082, %v1229
    %v1415 = vsub.f32 %v1085, %v1229
    %v1416 = vsub.f32 %v1090, %v1229
    %v1417 = vsub.f32 %v1093, %v1229
    %v1418 = vsub.f32 %v1098, %v1229
    %v1419 = vsub.f32 %v1101, %v1229
    %v1420 = vsub.f32 %v1106, %v1229
    %v1421 = vsub.f32 %v1109, %v1229
    %v1422 = vsub.f32 %v1114, %v1229
    %v1423 = vsub.f32 %v1117, %v1229
    %v1424 = vsub.f32 %v1122, %v1229
    %v1425 = vsub.f32 %v1125, %v1229
    %v1426 = vsub.f32 %v1130, %v1229
    %v1427 = vsub.f32 %v1133, %v1229
    %v1428 = vsub.f32 %v1138, %v1229
    %v1429 = vsub.f32 %v1141, %v1229
    %v1430 = vsub.f32 %v1146, %v1229
    %v1431 = vsub.f32 %v1149, %v1229
    %v1432 = vsub.f32 %v1154, %v1229
    %v1433 = vsub.f32 %v1157, %v1229
    %v1434 = vlaneseq
    %v1435 = vshrl.u32 %v1434, 7
    %v1436 = vsub.s32 2, %v1435
    %v1437 = vrot.slane %v1369, %v1436
    %v1438 = vmul.f32 %v1370, %v1437
    %v1439 = vmul.f32 %v1371, %v1437
    %v1440 = vmul.f32 %v1372, %v1437
    %v1441 = vmul.f32 %v1373, %v1437
    %v1442 = vmul.f32 %v1374, %v1437
    %v1443 = vmul.f32 %v1375, %v1437
    %v1444 = vmul.f32 %v1376, %v1437
    %v1445 = vmul.f32 %v1377, %v1437
    %v1446 = vmul.f32 %v1378, %v1437
    %v1447 = vmul.f32 %v1379, %v1437
    %v1448 = vmul.f32 %v1380, %v1437
    %v1449 = vmul.f32 %v1381, %v1437
    %v1450 = vmul.f32 %v1382, %v1437
    %v1451 = vmul.f32 %v1383, %v1437
    %v1452 = vmul.f32 %v1384, %v1437
    %v1453 = vmul.f32 %v1385, %v1437
    %v1454 = vmul.f32 %v1386, %v1437
    %v1455 = vmul.f32 %v1387, %v1437
    %v1456 = vmul.f32 %v1388, %v1437
    %v1457 = vmul.f32 %v1389, %v1437
    %v1458 = vmul.f32 %v1390, %v1437
    %v1459 = vmul.f32 %v1391, %v1437
    %v1460 = vmul.f32 %v1392, %v1437
    %v1461 = vmul.f32 %v1393, %v1437
    %v1462 = vmul.f32 %v1394, %v1437
    %v1463 = vmul.f32 %v1395, %v1437
    %v1464 = vmul.f32 %v1396, %v1437
    %v1465 = vmul.f32 %v1397, %v1437
    %v1466 = vmul.f32 %v1398, %v1437
    %v1467 = vmul.f32 %v1399, %v1437
    %v1468 = vmul.f32 %v1400, %v1437
    %v1469 = vmul.f32 %v1401, %v1437
    %v1470 = vmul.f32 %v1402, %v1437
    %v1471 = vmul.f32 %v1403, %v1437
    %v1472 = vmul.f32 %v1404, %v1437
    %v1473 = vmul.f32 %v1405, %v1437
    %v1474 = vmul.f32 %v1406, %v1437
    %v1475 = vmul.f32 %v1407, %v1437
    %v1476 = vmul.f32 %v1408, %v1437
    %v1477 = vmul.f32 %v1409, %v1437
    %v1478 = vmul.f32 %v1410, %v1437
    %v1479 = vmul.f32 %v1411, %v1437
    %v1480 = vmul.f32 %v1412, %v1437
    %v1481 = vmul.f32 %v1413, %v1437
    %v1482 = vmul.f32 %v1414, %v1437
    %v1483 = vmul.f32 %v1415, %v1437
    %v1484 = vmul.f32 %v1416, %v1437
    %v1485 = vmul.f32 %v1417, %v1437
    %v1486 = vmul.f32 %v1418, %v1437
    %v1487 = vmul.f32 %v1419, %v1437
    %v1488 = vmul.f32 %v1420, %v1437
    %v1489 = vmul.f32 %v1421, %v1437
    %v1490 = vmul.f32 %v1422, %v1437
    %v1491 = vmul.f32 %v1423, %v1437
    %v1492 = vmul.f32 %v1424, %v1437
    %v1493 = vmul.f32 %v1425, %v1437
    %v1494 = vmul.f32 %v1426, %v1437
    %v1495 = vmul.f32 %v1427, %v1437
    %v1496 = vmul.f32 %v1428, %v1437
    %v1497 = vmul.f32 %v1429, %v1437
    %v1498 = vmul.f32 %v1430, %v1437
    %v1499 = vmul.f32 %v1431, %v1437
    %v1500 = vmul.f32 %v1432, %v1437
    %v1501 = vmul.f32 %v1433, %v1437
    %v1502 = vlaneseq
    %v1503 = vshrl.u32 %v1502, 7
    %v1504 = vsub.s32 3, %v1503
    %v1505 = vrot.slane %v282, %v1504
    %v1506 = vadd.f32 %v1438, %v1505
    %v1507 = vadd.f32 %v1439, %v1505
    %v1508 = vadd.f32 %v1440, %v1505
    %v1509 = vadd.f32 %v1441, %v1505
    %v1510 = vadd.f32 %v1442, %v1505
    %v1511 = vadd.f32 %v1443, %v1505
    %v1512 = vadd.f32 %v1444, %v1505
    %v1513 = vadd.f32 %v1445, %v1505
    %v1514 = vadd.f32 %v1446, %v1505
    %v1515 = vadd.f32 %v1447, %v1505
    %v1516 = vadd.f32 %v1448, %v1505
    %v1517 = vadd.f32 %v1449, %v1505
    %v1518 = vadd.f32 %v1450, %v1505
    %v1519 = vadd.f32 %v1451, %v1505
    %v1520 = vadd.f32 %v1452, %v1505
    %v1521 = vadd.f32 %v1453, %v1505
    %v1522 = vadd.f32 %v1454, %v1505
    %v1523 = vadd.f32 %v1455, %v1505
    %v1524 = vadd.f32 %v1456, %v1505
    %v1525 = vadd.f32 %v1457, %v1505
    %v1526 = vadd.f32 %v1458, %v1505
    %v1527 = vadd.f32 %v1459, %v1505
    %v1528 = vadd.f32 %v1460, %v1505
    %v1529 = vadd.f32 %v1461, %v1505
    %v1530 = vadd.f32 %v1462, %v1505
    %v1531 = vadd.f32 %v1463, %v1505
    %v1532 = vadd.f32 %v1464, %v1505
    %v1533 = vadd.f32 %v1465, %v1505
    %v1534 = vadd.f32 %v1466, %v1505
    %v1535 = vadd.f32 %v1467, %v1505
    %v1536 = vadd.f32 %v1468, %v1505
    %v1537 = vadd.f32 %v1469, %v1505
    %v1538 = vadd.f32 %v1470, %v1505
    %v1539 = vadd.f32 %v1471, %v1505
    %v1540 = vadd.f32 %v1472, %v1505
    %v1541 = vadd.f32 %v1473, %v1505
    %v1542 = vadd.f32 %v1474, %v1505
    %v1543 = vadd.f32 %v1475, %v1505
    %v1544 = vadd.f32 %v1476, %v1505
    %v1545 = vadd.f32 %v1477, %v1505
    %v1546 = vadd.f32 %v1478, %v1505
    %v1547 = vadd.f32 %v1479, %v1505
    %v1548 = vadd.f32 %v1480, %v1505
    %v1549 = vadd.f32 %v1481, %v1505
    %v1550 = vadd.f32 %v1482, %v1505
    %v1551 = vadd.f32 %v1483, %v1505
    %v1552 = vadd.f32 %v1484, %v1505
    %v1553 = vadd.f32 %v1485, %v1505
    %v1554 = vadd.f32 %v1486, %v1505
    %v1555 = vadd.f32 %v1487, %v1505
    %v1556 = vadd.f32 %v1488, %v1505
    %v1557 = vadd.f32 %v1489, %v1505
    %v1558 = vadd.f32 %v1490, %v1505
    %v1559 = vadd.f32 %v1491, %v1505
    %v1560 = vadd.f32 %v1492, %v1505
    %v1561 = vadd.f32 %v1493, %v1505
    %v1562 = vadd.f32 %v1494, %v1505
    %v1563 = vadd.f32 %v1495, %v1505
    %v1564 = vadd.f32 %v1496, %v1505
    %v1565 = vadd.f32 %v1497, %v1505
    %v1566 = vadd.f32 %v1498, %v1505
    %v1567 = vadd.f32 %v1499, %v1505
    %v1568 = vadd.f32 %v1500, %v1505
    %v1569 = vadd.f32 %v1501, %v1505
    %v1570 = vmax.f32 %v1506, 0.0
    %v1571 = vmax.f32 %v1507, 0.0
    %v1572 = vmax.f32 %v1508, 0.0
    %v1573 = vmax.f32 %v1509, 0.0
    %v1574 = vmax.f32 %v1510, 0.0
    %v1575 = vmax.f32 %v1511, 0.0
    %v1576 = vmax.f32 %v1512, 0.0
    %v1577 = vmax.f32 %v1513, 0.0
    %v1578 = vmax.f32 %v1514, 0.0
    %v1579 = vmax.f32 %v1515, 0.0
    %v1580 = vmax.f32 %v1516, 0.0
    %v1581 = vmax.f32 %v1517, 0.0
    %v1582 = vmax.f32 %v1518, 0.0
    %v1583 = vmax.f32 %v1519, 0.0
    %v1584 = vmax.f32 %v1520, 0.0
    %v1585 = vmax.f32 %v1521, 0.0
    %v1586 = vmax.f32 %v1522, 0.0
    %v1587 = vmax.f32 %v1523, 0.0
    %v1588 = vmax.f32 %v1524, 0.0
    %v1589 = vmax.f32 %v1525, 0.0
    %v1590 = vmax.f32 %v1526, 0.0
    %v1591 = vmax.f32 %v1527, 0.0
    %v1592 = vmax.f32 %v1528, 0.0
    %v1593 = vmax.f32 %v1529, 0.0
    %v1594 = vmax.f32 %v1530, 0.0
    %v1595 = vmax.f32 %v1531, 0.0
    %v1596 = vmax.f32 %v1532, 0.0
    %v1597 = vmax.f32 %v1533, 0.0
    %v1598 = vmax.f32 %v1534, 0.0
    %v1599 = vmax.f32 %v1535, 0.0
    %v1600 = vmax.f32 %v1536, 0.0
    %v1601 = vmax.f32 %v1537, 0.0
    %v1602 = vmax.f32 %v1538, 0.0
    %v1603 = vmax.f32 %v1539, 0.0
    %v1604 = vmax.f32 %v1540, 0.0
    %v1605 = vmax.f32 %v1541, 0.0
    %v1606 = vmax.f32 %v1542, 0.0
    %v1607 = vmax.f32 %v1543, 0.0
    %v1608 = vmax.f32 %v1544, 0.0
    %v1609 = vmax.f32 %v1545, 0.0
    %v1610 = vmax.f32 %v1546, 0.0
    %v1611 = vmax.f32 %v1547, 0.0
    %v1612 = vmax.f32 %v1548, 0.0
    %v1613 = vmax.f32 %v1549, 0.0
    %v1614 = vmax.f32 %v1550, 0.0
    %v1615 = vmax.f32 %v1551, 0.0
    %v1616 = vmax.f32 %v1552, 0.0
    %v1617 = vmax.f32 %v1553, 0.0
    %v1618 = vmax.f32 %v1554, 0.0
    %v1619 = vmax.f32 %v1555, 0.0
    %v1620 = vmax.f32 %v1556, 0.0
    %v1621 = vmax.f32 %v1557, 0.0
    %v1622 = vmax.f32 %v1558, 0.0
    %v1623 = vmax.f32 %v1559, 0.0
    %v1624 = vmax.f32 %v1560, 0.0
    %v1625 = vmax.f32 %v1561, 0.0
    %v1626 = vmax.f32 %v1562, 0.0
    %v1627 = vmax.f32 %v1563, 0.0
    %v1628 = vmax.f32 %v1564, 0.0
    %v1629 = vmax.f32 %v1565, 0.0
    %v1630 = vmax.f32 %v1566, 0.0
    %v1631 = vmax.f32 %v1567, 0.0
    %v1632 = vmax.f32 %v1568, 0.0
    %v1633 = vmax.f32 %v1569, 0.0
    %v1634 = vpack.c.bf16 %v1571, %v1570
    %v1635 = vpack.c.bf16 %v1573, %v1572
    %v1636 = vpack.c.bf16 %v1575, %v1574
    %v1637 = vpack.c.bf16 %v1577, %v1576
    %v1638 = vpack.c.bf16 %v1579, %v1578
    %v1639 = vpack.c.bf16 %v1581, %v1580
    %v1640 = vpack.c.bf16 %v1583, %v1582
    %v1641 = vpack.c.bf16 %v1585, %v1584
    %v1642 = vpack.c.bf16 %v1587, %v1586
    %v1643 = vpack.c.bf16 %v1589, %v1588
    %v1644 = vpack.c.bf16 %v1591, %v1590
    %v1645 = vpack.c.bf16 %v1593, %v1592
    %v1646 = vpack.c.bf16 %v1595, %v1594
    %v1647 = vpack.c.bf16 %v1597, %v1596
    %v1648 = vpack.c.bf16 %v1599, %v1598
    %v1649 = vpack.c.bf16 %v1601, %v1600
    %v1650 = vpack.c.bf16 %v1603, %v1602
    %v1651 = vpack.c.bf16 %v1605, %v1604
    %v1652 = vpack.c.bf16 %v1607, %v1606
    %v1653 = vpack.c.bf16 %v1609, %v1608
    %v1654 = vpack.c.bf16 %v1611, %v1610
    %v1655 = vpack.c.bf16 %v1613, %v1612
    %v1656 = vpack.c.bf16 %v1615, %v1614
    %v1657 = vpack.c.bf16 %v1617, %v1616
    %v1658 = vpack.c.bf16 %v1619, %v1618
    %v1659 = vpack.c.bf16 %v1621, %v1620
    %v1660 = vpack.c.bf16 %v1623, %v1622
    %v1661 = vpack.c.bf16 %v1625, %v1624
    %v1662 = vpack.c.bf16 %v1627, %v1626
    %v1663 = vpack.c.bf16 %v1629, %v1628
    %v1664 = vpack.c.bf16 %v1631, %v1630
    %v1665 = vpack.c.bf16 %v1633, %v1632
    %v1666 = vlaneseq
    %v1667 = vshrl.u32 %v1666, 7
    %v1668 = vsub.s32 4, %v1667
    %v1669 = vrot.slane %v282, %v1668
    %v1686 = vunpack.c.l.b16 %v300
    %v1687 = vunpack.c.l.b16 %v301
    %v1688 = vunpack.c.l.b16 %v302
    %v1689 = vunpack.c.l.b16 %v303
    %v1690 = vunpack.c.l.b16 %v304
    %v1691 = vunpack.c.l.b16 %v305
    %v1692 = vunpack.c.l.b16 %v306
    %v1693 = vunpack.c.l.b16 %v307
    %v1694 = vunpack.c.l.b16 %v308
    %v1695 = vunpack.c.l.b16 %v309
    %v1696 = vunpack.c.l.b16 %v310
    %v1697 = vunpack.c.l.b16 %v311
    %v1698 = vunpack.c.l.b16 %v312
    %v1699 = vunpack.c.l.b16 %v313
    %v1700 = vunpack.c.l.b16 %v314
    %v1701 = vunpack.c.l.b16 %v315
    %v1702 = vpack.c.b16 %v1687, %v1686
    %v1703 = vpack.c.b16 %v1689, %v1688
    %v1704 = vpack.c.b16 %v1691, %v1690
    %v1705 = vpack.c.b16 %v1693, %v1692
    %v1706 = vpack.c.b16 %v1695, %v1694
    %v1707 = vpack.c.b16 %v1697, %v1696
    %v1708 = vpack.c.b16 %v1699, %v1698
    %v1709 = vpack.c.b16 %v1701, %v1700
    %1718 = vmatprep.subr.bf16.mxu0 0
    %1719 = vmatpush1.bf16.msra.mxu0 %v1702
    %1720 = vmatprep.subr.bf16.mxu0 0
    %1721 = vmatpush1.bf16.msra.mxu0 %v1703
    %1722 = vmatprep.subr.bf16.mxu0 0
    %1723 = vmatpush1.bf16.msra.mxu0 %v1704
    %1724 = vmatprep.subr.bf16.mxu0 0
    %1725 = vmatpush1.bf16.msra.mxu0 %v1705
    %1726 = vmatprep.subr.bf16.mxu0 0
    %1727 = vmatpush1.bf16.msra.mxu0 %v1706
    %1728 = vmatprep.subr.bf16.mxu0 0
    %1729 = vmatpush1.bf16.msra.mxu0 %v1707
    %1730 = vmatprep.subr.bf16.mxu0 0
    %1731 = vmatpush1.bf16.msra.mxu0 %v1708
    %1732 = vmatprep.subr.bf16.mxu0 0
    %1733 = vmatpush1.bf16.msra.mxu0 %v1709
    %1734 = vmatprep.subr.bf16.mxu0 0
    %1735 = vmatpush1.bf16.msra.mxu0 0
    %1736 = vmatprep.subr.bf16.mxu0 0
    %1737 = vmatpush1.bf16.msra.mxu0 0
    %1738 = vmatprep.subr.bf16.mxu0 0
    %1739 = vmatpush1.bf16.msra.mxu0 0
    %1740 = vmatprep.subr.bf16.mxu0 0
    %1741 = vmatpush1.bf16.msra.mxu0 0
    %1742 = vmatprep.subr.bf16.mxu0 0
    %1743 = vmatpush1.bf16.msra.mxu0 0
    %1744 = vmatprep.subr.bf16.mxu0 0
    %1745 = vmatpush1.bf16.msra.mxu0 0
    %1746 = vmatprep.subr.bf16.mxu0 0
    %1747 = vmatpush1.bf16.msra.mxu0 0
    %1748 = vmatprep.subr.bf16.mxu0 0
    %1749 = vmatpush1.bf16.msra.mxu0 0
    %1750 = vmatprep.mubr.bf16.mxu0 0
    %1751 = vmatmul.mubr.bf16.gmra.mrb[0].mxu0 %v1634
    %v1752 = vpop.f32.mrb[0].mxu0
    %v1753 = vadd.f32 %v1669, %v1752
    %v1754 = vpop.f32.mrb[0].mxu0
    %v1755 = vpop.f32.mrb[0].mxu0
    %v1756 = vadd.f32 %v1669, %v1755
    %v1757 = vpop.f32.mrb[0].mxu0
    %1758 = vmatprep.mubr.bf16.mxu0 0
    %1759 = vmatmul.mubr.bf16.gmra.mrb[0].mxu0 %v1635
    %v1760 = vpop.f32.mrb[0].mxu0
    %v1761 = vadd.f32 %v1669, %v1760
    %v1762 = vpop.f32.mrb[0].mxu0
    %v1763 = vpop.f32.mrb[0].mxu0
    %v1764 = vadd.f32 %v1669, %v1763
    %v1765 = vpop.f32.mrb[0].mxu0
    %1766 = vmatprep.mubr.bf16.mxu0 0
    %1767 = vmatmul.mubr.bf16.gmra.mrb[0].mxu0 %v1636
    %v1768 = vpop.f32.mrb[0].mxu0
    %v1769 = vadd.f32 %v1669, %v1768
    %v1770 = vpop.f32.mrb[0].mxu0
    %v1771 = vpop.f32.mrb[0].mxu0
    %v1772 = vadd.f32 %v1669, %v1771
    %v1773 = vpop.f32.mrb[0].mxu0
    %1774 = vmatprep.mubr.bf16.mxu0 0
    %1775 = vmatmul.mubr.bf16.gmra.mrb[0].mxu0 %v1637
    %v1776 = vpop.f32.mrb[0].mxu0
    %v1777 = vadd.f32 %v1669, %v1776
    %v1778 = vpop.f32.mrb[0].mxu0
    %v1779 = vpop.f32.mrb[0].mxu0
    %v1780 = vadd.f32 %v1669, %v1779
    %v1781 = vpop.f32.mrb[0].mxu0
    %1782 = vmatprep.mubr.bf16.mxu0 0
    %1783 = vmatmul.mubr.bf16.gmra.mrb[0].mxu0 %v1638
    %v1784 = vpop.f32.mrb[0].mxu0
    %v1785 = vadd.f32 %v1669, %v1784
    %v1786 = vpop.f32.mrb[0].mxu0
    %v1787 = vpop.f32.mrb[0].mxu0
    %v1788 = vadd.f32 %v1669, %v1787
    %v1789 = vpop.f32.mrb[0].mxu0
    %1790 = vmatprep.mubr.bf16.mxu0 0
    %1791 = vmatmul.mubr.bf16.gmra.mrb[0].mxu0 %v1639
    %v1792 = vpop.f32.mrb[0].mxu0
    %v1793 = vadd.f32 %v1669, %v1792
    %v1794 = vpop.f32.mrb[0].mxu0
    %v1795 = vpop.f32.mrb[0].mxu0
    %v1796 = vadd.f32 %v1669, %v1795
    %v1797 = vpop.f32.mrb[0].mxu0
    %1798 = vmatprep.mubr.bf16.mxu0 0
    %1799 = vmatmul.mubr.bf16.gmra.mrb[0].mxu0 %v1640
    %v1800 = vpop.f32.mrb[0].mxu0
    %v1801 = vadd.f32 %v1669, %v1800
    %v1802 = vpop.f32.mrb[0].mxu0
    %v1803 = vpop.f32.mrb[0].mxu0
    %v1804 = vadd.f32 %v1669, %v1803
    %v1805 = vpop.f32.mrb[0].mxu0
    %1806 = vmatprep.mubr.bf16.mxu0 0
    %1807 = vmatmul.mubr.bf16.gmra.mrb[0].mxu0 %v1641
    %v1808 = vpop.f32.mrb[0].mxu0
    %v1809 = vadd.f32 %v1669, %v1808
    %v1810 = vpop.f32.mrb[0].mxu0
    %v1811 = vpop.f32.mrb[0].mxu0
    %v1812 = vadd.f32 %v1669, %v1811
    %v1813 = vpop.f32.mrb[0].mxu0
    %1814 = vmatprep.mubr.bf16.mxu0 0
    %1815 = vmatmul.mubr.bf16.gmra.mrb[0].mxu0 %v1642
    %v1816 = vpop.f32.mrb[0].mxu0
    %v1817 = vadd.f32 %v1669, %v1816
    %v1818 = vpop.f32.mrb[0].mxu0
    %v1819 = vpop.f32.mrb[0].mxu0
    %v1820 = vadd.f32 %v1669, %v1819
    %v1821 = vpop.f32.mrb[0].mxu0
    %1822 = vmatprep.mubr.bf16.mxu0 0
    %1823 = vmatmul.mubr.bf16.gmra.mrb[0].mxu0 %v1643
    %v1824 = vpop.f32.mrb[0].mxu0
    %v1825 = vadd.f32 %v1669, %v1824
    %v1826 = vpop.f32.mrb[0].mxu0
    %v1827 = vpop.f32.mrb[0].mxu0
    %v1828 = vadd.f32 %v1669, %v1827
    %v1829 = vpop.f32.mrb[0].mxu0
    %1830 = vmatprep.mubr.bf16.mxu0 0
    %1831 = vmatmul.mubr.bf16.gmra.mrb[0].mxu0 %v1644
    %v1832 = vpop.f32.mrb[0].mxu0
    %v1833 = vadd.f32 %v1669, %v1832
    %v1834 = vpop.f32.mrb[0].mxu0
    %v1835 = vpop.f32.mrb[0].mxu0
    %v1836 = vadd.f32 %v1669, %v1835
    %v1837 = vpop.f32.mrb[0].mxu0
    %1838 = vmatprep.mubr.bf16.mxu0 0
    %1839 = vmatmul.mubr.bf16.gmra.mrb[0].mxu0 %v1645
    %v1840 = vpop.f32.mrb[0].mxu0
    %v1841 = vadd.f32 %v1669, %v1840
    %v1842 = vpop.f32.mrb[0].mxu0
    %v1843 = vpop.f32.mrb[0].mxu0
    %v1844 = vadd.f32 %v1669, %v1843
    %v1845 = vpop.f32.mrb[0].mxu0
    %1846 = vmatprep.mubr.bf16.mxu0 0
    %1847 = vmatmul.mubr.bf16.gmra.mrb[0].mxu0 %v1646
    %v1848 = vpop.f32.mrb[0].mxu0
    %v1849 = vadd.f32 %v1669, %v1848
    %v1850 = vpop.f32.mrb[0].mxu0
    %v1851 = vpop.f32.mrb[0].mxu0
    %v1852 = vadd.f32 %v1669, %v1851
    %v1853 = vpop.f32.mrb[0].mxu0
    %1854 = vmatprep.mubr.bf16.mxu0 0
    %1855 = vmatmul.mubr.bf16.gmra.mrb[0].mxu0 %v1647
    %v1856 = vpop.f32.mrb[0].mxu0
    %v1857 = vadd.f32 %v1669, %v1856
    %v1858 = vpop.f32.mrb[0].mxu0
    %v1859 = vpop.f32.mrb[0].mxu0
    %v1860 = vadd.f32 %v1669, %v1859
    %v1861 = vpop.f32.mrb[0].mxu0
    %1862 = vmatprep.mubr.bf16.mxu0 0
    %1863 = vmatmul.mubr.bf16.gmra.mrb[0].mxu0 %v1648
    %v1864 = vpop.f32.mrb[0].mxu0
    %v1865 = vadd.f32 %v1669, %v1864
    %v1866 = vpop.f32.mrb[0].mxu0
    %v1867 = vpop.f32.mrb[0].mxu0
    %v1868 = vadd.f32 %v1669, %v1867
    %v1869 = vpop.f32.mrb[0].mxu0
    %1870 = vmatprep.mubr.bf16.mxu0 0
    %1871 = vmatmul.mubr.bf16.gmra.mrb[0].mxu0 %v1649
    %v1872 = vpop.f32.mrb[0].mxu0
    %v1873 = vadd.f32 %v1669, %v1872
    %v1874 = vpop.f32.mrb[0].mxu0
    %v1875 = vpop.f32.mrb[0].mxu0
    %v1876 = vadd.f32 %v1669, %v1875
    %v1877 = vpop.f32.mrb[0].mxu0
    %1878 = vmatprep.mubr.bf16.mxu0 0
    %1879 = vmatmul.mubr.bf16.gmra.mrb[0].mxu0 %v1650
    %v1880 = vpop.f32.mrb[0].mxu0
    %v1881 = vadd.f32 %v1669, %v1880
    %v1882 = vpop.f32.mrb[0].mxu0
    %v1883 = vpop.f32.mrb[0].mxu0
    %v1884 = vadd.f32 %v1669, %v1883
    %v1885 = vpop.f32.mrb[0].mxu0
    %1886 = vmatprep.mubr.bf16.mxu0 0
    %1887 = vmatmul.mubr.bf16.gmra.mrb[0].mxu0 %v1651
    %v1888 = vpop.f32.mrb[0].mxu0
    %v1889 = vadd.f32 %v1669, %v1888
    %v1890 = vpop.f32.mrb[0].mxu0
    %v1891 = vpop.f32.mrb[0].mxu0
    %v1892 = vadd.f32 %v1669, %v1891
    %v1893 = vpop.f32.mrb[0].mxu0
    %1894 = vmatprep.mubr.bf16.mxu0 0
    %1895 = vmatmul.mubr.bf16.gmra.mrb[0].mxu0 %v1652
    %v1896 = vpop.f32.mrb[0].mxu0
    %v1897 = vadd.f32 %v1669, %v1896
    %v1898 = vpop.f32.mrb[0].mxu0
    %v1899 = vpop.f32.mrb[0].mxu0
    %v1900 = vadd.f32 %v1669, %v1899
    %v1901 = vpop.f32.mrb[0].mxu0
    %1902 = vmatprep.mubr.bf16.mxu0 0
    %1903 = vmatmul.mubr.bf16.gmra.mrb[0].mxu0 %v1653
    %v1904 = vpop.f32.mrb[0].mxu0
    %v1905 = vadd.f32 %v1669, %v1904
    %v1906 = vpop.f32.mrb[0].mxu0
    %v1907 = vpop.f32.mrb[0].mxu0
    %v1908 = vadd.f32 %v1669, %v1907
    %v1909 = vpop.f32.mrb[0].mxu0
    %1910 = vmatprep.mubr.bf16.mxu0 0
    %1911 = vmatmul.mubr.bf16.gmra.mrb[0].mxu0 %v1654
    %v1912 = vpop.f32.mrb[0].mxu0
    %v1913 = vadd.f32 %v1669, %v1912
    %v1914 = vpop.f32.mrb[0].mxu0
    %v1915 = vpop.f32.mrb[0].mxu0
    %v1916 = vadd.f32 %v1669, %v1915
    %v1917 = vpop.f32.mrb[0].mxu0
    %1918 = vmatprep.mubr.bf16.mxu0 0
    %1919 = vmatmul.mubr.bf16.gmra.mrb[0].mxu0 %v1655
    %v1920 = vpop.f32.mrb[0].mxu0
    %v1921 = vadd.f32 %v1669, %v1920
    %v1922 = vpop.f32.mrb[0].mxu0
    %v1923 = vpop.f32.mrb[0].mxu0
    %v1924 = vadd.f32 %v1669, %v1923
    %v1925 = vpop.f32.mrb[0].mxu0
    %1926 = vmatprep.mubr.bf16.mxu0 0
    %1927 = vmatmul.mubr.bf16.gmra.mrb[0].mxu0 %v1656
    %v1928 = vpop.f32.mrb[0].mxu0
    %v1929 = vadd.f32 %v1669, %v1928
    %v1930 = vpop.f32.mrb[0].mxu0
    %v1931 = vpop.f32.mrb[0].mxu0
    %v1932 = vadd.f32 %v1669, %v1931
    %v1933 = vpop.f32.mrb[0].mxu0
    %1934 = vmatprep.mubr.bf16.mxu0 0
    %1935 = vmatmul.mubr.bf16.gmra.mrb[0].mxu0 %v1657
    %v1936 = vpop.f32.mrb[0].mxu0
    %v1937 = vadd.f32 %v1669, %v1936
    %v1938 = vpop.f32.mrb[0].mxu0
    %v1939 = vpop.f32.mrb[0].mxu0
    %v1940 = vadd.f32 %v1669, %v1939
    %v1941 = vpop.f32.mrb[0].mxu0
    %1942 = vmatprep.mubr.bf16.mxu0 0
    %1943 = vmatmul.mubr.bf16.gmra.mrb[0].mxu0 %v1658
    %v1944 = vpop.f32.mrb[0].mxu0
    %v1945 = vadd.f32 %v1669, %v1944
    %v1946 = vpop.f32.mrb[0].mxu0
    %v1947 = vpop.f32.mrb[0].mxu0
    %v1948 = vadd.f32 %v1669, %v1947
    %v1949 = vpop.f32.mrb[0].mxu0
    %1950 = vmatprep.mubr.bf16.mxu0 0
    %1951 = vmatmul.mubr.bf16.gmra.mrb[0].mxu0 %v1659
    %v1952 = vpop.f32.mrb[0].mxu0
    %v1953 = vadd.f32 %v1669, %v1952
    %v1954 = vpop.f32.mrb[0].mxu0
    %v1955 = vpop.f32.mrb[0].mxu0
    %v1956 = vadd.f32 %v1669, %v1955
    %v1957 = vpop.f32.mrb[0].mxu0
    %1958 = vmatprep.mubr.bf16.mxu0 0
    %1959 = vmatmul.mubr.bf16.gmra.mrb[0].mxu0 %v1660
    %v1960 = vpop.f32.mrb[0].mxu0
    %v1961 = vadd.f32 %v1669, %v1960
    %v1962 = vpop.f32.mrb[0].mxu0
    %v1963 = vpop.f32.mrb[0].mxu0
    %v1964 = vadd.f32 %v1669, %v1963
    %v1965 = vpop.f32.mrb[0].mxu0
    %1966 = vmatprep.mubr.bf16.mxu0 0
    %1967 = vmatmul.mubr.bf16.gmra.mrb[0].mxu0 %v1661
    %v1968 = vpop.f32.mrb[0].mxu0
    %v1969 = vadd.f32 %v1669, %v1968
    %v1970 = vpop.f32.mrb[0].mxu0
    %v1971 = vpop.f32.mrb[0].mxu0
    %v1972 = vadd.f32 %v1669, %v1971
    %v1973 = vpop.f32.mrb[0].mxu0
    %1974 = vmatprep.mubr.bf16.mxu0 0
    %1975 = vmatmul.mubr.bf16.gmra.mrb[0].mxu0 %v1662
    %v1976 = vpop.f32.mrb[0].mxu0
    %v1977 = vadd.f32 %v1669, %v1976
    %v1978 = vpop.f32.mrb[0].mxu0
    %v1979 = vpop.f32.mrb[0].mxu0
    %v1980 = vadd.f32 %v1669, %v1979
    %v1981 = vpop.f32.mrb[0].mxu0
    %1982 = vmatprep.mubr.bf16.mxu0 0
    %1983 = vmatmul.mubr.bf16.gmra.mrb[0].mxu0 %v1663
    %v1984 = vpop.f32.mrb[0].mxu0
    %v1985 = vadd.f32 %v1669, %v1984
    %v1986 = vpop.f32.mrb[0].mxu0
    %v1987 = vpop.f32.mrb[0].mxu0
    %v1988 = vadd.f32 %v1669, %v1987
    %v1989 = vpop.f32.mrb[0].mxu0
    %1990 = vmatprep.mubr.bf16.mxu0 0
    %1991 = vmatmul.mubr.bf16.gmra.mrb[0].mxu0 %v1664
    %v1992 = vpop.f32.mrb[0].mxu0
    %v1993 = vadd.f32 %v1669, %v1992
    %v1994 = vpop.f32.mrb[0].mxu0
    %v1995 = vpop.f32.mrb[0].mxu0
    %v1996 = vadd.f32 %v1669, %v1995
    %v1997 = vpop.f32.mrb[0].mxu0
    %1998 = vmatprep.mubr.bf16.mxu0 0
    %1999 = vmatmul.mubr.bf16.gmra.mrb[0].mxu0 %v1665
    %v2000 = vpop.f32.mrb[0].mxu0
    %v2001 = vadd.f32 %v1669, %v2000
    %v2002 = vpop.f32.mrb[0].mxu0
    %v2003 = vpop.f32.mrb[0].mxu0
    %v2004 = vadd.f32 %v1669, %v2003
    %v2005 = vpop.f32.mrb[0].mxu0
    %2006 = vdwg.mxu0
    %v2007 = vpack.c.bf16 %v219, %v218
    %v2008 = vpack.c.bf16 %v221, %v220
    %v2009 = vpack.c.bf16 %v223, %v222
    %v2010 = vpack.c.bf16 %v225, %v224
    %v2011 = vpack.c.bf16 %v227, %v226
    %v2012 = vpack.c.bf16 %v229, %v228
    %v2013 = vpack.c.bf16 %v231, %v230
    %v2014 = vpack.c.bf16 %v233, %v232
    %v2015 = vpack.c.bf16 %v235, %v234
    %v2016 = vpack.c.bf16 %v237, %v236
    %v2017 = vpack.c.bf16 %v239, %v238
    %v2018 = vpack.c.bf16 %v241, %v240
    %v2019 = vpack.c.bf16 %v243, %v242
    %v2020 = vpack.c.bf16 %v245, %v244
    %v2021 = vpack.c.bf16 %v247, %v246
    %v2022 = vpack.c.bf16 %v249, %v248
    %v2023 = vpack.c.bf16 %v251, %v250
    %v2024 = vpack.c.bf16 %v253, %v252
    %v2025 = vpack.c.bf16 %v255, %v254
    %v2026 = vpack.c.bf16 %v257, %v256
    %v2027 = vpack.c.bf16 %v259, %v258
    %v2028 = vpack.c.bf16 %v261, %v260
    %v2029 = vpack.c.bf16 %v263, %v262
    %v2030 = vpack.c.bf16 %v265, %v264
    %v2031 = vpack.c.bf16 %v267, %v266
    %v2032 = vpack.c.bf16 %v269, %v268
    %v2033 = vpack.c.bf16 %v271, %v270
    %v2034 = vpack.c.bf16 %v273, %v272
    %v2035 = vpack.c.bf16 %v275, %v274
    %v2036 = vpack.c.bf16 %v277, %v276
    %v2037 = vpack.c.bf16 %v279, %v278
    %v2038 = vpack.c.bf16 %v281, %v280
    %s2039 = scalar_lea.vmem %s2, 128
    %v2040 = vld [vmem:[%s2039] sm:$0xf]
    %v2041 = vld [vmem:[%s2039 + $0x4] sm:$0xf]
    %v2042 = vld [vmem:[%s2039 + $0x8] sm:$0xf]
    %v2043 = vld [vmem:[%s2039 + $0xc] sm:$0xf]
    %v2044 = vld [vmem:[%s2039 + $0x10] sm:$0xf]
    %v2045 = vld [vmem:[%s2039 + $0x14] sm:$0xf]
    %v2046 = vld [vmem:[%s2039 + $0x18] sm:$0xf]
    %v2047 = vld [vmem:[%s2039 + $0x1c] sm:$0xf]
    %v2048 = vld [vmem:[%s2039 + $0x20] sm:$0xf]
    %v2049 = vld [vmem:[%s2039 + $0x24] sm:$0xf]
    %v2050 = vld [vmem:[%s2039 + $0x28] sm:$0xf]
    %v2051 = vld [vmem:[%s2039 + $0x2c] sm:$0xf]
    %v2052 = vld [vmem:[%s2039 + $0x30] sm:$0xf]
    %v2053 = vld [vmem:[%s2039 + $0x34] sm:$0xf]
    %v2054 = vld [vmem:[%s2039 + $0x38] sm:$0xf]
    %v2055 = vld [vmem:[%s2039 + $0x3c] sm:$0xf]
    %v2072 = vunpack.c.l.b16 %v2040
    %v2073 = vunpack.c.l.b16 %v2041
    %v2074 = vunpack.c.l.b16 %v2042
    %v2075 = vunpack.c.l.b16 %v2043
    %v2076 = vunpack.c.l.b16 %v2044
    %v2077 = vunpack.c.l.b16 %v2045
    %v2078 = vunpack.c.l.b16 %v2046
    %v2079 = vunpack.c.l.b16 %v2047
    %v2080 = vunpack.c.l.b16 %v2048
    %v2081 = vunpack.c.l.b16 %v2049
    %v2082 = vunpack.c.l.b16 %v2050
    %v2083 = vunpack.c.l.b16 %v2051
    %v2084 = vunpack.c.l.b16 %v2052
    %v2085 = vunpack.c.l.b16 %v2053
    %v2086 = vunpack.c.l.b16 %v2054
    %v2087 = vunpack.c.l.b16 %v2055
    %v2088 = vpack.c.b16 %v2073, %v2072
    %v2089 = vpack.c.b16 %v2075, %v2074
    %v2090 = vpack.c.b16 %v2077, %v2076
    %v2091 = vpack.c.b16 %v2079, %v2078
    %v2092 = vpack.c.b16 %v2081, %v2080
    %v2093 = vpack.c.b16 %v2083, %v2082
    %v2094 = vpack.c.b16 %v2085, %v2084
    %v2095 = vpack.c.b16 %v2087, %v2086
    %2104 = vmatprep.subr.bf16.mxu0 0
    %2105 = vmatpush1.bf16.msra.mxu0 %v2088
    %2106 = vmatprep.subr.bf16.mxu0 0
    %2107 = vmatpush1.bf16.msra.mxu0 %v2089
    %2108 = vmatprep.subr.bf16.mxu0 0
    %2109 = vmatpush1.bf16.msra.mxu0 %v2090
    %2110 = vmatprep.subr.bf16.mxu0 0
    %2111 = vmatpush1.bf16.msra.mxu0 %v2091
    %2112 = vmatprep.subr.bf16.mxu0 0
    %2113 = vmatpush1.bf16.msra.mxu0 %v2092
    %2114 = vmatprep.subr.bf16.mxu0 0
    %2115 = vmatpush1.bf16.msra.mxu0 %v2093
    %2116 = vmatprep.subr.bf16.mxu0 0
    %2117 = vmatpush1.bf16.msra.mxu0 %v2094
    %2118 = vmatprep.subr.bf16.mxu0 0
    %2119 = vmatpush1.bf16.msra.mxu0 %v2095
    %2120 = vmatprep.subr.bf16.mxu0 0
    %2121 = vmatpush1.bf16.msra.mxu0 0
    %2122 = vmatprep.subr.bf16.mxu0 0
    %2123 = vmatpush1.bf16.msra.mxu0 0
    %2124 = vmatprep.subr.bf16.mxu0 0
    %2125 = vmatpush1.bf16.msra.mxu0 0
    %2126 = vmatprep.subr.bf16.mxu0 0
    %2127 = vmatpush1.bf16.msra.mxu0 0
    %2128 = vmatprep.subr.bf16.mxu0 0
    %2129 = vmatpush1.bf16.msra.mxu0 0
    %2130 = vmatprep.subr.bf16.mxu0 0
    %2131 = vmatpush1.bf16.msra.mxu0 0
    %2132 = vmatprep.subr.bf16.mxu0 0
    %2133 = vmatpush1.bf16.msra.mxu0 0
    %2134 = vmatprep.subr.bf16.mxu0 0
    %2135 = vmatpush1.bf16.msra.mxu0 0
    %2136 = vmatprep.mubr.bf16.mxu0 0
    %2137 = vmatmul.mubr.bf16.gmra.mrb[0].mxu0 %v2007
    %v2138 = vpop.f32.mrb[0].mxu0
    %v2139 = vadd.f32 0.0, %v2138
    %v2140 = vpop.f32.mrb[0].mxu0
    %v2141 = vpop.f32.mrb[0].mxu0
    %v2142 = vadd.f32 0.0, %v2141
    %v2143 = vpop.f32.mrb[0].mxu0
    %2144 = vmatprep.mubr.bf16.mxu0 0
    %2145 = vmatmul.mubr.bf16.gmra.mrb[0].mxu0 %v2008
    %v2146 = vpop.f32.mrb[0].mxu0
    %v2147 = vadd.f32 0.0, %v2146
    %v2148 = vpop.f32.mrb[0].mxu0
    %v2149 = vpop.f32.mrb[0].mxu0
    %v2150 = vadd.f32 0.0, %v2149
    %v2151 = vpop.f32.mrb[0].mxu0
    %2152 = vmatprep.mubr.bf16.mxu0 0
    %2153 = vmatmul.mubr.bf16.gmra.mrb[0].mxu0 %v2009
    %v2154 = vpop.f32.mrb[0].mxu0
    %v2155 = vadd.f32 0.0, %v2154
    %v2156 = vpop.f32.mrb[0].mxu0
    %v2157 = vpop.f32.mrb[0].mxu0
    %v2158 = vadd.f32 0.0, %v2157
    %v2159 = vpop.f32.mrb[0].mxu0
    %2160 = vmatprep.mubr.bf16.mxu0 0
    %2161 = vmatmul.mubr.bf16.gmra.mrb[0].mxu0 %v2010
    %v2162 = vpop.f32.mrb[0].mxu0
    %v2163 = vadd.f32 0.0, %v2162
    %v2164 = vpop.f32.mrb[0].mxu0
    %v2165 = vpop.f32.mrb[0].mxu0
    %v2166 = vadd.f32 0.0, %v2165
    %v2167 = vpop.f32.mrb[0].mxu0
    %2168 = vmatprep.mubr.bf16.mxu0 0
    %2169 = vmatmul.mubr.bf16.gmra.mrb[0].mxu0 %v2011
    %v2170 = vpop.f32.mrb[0].mxu0
    %v2171 = vadd.f32 0.0, %v2170
    %v2172 = vpop.f32.mrb[0].mxu0
    %v2173 = vpop.f32.mrb[0].mxu0
    %v2174 = vadd.f32 0.0, %v2173
    %v2175 = vpop.f32.mrb[0].mxu0
    %2176 = vmatprep.mubr.bf16.mxu0 0
    %2177 = vmatmul.mubr.bf16.gmra.mrb[0].mxu0 %v2012
    %v2178 = vpop.f32.mrb[0].mxu0
    %v2179 = vadd.f32 0.0, %v2178
    %v2180 = vpop.f32.mrb[0].mxu0
    %v2181 = vpop.f32.mrb[0].mxu0
    %v2182 = vadd.f32 0.0, %v2181
    %v2183 = vpop.f32.mrb[0].mxu0
    %2184 = vmatprep.mubr.bf16.mxu0 0
    %2185 = vmatmul.mubr.bf16.gmra.mrb[0].mxu0 %v2013
    %v2186 = vpop.f32.mrb[0].mxu0
    %v2187 = vadd.f32 0.0, %v2186
    %v2188 = vpop.f32.mrb[0].mxu0
    %v2189 = vpop.f32.mrb[0].mxu0
    %v2190 = vadd.f32 0.0, %v2189
    %v2191 = vpop.f32.mrb[0].mxu0
    %2192 = vmatprep.mubr.bf16.mxu0 0
    %2193 = vmatmul.mubr.bf16.gmra.mrb[0].mxu0 %v2014
    %v2194 = vpop.f32.mrb[0].mxu0
    %v2195 = vadd.f32 0.0, %v2194
    %v2196 = vpop.f32.mrb[0].mxu0
    %v2197 = vpop.f32.mrb[0].mxu0
    %v2198 = vadd.f32 0.0, %v2197
    %v2199 = vpop.f32.mrb[0].mxu0
    %2200 = vmatprep.mubr.bf16.mxu0 0
    %2201 = vmatmul.mubr.bf16.gmra.mrb[0].mxu0 %v2015
    %v2202 = vpop.f32.mrb[0].mxu0
    %v2203 = vadd.f32 0.0, %v2202
    %v2204 = vpop.f32.mrb[0].mxu0
    %v2205 = vpop.f32.mrb[0].mxu0
    %v2206 = vadd.f32 0.0, %v2205
    %v2207 = vpop.f32.mrb[0].mxu0
    %2208 = vmatprep.mubr.bf16.mxu0 0
    %2209 = vmatmul.mubr.bf16.gmra.mrb[0].mxu0 %v2016
    %v2210 = vpop.f32.mrb[0].mxu0
    %v2211 = vadd.f32 0.0, %v2210
    %v2212 = vpop.f32.mrb[0].mxu0
    %v2213 = vpop.f32.mrb[0].mxu0
    %v2214 = vadd.f32 0.0, %v2213
    %v2215 = vpop.f32.mrb[0].mxu0
    %2216 = vmatprep.mubr.bf16.mxu0 0
    %2217 = vmatmul.mubr.bf16.gmra.mrb[0].mxu0 %v2017
    %v2218 = vpop.f32.mrb[0].mxu0
    %v2219 = vadd.f32 0.0, %v2218
    %v2220 = vpop.f32.mrb[0].mxu0
    %v2221 = vpop.f32.mrb[0].mxu0
    %v2222 = vadd.f32 0.0, %v2221
    %v2223 = vpop.f32.mrb[0].mxu0
    %2224 = vmatprep.mubr.bf16.mxu0 0
    %2225 = vmatmul.mubr.bf16.gmra.mrb[0].mxu0 %v2018
    %v2226 = vpop.f32.mrb[0].mxu0
    %v2227 = vadd.f32 0.0, %v2226
    %v2228 = vpop.f32.mrb[0].mxu0
    %v2229 = vpop.f32.mrb[0].mxu0
    %v2230 = vadd.f32 0.0, %v2229
    %v2231 = vpop.f32.mrb[0].mxu0
    %2232 = vmatprep.mubr.bf16.mxu0 0
    %2233 = vmatmul.mubr.bf16.gmra.mrb[0].mxu0 %v2019
    %v2234 = vpop.f32.mrb[0].mxu0
    %v2235 = vadd.f32 0.0, %v2234
    %v2236 = vpop.f32.mrb[0].mxu0
    %v2237 = vpop.f32.mrb[0].mxu0
    %v2238 = vadd.f32 0.0, %v2237
    %v2239 = vpop.f32.mrb[0].mxu0
    %2240 = vmatprep.mubr.bf16.mxu0 0
    %2241 = vmatmul.mubr.bf16.gmra.mrb[0].mxu0 %v2020
    %v2242 = vpop.f32.mrb[0].mxu0
    %v2243 = vadd.f32 0.0, %v2242
    %v2244 = vpop.f32.mrb[0].mxu0
    %v2245 = vpop.f32.mrb[0].mxu0
    %v2246 = vadd.f32 0.0, %v2245
    %v2247 = vpop.f32.mrb[0].mxu0
    %2248 = vmatprep.mubr.bf16.mxu0 0
    %2249 = vmatmul.mubr.bf16.gmra.mrb[0].mxu0 %v2021
    %v2250 = vpop.f32.mrb[0].mxu0
    %v2251 = vadd.f32 0.0, %v2250
    %v2252 = vpop.f32.mrb[0].mxu0
    %v2253 = vpop.f32.mrb[0].mxu0
    %v2254 = vadd.f32 0.0, %v2253
    %v2255 = vpop.f32.mrb[0].mxu0
    %2256 = vmatprep.mubr.bf16.mxu0 0
    %2257 = vmatmul.mubr.bf16.gmra.mrb[0].mxu0 %v2022
    %v2258 = vpop.f32.mrb[0].mxu0
    %v2259 = vadd.f32 0.0, %v2258
    %v2260 = vpop.f32.mrb[0].mxu0
    %v2261 = vpop.f32.mrb[0].mxu0
    %v2262 = vadd.f32 0.0, %v2261
    %v2263 = vpop.f32.mrb[0].mxu0
    %2264 = vmatprep.mubr.bf16.mxu0 0
    %2265 = vmatmul.mubr.bf16.gmra.mrb[0].mxu0 %v2023
    %v2266 = vpop.f32.mrb[0].mxu0
    %v2267 = vadd.f32 0.0, %v2266
    %v2268 = vpop.f32.mrb[0].mxu0
    %v2269 = vpop.f32.mrb[0].mxu0
    %v2270 = vadd.f32 0.0, %v2269
    %v2271 = vpop.f32.mrb[0].mxu0
    %2272 = vmatprep.mubr.bf16.mxu0 0
    %2273 = vmatmul.mubr.bf16.gmra.mrb[0].mxu0 %v2024
    %v2274 = vpop.f32.mrb[0].mxu0
    %v2275 = vadd.f32 0.0, %v2274
    %v2276 = vpop.f32.mrb[0].mxu0
    %v2277 = vpop.f32.mrb[0].mxu0
    %v2278 = vadd.f32 0.0, %v2277
    %v2279 = vpop.f32.mrb[0].mxu0
    %2280 = vmatprep.mubr.bf16.mxu0 0
    %2281 = vmatmul.mubr.bf16.gmra.mrb[0].mxu0 %v2025
    %v2282 = vpop.f32.mrb[0].mxu0
    %v2283 = vadd.f32 0.0, %v2282
    %v2284 = vpop.f32.mrb[0].mxu0
    %v2285 = vpop.f32.mrb[0].mxu0
    %v2286 = vadd.f32 0.0, %v2285
    %v2287 = vpop.f32.mrb[0].mxu0
    %2288 = vmatprep.mubr.bf16.mxu0 0
    %2289 = vmatmul.mubr.bf16.gmra.mrb[0].mxu0 %v2026
    %v2290 = vpop.f32.mrb[0].mxu0
    %v2291 = vadd.f32 0.0, %v2290
    %v2292 = vpop.f32.mrb[0].mxu0
    %v2293 = vpop.f32.mrb[0].mxu0
    %v2294 = vadd.f32 0.0, %v2293
    %v2295 = vpop.f32.mrb[0].mxu0
    %2296 = vmatprep.mubr.bf16.mxu0 0
    %2297 = vmatmul.mubr.bf16.gmra.mrb[0].mxu0 %v2027
    %v2298 = vpop.f32.mrb[0].mxu0
    %v2299 = vadd.f32 0.0, %v2298
    %v2300 = vpop.f32.mrb[0].mxu0
    %v2301 = vpop.f32.mrb[0].mxu0
    %v2302 = vadd.f32 0.0, %v2301
    %v2303 = vpop.f32.mrb[0].mxu0
    %2304 = vmatprep.mubr.bf16.mxu0 0
    %2305 = vmatmul.mubr.bf16.gmra.mrb[0].mxu0 %v2028
    %v2306 = vpop.f32.mrb[0].mxu0
    %v2307 = vadd.f32 0.0, %v2306
    %v2308 = vpop.f32.mrb[0].mxu0
    %v2309 = vpop.f32.mrb[0].mxu0
    %v2310 = vadd.f32 0.0, %v2309
    %v2311 = vpop.f32.mrb[0].mxu0
    %2312 = vmatprep.mubr.bf16.mxu0 0
    %2313 = vmatmul.mubr.bf16.gmra.mrb[0].mxu0 %v2029
    %v2314 = vpop.f32.mrb[0].mxu0
    %v2315 = vadd.f32 0.0, %v2314
    %v2316 = vpop.f32.mrb[0].mxu0
    %v2317 = vpop.f32.mrb[0].mxu0
    %v2318 = vadd.f32 0.0, %v2317
    %v2319 = vpop.f32.mrb[0].mxu0
    %2320 = vmatprep.mubr.bf16.mxu0 0
    %2321 = vmatmul.mubr.bf16.gmra.mrb[0].mxu0 %v2030
    %v2322 = vpop.f32.mrb[0].mxu0
    %v2323 = vadd.f32 0.0, %v2322
    %v2324 = vpop.f32.mrb[0].mxu0
    %v2325 = vpop.f32.mrb[0].mxu0
    %v2326 = vadd.f32 0.0, %v2325
    %v2327 = vpop.f32.mrb[0].mxu0
    %2328 = vmatprep.mubr.bf16.mxu0 0
    %2329 = vmatmul.mubr.bf16.gmra.mrb[0].mxu0 %v2031
    %v2330 = vpop.f32.mrb[0].mxu0
    %v2331 = vadd.f32 0.0, %v2330
    %v2332 = vpop.f32.mrb[0].mxu0
    %v2333 = vpop.f32.mrb[0].mxu0
    %v2334 = vadd.f32 0.0, %v2333
    %v2335 = vpop.f32.mrb[0].mxu0
    %2336 = vmatprep.mubr.bf16.mxu0 0
    %2337 = vmatmul.mubr.bf16.gmra.mrb[0].mxu0 %v2032
    %v2338 = vpop.f32.mrb[0].mxu0
    %v2339 = vadd.f32 0.0, %v2338
    %v2340 = vpop.f32.mrb[0].mxu0
    %v2341 = vpop.f32.mrb[0].mxu0
    %v2342 = vadd.f32 0.0, %v2341
    %v2343 = vpop.f32.mrb[0].mxu0
    %2344 = vmatprep.mubr.bf16.mxu0 0
    %2345 = vmatmul.mubr.bf16.gmra.mrb[0].mxu0 %v2033
    %v2346 = vpop.f32.mrb[0].mxu0
    %v2347 = vadd.f32 0.0, %v2346
    %v2348 = vpop.f32.mrb[0].mxu0
    %v2349 = vpop.f32.mrb[0].mxu0
    %v2350 = vadd.f32 0.0, %v2349
    %v2351 = vpop.f32.mrb[0].mxu0
    %2352 = vmatprep.mubr.bf16.mxu0 0
    %2353 = vmatmul.mubr.bf16.gmra.mrb[0].mxu0 %v2034
    %v2354 = vpop.f32.mrb[0].mxu0
    %v2355 = vadd.f32 0.0, %v2354
    %v2356 = vpop.f32.mrb[0].mxu0
    %v2357 = vpop.f32.mrb[0].mxu0
    %v2358 = vadd.f32 0.0, %v2357
    %v2359 = vpop.f32.mrb[0].mxu0
    %2360 = vmatprep.mubr.bf16.mxu0 0
    %2361 = vmatmul.mubr.bf16.gmra.mrb[0].mxu0 %v2035
    %v2362 = vpop.f32.mrb[0].mxu0
    %v2363 = vadd.f32 0.0, %v2362
    %v2364 = vpop.f32.mrb[0].mxu0
    %v2365 = vpop.f32.mrb[0].mxu0
    %v2366 = vadd.f32 0.0, %v2365
    %v2367 = vpop.f32.mrb[0].mxu0
    %2368 = vmatprep.mubr.bf16.mxu0 0
    %2369 = vmatmul.mubr.bf16.gmra.mrb[0].mxu0 %v2036
    %v2370 = vpop.f32.mrb[0].mxu0
    %v2371 = vadd.f32 0.0, %v2370
    %v2372 = vpop.f32.mrb[0].mxu0
    %v2373 = vpop.f32.mrb[0].mxu0
    %v2374 = vadd.f32 0.0, %v2373
    %v2375 = vpop.f32.mrb[0].mxu0
    %2376 = vmatprep.mubr.bf16.mxu0 0
    %2377 = vmatmul.mubr.bf16.gmra.mrb[0].mxu0 %v2037
    %v2378 = vpop.f32.mrb[0].mxu0
    %v2379 = vadd.f32 0.0, %v2378
    %v2380 = vpop.f32.mrb[0].mxu0
    %v2381 = vpop.f32.mrb[0].mxu0
    %v2382 = vadd.f32 0.0, %v2381
    %v2383 = vpop.f32.mrb[0].mxu0
    %2384 = vmatprep.mubr.bf16.mxu0 0
    %2385 = vmatmul.mubr.bf16.gmra.mrb[0].mxu0 %v2038
    %v2386 = vpop.f32.mrb[0].mxu0
    %v2387 = vadd.f32 0.0, %v2386
    %v2388 = vpop.f32.mrb[0].mxu0
    %v2389 = vpop.f32.mrb[0].mxu0
    %v2390 = vadd.f32 0.0, %v2389
    %v2391 = vpop.f32.mrb[0].mxu0
    %2392 = vdwg.mxu0
    %v2393 = vadd.f32 %v2139, %v2142
    %v2394 = vadd.f32 %v2393, %v2147
    %v2395 = vadd.f32 %v2394, %v2150
    %v2396 = vadd.f32 %v2395, %v2155
    %v2397 = vadd.f32 %v2396, %v2158
    %v2398 = vadd.f32 %v2397, %v2163
    %v2399 = vadd.f32 %v2398, %v2166
    %v2400 = vadd.f32 %v2399, %v2171
    %v2401 = vadd.f32 %v2400, %v2174
    %v2402 = vadd.f32 %v2401, %v2179
    %v2403 = vadd.f32 %v2402, %v2182
    %v2404 = vadd.f32 %v2403, %v2187
    %v2405 = vadd.f32 %v2404, %v2190
    %v2406 = vadd.f32 %v2405, %v2195
    %v2407 = vadd.f32 %v2406, %v2198
    %v2408 = vadd.f32 %v2407, %v2203
    %v2409 = vadd.f32 %v2408, %v2206
    %v2410 = vadd.f32 %v2409, %v2211
    %v2411 = vadd.f32 %v2410, %v2214
    %v2412 = vadd.f32 %v2411, %v2219
    %v2413 = vadd.f32 %v2412, %v2222
    %v2414 = vadd.f32 %v2413, %v2227
    %v2415 = vadd.f32 %v2414, %v2230
    %v2416 = vadd.f32 %v2415, %v2235
    %v2417 = vadd.f32 %v2416, %v2238
    %v2418 = vadd.f32 %v2417, %v2243
    %v2419 = vadd.f32 %v2418, %v2246
    %v2420 = vadd.f32 %v2419, %v2251
    %v2421 = vadd.f32 %v2420, %v2254
    %v2422 = vadd.f32 %v2421, %v2259
    %v2423 = vadd.f32 %v2422, %v2262
    %v2424 = vadd.f32 %v2423, %v2267
    %v2425 = vadd.f32 %v2424, %v2270
    %v2426 = vadd.f32 %v2425, %v2275
    %v2427 = vadd.f32 %v2426, %v2278
    %v2428 = vadd.f32 %v2427, %v2283
    %v2429 = vadd.f32 %v2428, %v2286
    %v2430 = vadd.f32 %v2429, %v2291
    %v2431 = vadd.f32 %v2430, %v2294
    %v2432 = vadd.f32 %v2431, %v2299
    %v2433 = vadd.f32 %v2432, %v2302
    %v2434 = vadd.f32 %v2433, %v2307
    %v2435 = vadd.f32 %v2434, %v2310
    %v2436 = vadd.f32 %v2435, %v2315
    %v2437 = vadd.f32 %v2436, %v2318
    %v2438 = vadd.f32 %v2437, %v2323
    %v2439 = vadd.f32 %v2438, %v2326
    %v2440 = vadd.f32 %v2439, %v2331
    %v2441 = vadd.f32 %v2440, %v2334
    %v2442 = vadd.f32 %v2441, %v2339
    %v2443 = vadd.f32 %v2442, %v2342
    %v2444 = vadd.f32 %v2443, %v2347
    %v2445 = vadd.f32 %v2444, %v2350
    %v2446 = vadd.f32 %v2445, %v2355
    %v2447 = vadd.f32 %v2446, %v2358
    %v2448 = vadd.f32 %v2447, %v2363
    %v2449 = vadd.f32 %v2448, %v2366
    %v2450 = vadd.f32 %v2449, %v2371
    %v2451 = vadd.f32 %v2450, %v2374
    %v2452 = vadd.f32 %v2451, %v2379
    %v2453 = vadd.f32 %v2452, %v2382
    %v2454 = vadd.f32 %v2453, %v2387
    %v2455 = vadd.f32 %v2454, %v2390
    %v2456 = vrot.slane %v2455, 4
    %v2457 = vadd.f32 %v2455, %v2456
    %v2458 = vrot.slane %v2457, 2
    %v2459 = vadd.f32 %v2457, %v2458
    %v2460 = vrot.slane %v2459, 1
    %v2461 = vadd.f32 %v2459, %v2460
    %v2462 = vmul.f32 %v2461, %v385
    %v2463 = vmul.f32 %v2139, %v2139
    %v2464 = vmul.f32 %v2142, %v2142
    %v2465 = vmul.f32 %v2147, %v2147
    %v2466 = vmul.f32 %v2150, %v2150
    %v2467 = vmul.f32 %v2155, %v2155
    %v2468 = vmul.f32 %v2158, %v2158
    %v2469 = vmul.f32 %v2163, %v2163
    %v2470 = vmul.f32 %v2166, %v2166
    %v2471 = vmul.f32 %v2171, %v2171
    %v2472 = vmul.f32 %v2174, %v2174
    %v2473 = vmul.f32 %v2179, %v2179
    %v2474 = vmul.f32 %v2182, %v2182
    %v2475 = vmul.f32 %v2187, %v2187
    %v2476 = vmul.f32 %v2190, %v2190
    %v2477 = vmul.f32 %v2195, %v2195
    %v2478 = vmul.f32 %v2198, %v2198
    %v2479 = vmul.f32 %v2203, %v2203
    %v2480 = vmul.f32 %v2206, %v2206
    %v2481 = vmul.f32 %v2211, %v2211
    %v2482 = vmul.f32 %v2214, %v2214
    %v2483 = vmul.f32 %v2219, %v2219
    %v2484 = vmul.f32 %v2222, %v2222
    %v2485 = vmul.f32 %v2227, %v2227
    %v2486 = vmul.f32 %v2230, %v2230
    %v2487 = vmul.f32 %v2235, %v2235
    %v2488 = vmul.f32 %v2238, %v2238
    %v2489 = vmul.f32 %v2243, %v2243
    %v2490 = vmul.f32 %v2246, %v2246
    %v2491 = vmul.f32 %v2251, %v2251
    %v2492 = vmul.f32 %v2254, %v2254
    %v2493 = vmul.f32 %v2259, %v2259
    %v2494 = vmul.f32 %v2262, %v2262
    %v2495 = vmul.f32 %v2267, %v2267
    %v2496 = vmul.f32 %v2270, %v2270
    %v2497 = vmul.f32 %v2275, %v2275
    %v2498 = vmul.f32 %v2278, %v2278
    %v2499 = vmul.f32 %v2283, %v2283
    %v2500 = vmul.f32 %v2286, %v2286
    %v2501 = vmul.f32 %v2291, %v2291
    %v2502 = vmul.f32 %v2294, %v2294
    %v2503 = vmul.f32 %v2299, %v2299
    %v2504 = vmul.f32 %v2302, %v2302
    %v2505 = vmul.f32 %v2307, %v2307
    %v2506 = vmul.f32 %v2310, %v2310
    %v2507 = vmul.f32 %v2315, %v2315
    %v2508 = vmul.f32 %v2318, %v2318
    %v2509 = vmul.f32 %v2323, %v2323
    %v2510 = vmul.f32 %v2326, %v2326
    %v2511 = vmul.f32 %v2331, %v2331
    %v2512 = vmul.f32 %v2334, %v2334
    %v2513 = vmul.f32 %v2339, %v2339
    %v2514 = vmul.f32 %v2342, %v2342
    %v2515 = vmul.f32 %v2347, %v2347
    %v2516 = vmul.f32 %v2350, %v2350
    %v2517 = vmul.f32 %v2355, %v2355
    %v2518 = vmul.f32 %v2358, %v2358
    %v2519 = vmul.f32 %v2363, %v2363
    %v2520 = vmul.f32 %v2366, %v2366
    %v2521 = vmul.f32 %v2371, %v2371
    %v2522 = vmul.f32 %v2374, %v2374
    %v2523 = vmul.f32 %v2379, %v2379
    %v2524 = vmul.f32 %v2382, %v2382
    %v2525 = vmul.f32 %v2387, %v2387
    %v2526 = vmul.f32 %v2390, %v2390
    %v2527 = vadd.f32 %v2463, %v2464
    %v2528 = vadd.f32 %v2527, %v2465
    %v2529 = vadd.f32 %v2528, %v2466
    %v2530 = vadd.f32 %v2529, %v2467
    %v2531 = vadd.f32 %v2530, %v2468
    %v2532 = vadd.f32 %v2531, %v2469
    %v2533 = vadd.f32 %v2532, %v2470
    %v2534 = vadd.f32 %v2533, %v2471
    %v2535 = vadd.f32 %v2534, %v2472
    %v2536 = vadd.f32 %v2535, %v2473
    %v2537 = vadd.f32 %v2536, %v2474
    %v2538 = vadd.f32 %v2537, %v2475
    %v2539 = vadd.f32 %v2538, %v2476
    %v2540 = vadd.f32 %v2539, %v2477
    %v2541 = vadd.f32 %v2540, %v2478
    %v2542 = vadd.f32 %v2541, %v2479
    %v2543 = vadd.f32 %v2542, %v2480
    %v2544 = vadd.f32 %v2543, %v2481
    %v2545 = vadd.f32 %v2544, %v2482
    %v2546 = vadd.f32 %v2545, %v2483
    %v2547 = vadd.f32 %v2546, %v2484
    %v2548 = vadd.f32 %v2547, %v2485
    %v2549 = vadd.f32 %v2548, %v2486
    %v2550 = vadd.f32 %v2549, %v2487
    %v2551 = vadd.f32 %v2550, %v2488
    %v2552 = vadd.f32 %v2551, %v2489
    %v2553 = vadd.f32 %v2552, %v2490
    %v2554 = vadd.f32 %v2553, %v2491
    %v2555 = vadd.f32 %v2554, %v2492
    %v2556 = vadd.f32 %v2555, %v2493
    %v2557 = vadd.f32 %v2556, %v2494
    %v2558 = vadd.f32 %v2557, %v2495
    %v2559 = vadd.f32 %v2558, %v2496
    %v2560 = vadd.f32 %v2559, %v2497
    %v2561 = vadd.f32 %v2560, %v2498
    %v2562 = vadd.f32 %v2561, %v2499
    %v2563 = vadd.f32 %v2562, %v2500
    %v2564 = vadd.f32 %v2563, %v2501
    %v2565 = vadd.f32 %v2564, %v2502
    %v2566 = vadd.f32 %v2565, %v2503
    %v2567 = vadd.f32 %v2566, %v2504
    %v2568 = vadd.f32 %v2567, %v2505
    %v2569 = vadd.f32 %v2568, %v2506
    %v2570 = vadd.f32 %v2569, %v2507
    %v2571 = vadd.f32 %v2570, %v2508
    %v2572 = vadd.f32 %v2571, %v2509
    %v2573 = vadd.f32 %v2572, %v2510
    %v2574 = vadd.f32 %v2573, %v2511
    %v2575 = vadd.f32 %v2574, %v2512
    %v2576 = vadd.f32 %v2575, %v2513
    %v2577 = vadd.f32 %v2576, %v2514
    %v2578 = vadd.f32 %v2577, %v2515
    %v2579 = vadd.f32 %v2578, %v2516
    %v2580 = vadd.f32 %v2579, %v2517
    %v2581 = vadd.f32 %v2580, %v2518
    %v2582 = vadd.f32 %v2581, %v2519
    %v2583 = vadd.f32 %v2582, %v2520
    %v2584 = vadd.f32 %v2583, %v2521
    %v2585 = vadd.f32 %v2584, %v2522
    %v2586 = vadd.f32 %v2585, %v2523
    %v2587 = vadd.f32 %v2586, %v2524
    %v2588 = vadd.f32 %v2587, %v2525
    %v2589 = vadd.f32 %v2588, %v2526
    %v2590 = vrot.slane %v2589, 4
    %v2591 = vadd.f32 %v2589, %v2590
    %v2592 = vrot.slane %v2591, 2
    %v2593 = vadd.f32 %v2591, %v2592
    %v2594 = vrot.slane %v2593, 1
    %v2595 = vadd.f32 %v2593, %v2594
    %v2596 = vmul.f32 %v2595, %v385
    %v2597 = vmul.f32 %v2462, %v2462
    %v2598 = vsub.f32 %v2596, %v2597
    %v2599 = vmax.f32 %v2598, 0.0
    %v2600 = vadd.f32 %v2599, 1e-05
    %v2601 = vrsqrt.pop %v2600
    %v2602 = vmul.f32 %v2601, %v282
    %v2603 = vsub.f32 %v2139, %v2462
    %v2604 = vsub.f32 %v2142, %v2462
    %v2605 = vsub.f32 %v2147, %v2462
    %v2606 = vsub.f32 %v2150, %v2462
    %v2607 = vsub.f32 %v2155, %v2462
    %v2608 = vsub.f32 %v2158, %v2462
    %v2609 = vsub.f32 %v2163, %v2462
    %v2610 = vsub.f32 %v2166, %v2462
    %v2611 = vsub.f32 %v2171, %v2462
    %v2612 = vsub.f32 %v2174, %v2462
    %v2613 = vsub.f32 %v2179, %v2462
    %v2614 = vsub.f32 %v2182, %v2462
    %v2615 = vsub.f32 %v2187, %v2462
    %v2616 = vsub.f32 %v2190, %v2462
    %v2617 = vsub.f32 %v2195, %v2462
    %v2618 = vsub.f32 %v2198, %v2462
    %v2619 = vsub.f32 %v2203, %v2462
    %v2620 = vsub.f32 %v2206, %v2462
    %v2621 = vsub.f32 %v2211, %v2462
    %v2622 = vsub.f32 %v2214, %v2462
    %v2623 = vsub.f32 %v2219, %v2462
    %v2624 = vsub.f32 %v2222, %v2462
    %v2625 = vsub.f32 %v2227, %v2462
    %v2626 = vsub.f32 %v2230, %v2462
    %v2627 = vsub.f32 %v2235, %v2462
    %v2628 = vsub.f32 %v2238, %v2462
    %v2629 = vsub.f32 %v2243, %v2462
    %v2630 = vsub.f32 %v2246, %v2462
    %v2631 = vsub.f32 %v2251, %v2462
    %v2632 = vsub.f32 %v2254, %v2462
    %v2633 = vsub.f32 %v2259, %v2462
    %v2634 = vsub.f32 %v2262, %v2462
    %v2635 = vsub.f32 %v2267, %v2462
    %v2636 = vsub.f32 %v2270, %v2462
    %v2637 = vsub.f32 %v2275, %v2462
    %v2638 = vsub.f32 %v2278, %v2462
    %v2639 = vsub.f32 %v2283, %v2462
    %v2640 = vsub.f32 %v2286, %v2462
    %v2641 = vsub.f32 %v2291, %v2462
    %v2642 = vsub.f32 %v2294, %v2462
    %v2643 = vsub.f32 %v2299, %v2462
    %v2644 = vsub.f32 %v2302, %v2462
    %v2645 = vsub.f32 %v2307, %v2462
    %v2646 = vsub.f32 %v2310, %v2462
    %v2647 = vsub.f32 %v2315, %v2462
    %v2648 = vsub.f32 %v2318, %v2462
    %v2649 = vsub.f32 %v2323, %v2462
    %v2650 = vsub.f32 %v2326, %v2462
    %v2651 = vsub.f32 %v2331, %v2462
    %v2652 = vsub.f32 %v2334, %v2462
    %v2653 = vsub.f32 %v2339, %v2462
    %v2654 = vsub.f32 %v2342, %v2462
    %v2655 = vsub.f32 %v2347, %v2462
    %v2656 = vsub.f32 %v2350, %v2462
    %v2657 = vsub.f32 %v2355, %v2462
    %v2658 = vsub.f32 %v2358, %v2462
    %v2659 = vsub.f32 %v2363, %v2462
    %v2660 = vsub.f32 %v2366, %v2462
    %v2661 = vsub.f32 %v2371, %v2462
    %v2662 = vsub.f32 %v2374, %v2462
    %v2663 = vsub.f32 %v2379, %v2462
    %v2664 = vsub.f32 %v2382, %v2462
    %v2665 = vsub.f32 %v2387, %v2462
    %v2666 = vsub.f32 %v2390, %v2462
    %v2667 = vlaneseq
    %v2668 = vshrl.u32 %v2667, 7
    %v2669 = vsub.s32 5, %v2668
    %v2670 = vrot.slane %v2602, %v2669
    %v2671 = vmul.f32 %v2603, %v2670
    %v2672 = vmul.f32 %v2604, %v2670
    %v2673 = vmul.f32 %v2605, %v2670
    %v2674 = vmul.f32 %v2606, %v2670
    %v2675 = vmul.f32 %v2607, %v2670
    %v2676 = vmul.f32 %v2608, %v2670
    %v2677 = vmul.f32 %v2609, %v2670
    %v2678 = vmul.f32 %v2610, %v2670
    %v2679 = vmul.f32 %v2611, %v2670
    %v2680 = vmul.f32 %v2612, %v2670
    %v2681 = vmul.f32 %v2613, %v2670
    %v2682 = vmul.f32 %v2614, %v2670
    %v2683 = vmul.f32 %v2615, %v2670
    %v2684 = vmul.f32 %v2616, %v2670
    %v2685 = vmul.f32 %v2617, %v2670
    %v2686 = vmul.f32 %v2618, %v2670
    %v2687 = vmul.f32 %v2619, %v2670
    %v2688 = vmul.f32 %v2620, %v2670
    %v2689 = vmul.f32 %v2621, %v2670
    %v2690 = vmul.f32 %v2622, %v2670
    %v2691 = vmul.f32 %v2623, %v2670
    %v2692 = vmul.f32 %v2624, %v2670
    %v2693 = vmul.f32 %v2625, %v2670
    %v2694 = vmul.f32 %v2626, %v2670
    %v2695 = vmul.f32 %v2627, %v2670
    %v2696 = vmul.f32 %v2628, %v2670
    %v2697 = vmul.f32 %v2629, %v2670
    %v2698 = vmul.f32 %v2630, %v2670
    %v2699 = vmul.f32 %v2631, %v2670
    %v2700 = vmul.f32 %v2632, %v2670
    %v2701 = vmul.f32 %v2633, %v2670
    %v2702 = vmul.f32 %v2634, %v2670
    %v2703 = vmul.f32 %v2635, %v2670
    %v2704 = vmul.f32 %v2636, %v2670
    %v2705 = vmul.f32 %v2637, %v2670
    %v2706 = vmul.f32 %v2638, %v2670
    %v2707 = vmul.f32 %v2639, %v2670
    %v2708 = vmul.f32 %v2640, %v2670
    %v2709 = vmul.f32 %v2641, %v2670
    %v2710 = vmul.f32 %v2642, %v2670
    %v2711 = vmul.f32 %v2643, %v2670
    %v2712 = vmul.f32 %v2644, %v2670
    %v2713 = vmul.f32 %v2645, %v2670
    %v2714 = vmul.f32 %v2646, %v2670
    %v2715 = vmul.f32 %v2647, %v2670
    %v2716 = vmul.f32 %v2648, %v2670
    %v2717 = vmul.f32 %v2649, %v2670
    %v2718 = vmul.f32 %v2650, %v2670
    %v2719 = vmul.f32 %v2651, %v2670
    %v2720 = vmul.f32 %v2652, %v2670
    %v2721 = vmul.f32 %v2653, %v2670
    %v2722 = vmul.f32 %v2654, %v2670
    %v2723 = vmul.f32 %v2655, %v2670
    %v2724 = vmul.f32 %v2656, %v2670
    %v2725 = vmul.f32 %v2657, %v2670
    %v2726 = vmul.f32 %v2658, %v2670
    %v2727 = vmul.f32 %v2659, %v2670
    %v2728 = vmul.f32 %v2660, %v2670
    %v2729 = vmul.f32 %v2661, %v2670
    %v2730 = vmul.f32 %v2662, %v2670
    %v2731 = vmul.f32 %v2663, %v2670
    %v2732 = vmul.f32 %v2664, %v2670
    %v2733 = vmul.f32 %v2665, %v2670
    %v2734 = vmul.f32 %v2666, %v2670
    %v2735 = vlaneseq
    %v2736 = vshrl.u32 %v2735, 7
    %v2737 = vsub.s32 6, %v2736
    %v2738 = vrot.slane %v282, %v2737
    %v2739 = vadd.f32 %v2671, %v2738
    %v2740 = vadd.f32 %v2672, %v2738
    %v2741 = vadd.f32 %v2673, %v2738
    %v2742 = vadd.f32 %v2674, %v2738
    %v2743 = vadd.f32 %v2675, %v2738
    %v2744 = vadd.f32 %v2676, %v2738
    %v2745 = vadd.f32 %v2677, %v2738
    %v2746 = vadd.f32 %v2678, %v2738
    %v2747 = vadd.f32 %v2679, %v2738
    %v2748 = vadd.f32 %v2680, %v2738
    %v2749 = vadd.f32 %v2681, %v2738
    %v2750 = vadd.f32 %v2682, %v2738
    %v2751 = vadd.f32 %v2683, %v2738
    %v2752 = vadd.f32 %v2684, %v2738
    %v2753 = vadd.f32 %v2685, %v2738
    %v2754 = vadd.f32 %v2686, %v2738
    %v2755 = vadd.f32 %v2687, %v2738
    %v2756 = vadd.f32 %v2688, %v2738
    %v2757 = vadd.f32 %v2689, %v2738
    %v2758 = vadd.f32 %v2690, %v2738
    %v2759 = vadd.f32 %v2691, %v2738
    %v2760 = vadd.f32 %v2692, %v2738
    %v2761 = vadd.f32 %v2693, %v2738
    %v2762 = vadd.f32 %v2694, %v2738
    %v2763 = vadd.f32 %v2695, %v2738
    %v2764 = vadd.f32 %v2696, %v2738
    %v2765 = vadd.f32 %v2697, %v2738
    %v2766 = vadd.f32 %v2698, %v2738
    %v2767 = vadd.f32 %v2699, %v2738
    %v2768 = vadd.f32 %v2700, %v2738
    %v2769 = vadd.f32 %v2701, %v2738
    %v2770 = vadd.f32 %v2702, %v2738
    %v2771 = vadd.f32 %v2703, %v2738
    %v2772 = vadd.f32 %v2704, %v2738
    %v2773 = vadd.f32 %v2705, %v2738
    %v2774 = vadd.f32 %v2706, %v2738
    %v2775 = vadd.f32 %v2707, %v2738
    %v2776 = vadd.f32 %v2708, %v2738
    %v2777 = vadd.f32 %v2709, %v2738
    %v2778 = vadd.f32 %v2710, %v2738
    %v2779 = vadd.f32 %v2711, %v2738
    %v2780 = vadd.f32 %v2712, %v2738
    %v2781 = vadd.f32 %v2713, %v2738
    %v2782 = vadd.f32 %v2714, %v2738
    %v2783 = vadd.f32 %v2715, %v2738
    %v2784 = vadd.f32 %v2716, %v2738
    %v2785 = vadd.f32 %v2717, %v2738
    %v2786 = vadd.f32 %v2718, %v2738
    %v2787 = vadd.f32 %v2719, %v2738
    %v2788 = vadd.f32 %v2720, %v2738
    %v2789 = vadd.f32 %v2721, %v2738
    %v2790 = vadd.f32 %v2722, %v2738
    %v2791 = vadd.f32 %v2723, %v2738
    %v2792 = vadd.f32 %v2724, %v2738
    %v2793 = vadd.f32 %v2725, %v2738
    %v2794 = vadd.f32 %v2726, %v2738
    %v2795 = vadd.f32 %v2727, %v2738
    %v2796 = vadd.f32 %v2728, %v2738
    %v2797 = vadd.f32 %v2729, %v2738
    %v2798 = vadd.f32 %v2730, %v2738
    %v2799 = vadd.f32 %v2731, %v2738
    %v2800 = vadd.f32 %v2732, %v2738
    %v2801 = vadd.f32 %v2733, %v2738
    %v2802 = vadd.f32 %v2734, %v2738
    %v2803 = vadd.f32 %v1753, %v2739
    %v2804 = vadd.f32 %v1756, %v2740
    %v2805 = vadd.f32 %v1761, %v2741
    %v2806 = vadd.f32 %v1764, %v2742
    %v2807 = vadd.f32 %v1769, %v2743
    %v2808 = vadd.f32 %v1772, %v2744
    %v2809 = vadd.f32 %v1777, %v2745
    %v2810 = vadd.f32 %v1780, %v2746
    %v2811 = vadd.f32 %v1785, %v2747
    %v2812 = vadd.f32 %v1788, %v2748
    %v2813 = vadd.f32 %v1793, %v2749
    %v2814 = vadd.f32 %v1796, %v2750
    %v2815 = vadd.f32 %v1801, %v2751
    %v2816 = vadd.f32 %v1804, %v2752
    %v2817 = vadd.f32 %v1809, %v2753
    %v2818 = vadd.f32 %v1812, %v2754
    %v2819 = vadd.f32 %v1817, %v2755
    %v2820 = vadd.f32 %v1820, %v2756
    %v2821 = vadd.f32 %v1825, %v2757
    %v2822 = vadd.f32 %v1828, %v2758
    %v2823 = vadd.f32 %v1833, %v2759
    %v2824 = vadd.f32 %v1836, %v2760
    %v2825 = vadd.f32 %v1841, %v2761
    %v2826 = vadd.f32 %v1844, %v2762
    %v2827 = vadd.f32 %v1849, %v2763
    %v2828 = vadd.f32 %v1852, %v2764
    %v2829 = vadd.f32 %v1857, %v2765
    %v2830 = vadd.f32 %v1860, %v2766
    %v2831 = vadd.f32 %v1865, %v2767
    %v2832 = vadd.f32 %v1868, %v2768
    %v2833 = vadd.f32 %v1873, %v2769
    %v2834 = vadd.f32 %v1876, %v2770
    %v2835 = vadd.f32 %v1881, %v2771
    %v2836 = vadd.f32 %v1884, %v2772
    %v2837 = vadd.f32 %v1889, %v2773
    %v2838 = vadd.f32 %v1892, %v2774
    %v2839 = vadd.f32 %v1897, %v2775
    %v2840 = vadd.f32 %v1900, %v2776
    %v2841 = vadd.f32 %v1905, %v2777
    %v2842 = vadd.f32 %v1908, %v2778
    %v2843 = vadd.f32 %v1913, %v2779
    %v2844 = vadd.f32 %v1916, %v2780
    %v2845 = vadd.f32 %v1921, %v2781
    %v2846 = vadd.f32 %v1924, %v2782
    %v2847 = vadd.f32 %v1929, %v2783
    %v2848 = vadd.f32 %v1932, %v2784
    %v2849 = vadd.f32 %v1937, %v2785
    %v2850 = vadd.f32 %v1940, %v2786
    %v2851 = vadd.f32 %v1945, %v2787
    %v2852 = vadd.f32 %v1948, %v2788
    %v2853 = vadd.f32 %v1953, %v2789
    %v2854 = vadd.f32 %v1956, %v2790
    %v2855 = vadd.f32 %v1961, %v2791
    %v2856 = vadd.f32 %v1964, %v2792
    %v2857 = vadd.f32 %v1969, %v2793
    %v2858 = vadd.f32 %v1972, %v2794
    %v2859 = vadd.f32 %v1977, %v2795
    %v2860 = vadd.f32 %v1980, %v2796
    %v2861 = vadd.f32 %v1985, %v2797
    %v2862 = vadd.f32 %v1988, %v2798
    %v2863 = vadd.f32 %v1993, %v2799
    %v2864 = vadd.f32 %v1996, %v2800
    %v2865 = vadd.f32 %v2001, %v2801
    %v2866 = vadd.f32 %v2004, %v2802
    %2867 = vst [vmem:[#allocation2] sm:$0xff] %v2803
    %2868 = vst [vmem:[#allocation2 + $0x8] sm:$0xff] %v2804
    %2869 = vst [vmem:[#allocation2 + $0x10] sm:$0xff] %v2805
    %2870 = vst [vmem:[#allocation2 + $0x18] sm:$0xff] %v2806
    %2871 = vst [vmem:[#allocation2 + $0x20] sm:$0xff] %v2807
    %2872 = vst [vmem:[#allocation2 + $0x28] sm:$0xff] %v2808
    %2873 = vst [vmem:[#allocation2 + $0x30] sm:$0xff] %v2809
    %2874 = vst [vmem:[#allocation2 + $0x38] sm:$0xff] %v2810
    %2875 = vst [vmem:[#allocation2 + $0x40] sm:$0xff] %v2811
    %2876 = vst [vmem:[#allocation2 + $0x48] sm:$0xff] %v2812
    %2877 = vst [vmem:[#allocation2 + $0x50] sm:$0xff] %v2813
    %2878 = vst [vmem:[#allocation2 + $0x58] sm:$0xff] %v2814
    %2879 = vst [vmem:[#allocation2 + $0x60] sm:$0xff] %v2815
    %2880 = vst [vmem:[#allocation2 + $0x68] sm:$0xff] %v2816
    %2881 = vst [vmem:[#allocation2 + $0x70] sm:$0xff] %v2817
    %2882 = vst [vmem:[#allocation2 + $0x78] sm:$0xff] %v2818
    %2883 = vst [vmem:[#allocation2 + $0x80] sm:$0xff] %v2819
    %2884 = vst [vmem:[#allocation2 + $0x88] sm:$0xff] %v2820
    %2885 = vst [vmem:[#allocation2 + $0x90] sm:$0xff] %v2821
    %2886 = vst [vmem:[#allocation2 + $0x98] sm:$0xff] %v2822
    %2887 = vst [vmem:[#allocation2 + $0xa0] sm:$0xff] %v2823
    %2888 = vst [vmem:[#allocation2 + $0xa8] sm:$0xff] %v2824
    %2889 = vst [vmem:[#allocation2 + $0xb0] sm:$0xff] %v2825
    %2890 = vst [vmem:[#allocation2 + $0xb8] sm:$0xff] %v2826
    %2891 = vst [vmem:[#allocation2 + $0xc0] sm:$0xff] %v2827
    %2892 = vst [vmem:[#allocation2 + $0xc8] sm:$0xff] %v2828
    %2893 = vst [vmem:[#allocation2 + $0xd0] sm:$0xff] %v2829
    %2894 = vst [vmem:[#allocation2 + $0xd8] sm:$0xff] %v2830
    %2895 = vst [vmem:[#allocation2 + $0xe0] sm:$0xff] %v2831
    %2896 = vst [vmem:[#allocation2 + $0xe8] sm:$0xff] %v2832
    %2897 = vst [vmem:[#allocation2 + $0xf0] sm:$0xff] %v2833
    %2898 = vst [vmem:[#allocation2 + $0xf8] sm:$0xff] %v2834
    %2899 = vst [vmem:[#allocation2 + $0x100] sm:$0xff] %v2835
    %2900 = vst [vmem:[#allocation2 + $0x108] sm:$0xff] %v2836
    %2901 = vst [vmem:[#allocation2 + $0x110] sm:$0xff] %v2837
    %2902 = vst [vmem:[#allocation2 + $0x118] sm:$0xff] %v2838
    %2903 = vst [vmem:[#allocation2 + $0x120] sm:$0xff] %v2839
    %2904 = vst [vmem:[#allocation2 + $0x128] sm:$0xff] %v2840
    %2905 = vst [vmem:[#allocation2 + $0x130] sm:$0xff] %v2841
    %2906 = vst [vmem:[#allocation2 + $0x138] sm:$0xff] %v2842
    %2907 = vst [vmem:[#allocation2 + $0x140] sm:$0xff] %v2843
    %2908 = vst [vmem:[#allocation2 + $0x148] sm:$0xff] %v2844
    %2909 = vst [vmem:[#allocation2 + $0x150] sm:$0xff] %v2845
    %2910 = vst [vmem:[#allocation2 + $0x158] sm:$0xff] %v2846
    %2911 = vst [vmem:[#allocation2 + $0x160] sm:$0xff] %v2847
    %2912 = vst [vmem:[#allocation2 + $0x168] sm:$0xff] %v2848
    %2913 = vst [vmem:[#allocation2 + $0x170] sm:$0xff] %v2849
    %2914 = vst [vmem:[#allocation2 + $0x178] sm:$0xff] %v2850
    %2915 = vst [vmem:[#allocation2 + $0x180] sm:$0xff] %v2851
    %2916 = vst [vmem:[#allocation2 + $0x188] sm:$0xff] %v2852
    %2917 = vst [vmem:[#allocation2 + $0x190] sm:$0xff] %v2853
    %2918 = vst [vmem:[#allocation2 + $0x198] sm:$0xff] %v2854
    %2919 = vst [vmem:[#allocation2 + $0x1a0] sm:$0xff] %v2855
    %2920 = vst [vmem:[#allocation2 + $0x1a8] sm:$0xff] %v2856
    %2921 = vst [vmem:[#allocation2 + $0x1b0] sm:$0xff] %v2857
    %2922 = vst [vmem:[#allocation2 + $0x1b8] sm:$0xff] %v2858
    %2923 = vst [vmem:[#allocation2 + $0x1c0] sm:$0xff] %v2859
    %2924 = vst [vmem:[#allocation2 + $0x1c8] sm:$0xff] %v2860
    %2925 = vst [vmem:[#allocation2 + $0x1d0] sm:$0xff] %v2861
    %2926 = vst [vmem:[#allocation2 + $0x1d8] sm:$0xff] %v2862
    %2927 = vst [vmem:[#allocation2 + $0x1e0] sm:$0xff] %v2863
    %2928 = vst [vmem:[#allocation2 + $0x1e8] sm:$0xff] %v2864
    %2929 = vst [vmem:[#allocation2 + $0x1f0] sm:$0xff] %v2865
    %2930 = vst [vmem:[#allocation2 + $0x1f8] sm:$0xff] %v2866
    %v2931 = vld [vmem:[#allocation2] sm:$0xff]
    %v2932 = vld [vmem:[#allocation2 + $0x8] sm:$0xff]
    %v2933 = vld [vmem:[#allocation2 + $0x10] sm:$0xff]
    %v2934 = vld [vmem:[#allocation2 + $0x18] sm:$0xff]
    %v2935 = vld [vmem:[#allocation2 + $0x20] sm:$0xff]
    %v2936 = vld [vmem:[#allocation2 + $0x28] sm:$0xff]
    %v2937 = vld [vmem:[#allocation2 + $0x30] sm:$0xff]
    %v2938 = vld [vmem:[#allocation2 + $0x38] sm:$0xff]
    %v2939 = vld [vmem:[#allocation2 + $0x40] sm:$0xff]
    %v2940 = vld [vmem:[#allocation2 + $0x48] sm:$0xff]
    %v2941 = vld [vmem:[#allocation2 + $0x50] sm:$0xff]
    %v2942 = vld [vmem:[#allocation2 + $0x58] sm:$0xff]
    %v2943 = vld [vmem:[#allocation2 + $0x60] sm:$0xff]
    %v2944 = vld [vmem:[#allocation2 + $0x68] sm:$0xff]
    %v2945 = vld [vmem:[#allocation2 + $0x70] sm:$0xff]
    %v2946 = vld [vmem:[#allocation2 + $0x78] sm:$0xff]
    %v2947 = vld [vmem:[#allocation2 + $0x80] sm:$0xff]
    %v2948 = vld [vmem:[#allocation2 + $0x88] sm:$0xff]
    %v2949 = vld [vmem:[#allocation2 + $0x90] sm:$0xff]
    %v2950 = vld [vmem:[#allocation2 + $0x98] sm:$0xff]
    %v2951 = vld [vmem:[#allocation2 + $0xa0] sm:$0xff]
    %v2952 = vld [vmem:[#allocation2 + $0xa8] sm:$0xff]
    %v2953 = vld [vmem:[#allocation2 + $0xb0] sm:$0xff]
    %v2954 = vld [vmem:[#allocation2 + $0xb8] sm:$0xff]
    %v2955 = vld [vmem:[#allocation2 + $0xc0] sm:$0xff]
    %v2956 = vld [vmem:[#allocation2 + $0xc8] sm:$0xff]
    %v2957 = vld [vmem:[#allocation2 + $0xd0] sm:$0xff]
    %v2958 = vld [vmem:[#allocation2 + $0xd8] sm:$0xff]
    %v2959 = vld [vmem:[#allocation2 + $0xe0] sm:$0xff]
    %v2960 = vld [vmem:[#allocation2 + $0xe8] sm:$0xff]
    %v2961 = vld [vmem:[#allocation2 + $0xf0] sm:$0xff]
    %v2962 = vld [vmem:[#allocation2 + $0xf8] sm:$0xff]
    %v2963 = vld [vmem:[#allocation2 + $0x100] sm:$0xff]
    %v2964 = vld [vmem:[#allocation2 + $0x108] sm:$0xff]
    %v2965 = vld [vmem:[#allocation2 + $0x110] sm:$0xff]
    %v2966 = vld [vmem:[#allocation2 + $0x118] sm:$0xff]
    %v2967 = vld [vmem:[#allocation2 + $0x120] sm:$0xff]
    %v2968 = vld [vmem:[#allocation2 + $0x128] sm:$0xff]
    %v2969 = vld [vmem:[#allocation2 + $0x130] sm:$0xff]
    %v2970 = vld [vmem:[#allocation2 + $0x138] sm:$0xff]
    %v2971 = vld [vmem:[#allocation2 + $0x140] sm:$0xff]
    %v2972 = vld [vmem:[#allocation2 + $0x148] sm:$0xff]
    %v2973 = vld [vmem:[#allocation2 + $0x150] sm:$0xff]
    %v2974 = vld [vmem:[#allocation2 + $0x158] sm:$0xff]
    %v2975 = vld [vmem:[#allocation2 + $0x160] sm:$0xff]
    %v2976 = vld [vmem:[#allocation2 + $0x168] sm:$0xff]
    %v2977 = vld [vmem:[#allocation2 + $0x170] sm:$0xff]
    %v2978 = vld [vmem:[#allocation2 + $0x178] sm:$0xff]
    %v2979 = vld [vmem:[#allocation2 + $0x180] sm:$0xff]
    %v2980 = vld [vmem:[#allocation2 + $0x188] sm:$0xff]
    %v2981 = vld [vmem:[#allocation2 + $0x190] sm:$0xff]
    %v2982 = vld [vmem:[#allocation2 + $0x198] sm:$0xff]
    %v2983 = vld [vmem:[#allocation2 + $0x1a0] sm:$0xff]
    %v2984 = vld [vmem:[#allocation2 + $0x1a8] sm:$0xff]
    %v2985 = vld [vmem:[#allocation2 + $0x1b0] sm:$0xff]
    %v2986 = vld [vmem:[#allocation2 + $0x1b8] sm:$0xff]
    %v2987 = vld [vmem:[#allocation2 + $0x1c0] sm:$0xff]
    %v2988 = vld [vmem:[#allocation2 + $0x1c8] sm:$0xff]
    %v2989 = vld [vmem:[#allocation2 + $0x1d0] sm:$0xff]
    %v2990 = vld [vmem:[#allocation2 + $0x1d8] sm:$0xff]
    %v2991 = vld [vmem:[#allocation2 + $0x1e0] sm:$0xff]
    %v2992 = vld [vmem:[#allocation2 + $0x1e8] sm:$0xff]
    %v2993 = vld [vmem:[#allocation2 + $0x1f0] sm:$0xff]
    %v2994 = vld [vmem:[#allocation2 + $0x1f8] sm:$0xff]
    %v2995 = vld [vmem:[%s3] sm:$0xff]
    %v2996 = vld [vmem:[%s4] sm:$0xf]
    %v2997 = vld [vmem:[%s4 + $0x4] sm:$0xf]
    %v2998 = vld [vmem:[%s4 + $0x8] sm:$0xf]
    %v2999 = vld [vmem:[%s4 + $0xc] sm:$0xf]
    %v3000 = vld [vmem:[%s4 + $0x10] sm:$0xf]
    %v3001 = vld [vmem:[%s4 + $0x14] sm:$0xf]
    %v3002 = vld [vmem:[%s4 + $0x18] sm:$0xf]
    %v3003 = vld [vmem:[%s4 + $0x1c] sm:$0xf]
    %v3004 = vld [vmem:[%s4 + $0x20] sm:$0xf]
    %v3005 = vld [vmem:[%s4 + $0x24] sm:$0xf]
    %v3006 = vld [vmem:[%s4 + $0x28] sm:$0xf]
    %v3007 = vld [vmem:[%s4 + $0x2c] sm:$0xf]
    %v3008 = vld [vmem:[%s4 + $0x30] sm:$0xf]
    %v3009 = vld [vmem:[%s4 + $0x34] sm:$0xf]
    %v3010 = vld [vmem:[%s4 + $0x38] sm:$0xf]
    %v3011 = vld [vmem:[%s4 + $0x3c] sm:$0xf]
    %v3012 = vld [vmem:[%s5] sm:$0xf]
    %v3013 = vld [vmem:[%s5 + $0x4] sm:$0xf]
    %v3014 = vld [vmem:[%s5 + $0x8] sm:$0xf]
    %v3015 = vld [vmem:[%s5 + $0xc] sm:$0xf]
    %v3016 = vld [vmem:[%s5 + $0x10] sm:$0xf]
    %v3017 = vld [vmem:[%s5 + $0x14] sm:$0xf]
    %v3018 = vld [vmem:[%s5 + $0x18] sm:$0xf]
    %v3019 = vld [vmem:[%s5 + $0x1c] sm:$0xf]
    %v3020 = vld [vmem:[%s5 + $0x20] sm:$0xf]
    %v3021 = vld [vmem:[%s5 + $0x24] sm:$0xf]
    %v3022 = vld [vmem:[%s5 + $0x28] sm:$0xf]
    %v3023 = vld [vmem:[%s5 + $0x2c] sm:$0xf]
    %v3024 = vld [vmem:[%s5 + $0x30] sm:$0xf]
    %v3025 = vld [vmem:[%s5 + $0x34] sm:$0xf]
    %v3026 = vld [vmem:[%s5 + $0x38] sm:$0xf]
    %v3027 = vld [vmem:[%s5 + $0x3c] sm:$0xf]
    %v3028 = vadd.f32 %v2931, %v2932
    %v3029 = vadd.f32 %v3028, %v2933
    %v3030 = vadd.f32 %v3029, %v2934
    %v3031 = vadd.f32 %v3030, %v2935
    %v3032 = vadd.f32 %v3031, %v2936
    %v3033 = vadd.f32 %v3032, %v2937
    %v3034 = vadd.f32 %v3033, %v2938
    %v3035 = vadd.f32 %v3034, %v2939
    %v3036 = vadd.f32 %v3035, %v2940
    %v3037 = vadd.f32 %v3036, %v2941
    %v3038 = vadd.f32 %v3037, %v2942
    %v3039 = vadd.f32 %v3038, %v2943
    %v3040 = vadd.f32 %v3039, %v2944
    %v3041 = vadd.f32 %v3040, %v2945
    %v3042 = vadd.f32 %v3041, %v2946
    %v3043 = vadd.f32 %v3042, %v2947
    %v3044 = vadd.f32 %v3043, %v2948
    %v3045 = vadd.f32 %v3044, %v2949
    %v3046 = vadd.f32 %v3045, %v2950
    %v3047 = vadd.f32 %v3046, %v2951
    %v3048 = vadd.f32 %v3047, %v2952
    %v3049 = vadd.f32 %v3048, %v2953
    %v3050 = vadd.f32 %v3049, %v2954
    %v3051 = vadd.f32 %v3050, %v2955
    %v3052 = vadd.f32 %v3051, %v2956
    %v3053 = vadd.f32 %v3052, %v2957
    %v3054 = vadd.f32 %v3053, %v2958
    %v3055 = vadd.f32 %v3054, %v2959
    %v3056 = vadd.f32 %v3055, %v2960
    %v3057 = vadd.f32 %v3056, %v2961
    %v3058 = vadd.f32 %v3057, %v2962
    %v3059 = vadd.f32 %v3058, %v2963
    %v3060 = vadd.f32 %v3059, %v2964
    %v3061 = vadd.f32 %v3060, %v2965
    %v3062 = vadd.f32 %v3061, %v2966
    %v3063 = vadd.f32 %v3062, %v2967
    %v3064 = vadd.f32 %v3063, %v2968
    %v3065 = vadd.f32 %v3064, %v2969
    %v3066 = vadd.f32 %v3065, %v2970
    %v3067 = vadd.f32 %v3066, %v2971
    %v3068 = vadd.f32 %v3067, %v2972
    %v3069 = vadd.f32 %v3068, %v2973
    %v3070 = vadd.f32 %v3069, %v2974
    %v3071 = vadd.f32 %v3070, %v2975
    %v3072 = vadd.f32 %v3071, %v2976
    %v3073 = vadd.f32 %v3072, %v2977
    %v3074 = vadd.f32 %v3073, %v2978
    %v3075 = vadd.f32 %v3074, %v2979
    %v3076 = vadd.f32 %v3075, %v2980
    %v3077 = vadd.f32 %v3076, %v2981
    %v3078 = vadd.f32 %v3077, %v2982
    %v3079 = vadd.f32 %v3078, %v2983
    %v3080 = vadd.f32 %v3079, %v2984
    %v3081 = vadd.f32 %v3080, %v2985
    %v3082 = vadd.f32 %v3081, %v2986
    %v3083 = vadd.f32 %v3082, %v2987
    %v3084 = vadd.f32 %v3083, %v2988
    %v3085 = vadd.f32 %v3084, %v2989
    %v3086 = vadd.f32 %v3085, %v2990
    %v3087 = vadd.f32 %v3086, %v2991
    %v3088 = vadd.f32 %v3087, %v2992
    %v3089 = vadd.f32 %v3088, %v2993
    %v3090 = vadd.f32 %v3089, %v2994
    %v3091 = vrot.slane %v3090, 4
    %v3092 = vadd.f32 %v3090, %v3091
    %v3093 = vrot.slane %v3092, 2
    %v3094 = vadd.f32 %v3092, %v3093
    %v3095 = vrot.slane %v3094, 1
    %v3096 = vadd.f32 %v3094, %v3095
    %v3097 = vmul.f32 %v3096, %v385
    %v3098 = vmul.f32 %v2931, %v2931
    %v3099 = vmul.f32 %v2932, %v2932
    %v3100 = vmul.f32 %v2933, %v2933
    %v3101 = vmul.f32 %v2934, %v2934
    %v3102 = vmul.f32 %v2935, %v2935
    %v3103 = vmul.f32 %v2936, %v2936
    %v3104 = vmul.f32 %v2937, %v2937
    %v3105 = vmul.f32 %v2938, %v2938
    %v3106 = vmul.f32 %v2939, %v2939
    %v3107 = vmul.f32 %v2940, %v2940
    %v3108 = vmul.f32 %v2941, %v2941
    %v3109 = vmul.f32 %v2942, %v2942
    %v3110 = vmul.f32 %v2943, %v2943
    %v3111 = vmul.f32 %v2944, %v2944
    %v3112 = vmul.f32 %v2945, %v2945
    %v3113 = vmul.f32 %v2946, %v2946
    %v3114 = vmul.f32 %v2947, %v2947
    %v3115 = vmul.f32 %v2948, %v2948
    %v3116 = vmul.f32 %v2949, %v2949
    %v3117 = vmul.f32 %v2950, %v2950
    %v3118 = vmul.f32 %v2951, %v2951
    %v3119 = vmul.f32 %v2952, %v2952
    %v3120 = vmul.f32 %v2953, %v2953
    %v3121 = vmul.f32 %v2954, %v2954
    %v3122 = vmul.f32 %v2955, %v2955
    %v3123 = vmul.f32 %v2956, %v2956
    %v3124 = vmul.f32 %v2957, %v2957
    %v3125 = vmul.f32 %v2958, %v2958
    %v3126 = vmul.f32 %v2959, %v2959
    %v3127 = vmul.f32 %v2960, %v2960
    %v3128 = vmul.f32 %v2961, %v2961
    %v3129 = vmul.f32 %v2962, %v2962
    %v3130 = vmul.f32 %v2963, %v2963
    %v3131 = vmul.f32 %v2964, %v2964
    %v3132 = vmul.f32 %v2965, %v2965
    %v3133 = vmul.f32 %v2966, %v2966
    %v3134 = vmul.f32 %v2967, %v2967
    %v3135 = vmul.f32 %v2968, %v2968
    %v3136 = vmul.f32 %v2969, %v2969
    %v3137 = vmul.f32 %v2970, %v2970
    %v3138 = vmul.f32 %v2971, %v2971
    %v3139 = vmul.f32 %v2972, %v2972
    %v3140 = vmul.f32 %v2973, %v2973
    %v3141 = vmul.f32 %v2974, %v2974
    %v3142 = vmul.f32 %v2975, %v2975
    %v3143 = vmul.f32 %v2976, %v2976
    %v3144 = vmul.f32 %v2977, %v2977
    %v3145 = vmul.f32 %v2978, %v2978
    %v3146 = vmul.f32 %v2979, %v2979
    %v3147 = vmul.f32 %v2980, %v2980
    %v3148 = vmul.f32 %v2981, %v2981
    %v3149 = vmul.f32 %v2982, %v2982
    %v3150 = vmul.f32 %v2983, %v2983
    %v3151 = vmul.f32 %v2984, %v2984
    %v3152 = vmul.f32 %v2985, %v2985
    %v3153 = vmul.f32 %v2986, %v2986
    %v3154 = vmul.f32 %v2987, %v2987
    %v3155 = vmul.f32 %v2988, %v2988
    %v3156 = vmul.f32 %v2989, %v2989
    %v3157 = vmul.f32 %v2990, %v2990
    %v3158 = vmul.f32 %v2991, %v2991
    %v3159 = vmul.f32 %v2992, %v2992
    %v3160 = vmul.f32 %v2993, %v2993
    %v3161 = vmul.f32 %v2994, %v2994
    %v3162 = vadd.f32 %v3098, %v3099
    %v3163 = vadd.f32 %v3162, %v3100
    %v3164 = vadd.f32 %v3163, %v3101
    %v3165 = vadd.f32 %v3164, %v3102
    %v3166 = vadd.f32 %v3165, %v3103
    %v3167 = vadd.f32 %v3166, %v3104
    %v3168 = vadd.f32 %v3167, %v3105
    %v3169 = vadd.f32 %v3168, %v3106
    %v3170 = vadd.f32 %v3169, %v3107
    %v3171 = vadd.f32 %v3170, %v3108
    %v3172 = vadd.f32 %v3171, %v3109
    %v3173 = vadd.f32 %v3172, %v3110
    %v3174 = vadd.f32 %v3173, %v3111
    %v3175 = vadd.f32 %v3174, %v3112
    %v3176 = vadd.f32 %v3175, %v3113
    %v3177 = vadd.f32 %v3176, %v3114
    %v3178 = vadd.f32 %v3177, %v3115
    %v3179 = vadd.f32 %v3178, %v3116
    %v3180 = vadd.f32 %v3179, %v3117
    %v3181 = vadd.f32 %v3180, %v3118
    %v3182 = vadd.f32 %v3181, %v3119
    %v3183 = vadd.f32 %v3182, %v3120
    %v3184 = vadd.f32 %v3183, %v3121
    %v3185 = vadd.f32 %v3184, %v3122
    %v3186 = vadd.f32 %v3185, %v3123
    %v3187 = vadd.f32 %v3186, %v3124
    %v3188 = vadd.f32 %v3187, %v3125
    %v3189 = vadd.f32 %v3188, %v3126
    %v3190 = vadd.f32 %v3189, %v3127
    %v3191 = vadd.f32 %v3190, %v3128
    %v3192 = vadd.f32 %v3191, %v3129
    %v3193 = vadd.f32 %v3192, %v3130
    %v3194 = vadd.f32 %v3193, %v3131
    %v3195 = vadd.f32 %v3194, %v3132
    %v3196 = vadd.f32 %v3195, %v3133
    %v3197 = vadd.f32 %v3196, %v3134
    %v3198 = vadd.f32 %v3197, %v3135
    %v3199 = vadd.f32 %v3198, %v3136
    %v3200 = vadd.f32 %v3199, %v3137
    %v3201 = vadd.f32 %v3200, %v3138
    %v3202 = vadd.f32 %v3201, %v3139
    %v3203 = vadd.f32 %v3202, %v3140
    %v3204 = vadd.f32 %v3203, %v3141
    %v3205 = vadd.f32 %v3204, %v3142
    %v3206 = vadd.f32 %v3205, %v3143
    %v3207 = vadd.f32 %v3206, %v3144
    %v3208 = vadd.f32 %v3207, %v3145
    %v3209 = vadd.f32 %v3208, %v3146
    %v3210 = vadd.f32 %v3209, %v3147
    %v3211 = vadd.f32 %v3210, %v3148
    %v3212 = vadd.f32 %v3211, %v3149
    %v3213 = vadd.f32 %v3212, %v3150
    %v3214 = vadd.f32 %v3213, %v3151
    %v3215 = vadd.f32 %v3214, %v3152
    %v3216 = vadd.f32 %v3215, %v3153
    %v3217 = vadd.f32 %v3216, %v3154
    %v3218 = vadd.f32 %v3217, %v3155
    %v3219 = vadd.f32 %v3218, %v3156
    %v3220 = vadd.f32 %v3219, %v3157
    %v3221 = vadd.f32 %v3220, %v3158
    %v3222 = vadd.f32 %v3221, %v3159
    %v3223 = vadd.f32 %v3222, %v3160
    %v3224 = vadd.f32 %v3223, %v3161
    %v3225 = vrot.slane %v3224, 4
    %v3226 = vadd.f32 %v3224, %v3225
    %v3227 = vrot.slane %v3226, 2
    %v3228 = vadd.f32 %v3226, %v3227
    %v3229 = vrot.slane %v3228, 1
    %v3230 = vadd.f32 %v3228, %v3229
    %v3231 = vmul.f32 %v3230, %v385
    %v3232 = vmul.f32 %v3097, %v3097
    %v3233 = vsub.f32 %v3231, %v3232
    %v3234 = vmax.f32 %v3233, 0.0
    %v3235 = vadd.f32 %v3234, 1e-05
    %v3236 = vrsqrt.pop %v3235
    %v3237 = vmul.f32 %v3236, %v2995
    %v3238 = vsub.f32 %v2931, %v3097
    %v3239 = vsub.f32 %v2932, %v3097
    %v3240 = vsub.f32 %v2933, %v3097
    %v3241 = vsub.f32 %v2934, %v3097
    %v3242 = vsub.f32 %v2935, %v3097
    %v3243 = vsub.f32 %v2936, %v3097
    %v3244 = vsub.f32 %v2937, %v3097
    %v3245 = vsub.f32 %v2938, %v3097
    %v3246 = vsub.f32 %v2939, %v3097
    %v3247 = vsub.f32 %v2940, %v3097
    %v3248 = vsub.f32 %v2941, %v3097
    %v3249 = vsub.f32 %v2942, %v3097
    %v3250 = vsub.f32 %v2943, %v3097
    %v3251 = vsub.f32 %v2944, %v3097
    %v3252 = vsub.f32 %v2945, %v3097
    %v3253 = vsub.f32 %v2946, %v3097
    %v3254 = vsub.f32 %v2947, %v3097
    %v3255 = vsub.f32 %v2948, %v3097
    %v3256 = vsub.f32 %v2949, %v3097
    %v3257 = vsub.f32 %v2950, %v3097
    %v3258 = vsub.f32 %v2951, %v3097
    %v3259 = vsub.f32 %v2952, %v3097
    %v3260 = vsub.f32 %v2953, %v3097
    %v3261 = vsub.f32 %v2954, %v3097
    %v3262 = vsub.f32 %v2955, %v3097
    %v3263 = vsub.f32 %v2956, %v3097
    %v3264 = vsub.f32 %v2957, %v3097
    %v3265 = vsub.f32 %v2958, %v3097
    %v3266 = vsub.f32 %v2959, %v3097
    %v3267 = vsub.f32 %v2960, %v3097
    %v3268 = vsub.f32 %v2961, %v3097
    %v3269 = vsub.f32 %v2962, %v3097
    %v3270 = vsub.f32 %v2963, %v3097
    %v3271 = vsub.f32 %v2964, %v3097
    %v3272 = vsub.f32 %v2965, %v3097
    %v3273 = vsub.f32 %v2966, %v3097
    %v3274 = vsub.f32 %v2967, %v3097
    %v3275 = vsub.f32 %v2968, %v3097
    %v3276 = vsub.f32 %v2969, %v3097
    %v3277 = vsub.f32 %v2970, %v3097
    %v3278 = vsub.f32 %v2971, %v3097
    %v3279 = vsub.f32 %v2972, %v3097
    %v3280 = vsub.f32 %v2973, %v3097
    %v3281 = vsub.f32 %v2974, %v3097
    %v3282 = vsub.f32 %v2975, %v3097
    %v3283 = vsub.f32 %v2976, %v3097
    %v3284 = vsub.f32 %v2977, %v3097
    %v3285 = vsub.f32 %v2978, %v3097
    %v3286 = vsub.f32 %v2979, %v3097
    %v3287 = vsub.f32 %v2980, %v3097
    %v3288 = vsub.f32 %v2981, %v3097
    %v3289 = vsub.f32 %v2982, %v3097
    %v3290 = vsub.f32 %v2983, %v3097
    %v3291 = vsub.f32 %v2984, %v3097
    %v3292 = vsub.f32 %v2985, %v3097
    %v3293 = vsub.f32 %v2986, %v3097
    %v3294 = vsub.f32 %v2987, %v3097
    %v3295 = vsub.f32 %v2988, %v3097
    %v3296 = vsub.f32 %v2989, %v3097
    %v3297 = vsub.f32 %v2990, %v3097
    %v3298 = vsub.f32 %v2991, %v3097
    %v3299 = vsub.f32 %v2992, %v3097
    %v3300 = vsub.f32 %v2993, %v3097
    %v3301 = vsub.f32 %v2994, %v3097
    %v3302 = vlaneseq
    %v3303 = vshrl.u32 %v3302, 7
    %v3304 = vsub.s32 0, %v3303
    %v3305 = vrot.slane %v3237, %v3304
    %v3306 = vmul.f32 %v3238, %v3305
    %v3307 = vmul.f32 %v3239, %v3305
    %v3308 = vmul.f32 %v3240, %v3305
    %v3309 = vmul.f32 %v3241, %v3305
    %v3310 = vmul.f32 %v3242, %v3305
    %v3311 = vmul.f32 %v3243, %v3305
    %v3312 = vmul.f32 %v3244, %v3305
    %v3313 = vmul.f32 %v3245, %v3305
    %v3314 = vmul.f32 %v3246, %v3305
    %v3315 = vmul.f32 %v3247, %v3305
    %v3316 = vmul.f32 %v3248, %v3305
    %v3317 = vmul.f32 %v3249, %v3305
    %v3318 = vmul.f32 %v3250, %v3305
    %v3319 = vmul.f32 %v3251, %v3305
    %v3320 = vmul.f32 %v3252, %v3305
    %v3321 = vmul.f32 %v3253, %v3305
    %v3322 = vmul.f32 %v3254, %v3305
    %v3323 = vmul.f32 %v3255, %v3305
    %v3324 = vmul.f32 %v3256, %v3305
    %v3325 = vmul.f32 %v3257, %v3305
    %v3326 = vmul.f32 %v3258, %v3305
    %v3327 = vmul.f32 %v3259, %v3305
    %v3328 = vmul.f32 %v3260, %v3305
    %v3329 = vmul.f32 %v3261, %v3305
    %v3330 = vmul.f32 %v3262, %v3305
    %v3331 = vmul.f32 %v3263, %v3305
    %v3332 = vmul.f32 %v3264, %v3305
    %v3333 = vmul.f32 %v3265, %v3305
    %v3334 = vmul.f32 %v3266, %v3305
    %v3335 = vmul.f32 %v3267, %v3305
    %v3336 = vmul.f32 %v3268, %v3305
    %v3337 = vmul.f32 %v3269, %v3305
    %v3338 = vmul.f32 %v3270, %v3305
    %v3339 = vmul.f32 %v3271, %v3305
    %v3340 = vmul.f32 %v3272, %v3305
    %v3341 = vmul.f32 %v3273, %v3305
    %v3342 = vmul.f32 %v3274, %v3305
    %v3343 = vmul.f32 %v3275, %v3305
    %v3344 = vmul.f32 %v3276, %v3305
    %v3345 = vmul.f32 %v3277, %v3305
    %v3346 = vmul.f32 %v3278, %v3305
    %v3347 = vmul.f32 %v3279, %v3305
    %v3348 = vmul.f32 %v3280, %v3305
    %v3349 = vmul.f32 %v3281, %v3305
    %v3350 = vmul.f32 %v3282, %v3305
    %v3351 = vmul.f32 %v3283, %v3305
    %v3352 = vmul.f32 %v3284, %v3305
    %v3353 = vmul.f32 %v3285, %v3305
    %v3354 = vmul.f32 %v3286, %v3305
    %v3355 = vmul.f32 %v3287, %v3305
    %v3356 = vmul.f32 %v3288, %v3305
    %v3357 = vmul.f32 %v3289, %v3305
    %v3358 = vmul.f32 %v3290, %v3305
    %v3359 = vmul.f32 %v3291, %v3305
    %v3360 = vmul.f32 %v3292, %v3305
    %v3361 = vmul.f32 %v3293, %v3305
    %v3362 = vmul.f32 %v3294, %v3305
    %v3363 = vmul.f32 %v3295, %v3305
    %v3364 = vmul.f32 %v3296, %v3305
    %v3365 = vmul.f32 %v3297, %v3305
    %v3366 = vmul.f32 %v3298, %v3305
    %v3367 = vmul.f32 %v3299, %v3305
    %v3368 = vmul.f32 %v3300, %v3305
    %v3369 = vmul.f32 %v3301, %v3305
    %v3370 = vlaneseq
    %v3371 = vshrl.u32 %v3370, 7
    %v3372 = vsub.s32 1, %v3371
    %v3373 = vrot.slane %v2995, %v3372
    %v3374 = vadd.f32 %v3306, %v3373
    %v3375 = vadd.f32 %v3307, %v3373
    %v3376 = vadd.f32 %v3308, %v3373
    %v3377 = vadd.f32 %v3309, %v3373
    %v3378 = vadd.f32 %v3310, %v3373
    %v3379 = vadd.f32 %v3311, %v3373
    %v3380 = vadd.f32 %v3312, %v3373
    %v3381 = vadd.f32 %v3313, %v3373
    %v3382 = vadd.f32 %v3314, %v3373
    %v3383 = vadd.f32 %v3315, %v3373
    %v3384 = vadd.f32 %v3316, %v3373
    %v3385 = vadd.f32 %v3317, %v3373
    %v3386 = vadd.f32 %v3318, %v3373
    %v3387 = vadd.f32 %v3319, %v3373
    %v3388 = vadd.f32 %v3320, %v3373
    %v3389 = vadd.f32 %v3321, %v3373
    %v3390 = vadd.f32 %v3322, %v3373
    %v3391 = vadd.f32 %v3323, %v3373
    %v3392 = vadd.f32 %v3324, %v3373
    %v3393 = vadd.f32 %v3325, %v3373
    %v3394 = vadd.f32 %v3326, %v3373
    %v3395 = vadd.f32 %v3327, %v3373
    %v3396 = vadd.f32 %v3328, %v3373
    %v3397 = vadd.f32 %v3329, %v3373
    %v3398 = vadd.f32 %v3330, %v3373
    %v3399 = vadd.f32 %v3331, %v3373
    %v3400 = vadd.f32 %v3332, %v3373
    %v3401 = vadd.f32 %v3333, %v3373
    %v3402 = vadd.f32 %v3334, %v3373
    %v3403 = vadd.f32 %v3335, %v3373
    %v3404 = vadd.f32 %v3336, %v3373
    %v3405 = vadd.f32 %v3337, %v3373
    %v3406 = vadd.f32 %v3338, %v3373
    %v3407 = vadd.f32 %v3339, %v3373
    %v3408 = vadd.f32 %v3340, %v3373
    %v3409 = vadd.f32 %v3341, %v3373
    %v3410 = vadd.f32 %v3342, %v3373
    %v3411 = vadd.f32 %v3343, %v3373
    %v3412 = vadd.f32 %v3344, %v3373
    %v3413 = vadd.f32 %v3345, %v3373
    %v3414 = vadd.f32 %v3346, %v3373
    %v3415 = vadd.f32 %v3347, %v3373
    %v3416 = vadd.f32 %v3348, %v3373
    %v3417 = vadd.f32 %v3349, %v3373
    %v3418 = vadd.f32 %v3350, %v3373
    %v3419 = vadd.f32 %v3351, %v3373
    %v3420 = vadd.f32 %v3352, %v3373
    %v3421 = vadd.f32 %v3353, %v3373
    %v3422 = vadd.f32 %v3354, %v3373
    %v3423 = vadd.f32 %v3355, %v3373
    %v3424 = vadd.f32 %v3356, %v3373
    %v3425 = vadd.f32 %v3357, %v3373
    %v3426 = vadd.f32 %v3358, %v3373
    %v3427 = vadd.f32 %v3359, %v3373
    %v3428 = vadd.f32 %v3360, %v3373
    %v3429 = vadd.f32 %v3361, %v3373
    %v3430 = vadd.f32 %v3362, %v3373
    %v3431 = vadd.f32 %v3363, %v3373
    %v3432 = vadd.f32 %v3364, %v3373
    %v3433 = vadd.f32 %v3365, %v3373
    %v3434 = vadd.f32 %v3366, %v3373
    %v3435 = vadd.f32 %v3367, %v3373
    %v3436 = vadd.f32 %v3368, %v3373
    %v3437 = vadd.f32 %v3369, %v3373
    %v3438 = vmax.f32 %v3374, 0.0
    %v3439 = vmax.f32 %v3375, 0.0
    %v3440 = vmax.f32 %v3376, 0.0
    %v3441 = vmax.f32 %v3377, 0.0
    %v3442 = vmax.f32 %v3378, 0.0
    %v3443 = vmax.f32 %v3379, 0.0
    %v3444 = vmax.f32 %v3380, 0.0
    %v3445 = vmax.f32 %v3381, 0.0
    %v3446 = vmax.f32 %v3382, 0.0
    %v3447 = vmax.f32 %v3383, 0.0
    %v3448 = vmax.f32 %v3384, 0.0
    %v3449 = vmax.f32 %v3385, 0.0
    %v3450 = vmax.f32 %v3386, 0.0
    %v3451 = vmax.f32 %v3387, 0.0
    %v3452 = vmax.f32 %v3388, 0.0
    %v3453 = vmax.f32 %v3389, 0.0
    %v3454 = vmax.f32 %v3390, 0.0
    %v3455 = vmax.f32 %v3391, 0.0
    %v3456 = vmax.f32 %v3392, 0.0
    %v3457 = vmax.f32 %v3393, 0.0
    %v3458 = vmax.f32 %v3394, 0.0
    %v3459 = vmax.f32 %v3395, 0.0
    %v3460 = vmax.f32 %v3396, 0.0
    %v3461 = vmax.f32 %v3397, 0.0
    %v3462 = vmax.f32 %v3398, 0.0
    %v3463 = vmax.f32 %v3399, 0.0
    %v3464 = vmax.f32 %v3400, 0.0
    %v3465 = vmax.f32 %v3401, 0.0
    %v3466 = vmax.f32 %v3402, 0.0
    %v3467 = vmax.f32 %v3403, 0.0
    %v3468 = vmax.f32 %v3404, 0.0
    %v3469 = vmax.f32 %v3405, 0.0
    %v3470 = vmax.f32 %v3406, 0.0
    %v3471 = vmax.f32 %v3407, 0.0
    %v3472 = vmax.f32 %v3408, 0.0
    %v3473 = vmax.f32 %v3409, 0.0
    %v3474 = vmax.f32 %v3410, 0.0
    %v3475 = vmax.f32 %v3411, 0.0
    %v3476 = vmax.f32 %v3412, 0.0
    %v3477 = vmax.f32 %v3413, 0.0
    %v3478 = vmax.f32 %v3414, 0.0
    %v3479 = vmax.f32 %v3415, 0.0
    %v3480 = vmax.f32 %v3416, 0.0
    %v3481 = vmax.f32 %v3417, 0.0
    %v3482 = vmax.f32 %v3418, 0.0
    %v3483 = vmax.f32 %v3419, 0.0
    %v3484 = vmax.f32 %v3420, 0.0
    %v3485 = vmax.f32 %v3421, 0.0
    %v3486 = vmax.f32 %v3422, 0.0
    %v3487 = vmax.f32 %v3423, 0.0
    %v3488 = vmax.f32 %v3424, 0.0
    %v3489 = vmax.f32 %v3425, 0.0
    %v3490 = vmax.f32 %v3426, 0.0
    %v3491 = vmax.f32 %v3427, 0.0
    %v3492 = vmax.f32 %v3428, 0.0
    %v3493 = vmax.f32 %v3429, 0.0
    %v3494 = vmax.f32 %v3430, 0.0
    %v3495 = vmax.f32 %v3431, 0.0
    %v3496 = vmax.f32 %v3432, 0.0
    %v3497 = vmax.f32 %v3433, 0.0
    %v3498 = vmax.f32 %v3434, 0.0
    %v3499 = vmax.f32 %v3435, 0.0
    %v3500 = vmax.f32 %v3436, 0.0
    %v3501 = vmax.f32 %v3437, 0.0
    %v3502 = vpack.c.bf16 %v3439, %v3438
    %v3503 = vpack.c.bf16 %v3441, %v3440
    %v3504 = vpack.c.bf16 %v3443, %v3442
    %v3505 = vpack.c.bf16 %v3445, %v3444
    %v3506 = vpack.c.bf16 %v3447, %v3446
    %v3507 = vpack.c.bf16 %v3449, %v3448
    %v3508 = vpack.c.bf16 %v3451, %v3450
    %v3509 = vpack.c.bf16 %v3453, %v3452
    %v3510 = vpack.c.bf16 %v3455, %v3454
    %v3511 = vpack.c.bf16 %v3457, %v3456
    %v3512 = vpack.c.bf16 %v3459, %v3458
    %v3513 = vpack.c.bf16 %v3461, %v3460
    %v3514 = vpack.c.bf16 %v3463, %v3462
    %v3515 = vpack.c.bf16 %v3465, %v3464
    %v3516 = vpack.c.bf16 %v3467, %v3466
    %v3517 = vpack.c.bf16 %v3469, %v3468
    %v3518 = vpack.c.bf16 %v3471, %v3470
    %v3519 = vpack.c.bf16 %v3473, %v3472
    %v3520 = vpack.c.bf16 %v3475, %v3474
    %v3521 = vpack.c.bf16 %v3477, %v3476
    %v3522 = vpack.c.bf16 %v3479, %v3478
    %v3523 = vpack.c.bf16 %v3481, %v3480
    %v3524 = vpack.c.bf16 %v3483, %v3482
    %v3525 = vpack.c.bf16 %v3485, %v3484
    %v3526 = vpack.c.bf16 %v3487, %v3486
    %v3527 = vpack.c.bf16 %v3489, %v3488
    %v3528 = vpack.c.bf16 %v3491, %v3490
    %v3529 = vpack.c.bf16 %v3493, %v3492
    %v3530 = vpack.c.bf16 %v3495, %v3494
    %v3531 = vpack.c.bf16 %v3497, %v3496
    %v3532 = vpack.c.bf16 %v3499, %v3498
    %v3533 = vpack.c.bf16 %v3501, %v3500
    %v3550 = vunpack.c.l.b16 %v2996
    %v3551 = vunpack.c.l.b16 %v2997
    %v3552 = vunpack.c.l.b16 %v2998
    %v3553 = vunpack.c.l.b16 %v2999
    %v3554 = vunpack.c.l.b16 %v3000
    %v3555 = vunpack.c.l.b16 %v3001
    %v3556 = vunpack.c.l.b16 %v3002
    %v3557 = vunpack.c.l.b16 %v3003
    %v3558 = vunpack.c.l.b16 %v3004
    %v3559 = vunpack.c.l.b16 %v3005
    %v3560 = vunpack.c.l.b16 %v3006
    %v3561 = vunpack.c.l.b16 %v3007
    %v3562 = vunpack.c.l.b16 %v3008
    %v3563 = vunpack.c.l.b16 %v3009
    %v3564 = vunpack.c.l.b16 %v3010
    %v3565 = vunpack.c.l.b16 %v3011
    %v3566 = vpack.c.b16 %v3551, %v3550
    %v3567 = vpack.c.b16 %v3553, %v3552
    %v3568 = vpack.c.b16 %v3555, %v3554
    %v3569 = vpack.c.b16 %v3557, %v3556
    %v3570 = vpack.c.b16 %v3559, %v3558
    %v3571 = vpack.c.b16 %v3561, %v3560
    %v3572 = vpack.c.b16 %v3563, %v3562
    %v3573 = vpack.c.b16 %v3565, %v3564
    %3582 = vmatprep.subr.bf16.mxu0 0
    %3583 = vmatpush1.bf16.msra.mxu0 %v3566
    %3584 = vmatprep.subr.bf16.mxu0 0
    %3585 = vmatpush1.bf16.msra.mxu0 %v3567
    %3586 = vmatprep.subr.bf16.mxu0 0
    %3587 = vmatpush1.bf16.msra.mxu0 %v3568
    %3588 = vmatprep.subr.bf16.mxu0 0
    %3589 = vmatpush1.bf16.msra.mxu0 %v3569
    %3590 = vmatprep.subr.bf16.mxu0 0
    %3591 = vmatpush1.bf16.msra.mxu0 %v3570
    %3592 = vmatprep.subr.bf16.mxu0 0
    %3593 = vmatpush1.bf16.msra.mxu0 %v3571
    %3594 = vmatprep.subr.bf16.mxu0 0
    %3595 = vmatpush1.bf16.msra.mxu0 %v3572
    %3596 = vmatprep.subr.bf16.mxu0 0
    %3597 = vmatpush1.bf16.msra.mxu0 %v3573
    %3598 = vmatprep.subr.bf16.mxu0 0
    %3599 = vmatpush1.bf16.msra.mxu0 0
    %3600 = vmatprep.subr.bf16.mxu0 0
    %3601 = vmatpush1.bf16.msra.mxu0 0
    %3602 = vmatprep.subr.bf16.mxu0 0
    %3603 = vmatpush1.bf16.msra.mxu0 0
    %3604 = vmatprep.subr.bf16.mxu0 0
    %3605 = vmatpush1.bf16.msra.mxu0 0
    %3606 = vmatprep.subr.bf16.mxu0 0
    %3607 = vmatpush1.bf16.msra.mxu0 0
    %3608 = vmatprep.subr.bf16.mxu0 0
    %3609 = vmatpush1.bf16.msra.mxu0 0
    %3610 = vmatprep.subr.bf16.mxu0 0
    %3611 = vmatpush1.bf16.msra.mxu0 0
    %3612 = vmatprep.subr.bf16.mxu0 0
    %3613 = vmatpush1.bf16.msra.mxu0 0
    %3614 = vmatprep.mubr.bf16.mxu0 0
    %3615 = vmatmul.mubr.bf16.gmra.mrb[0].mxu0 %v3502
    %v3616 = vpop.f32.mrb[0].mxu0
    %v3617 = vadd.f32 0.0, %v3616
    %v3618 = vpop.f32.mrb[0].mxu0
    %v3619 = vpop.f32.mrb[0].mxu0
    %v3620 = vadd.f32 0.0, %v3619
    %v3621 = vpop.f32.mrb[0].mxu0
    %3622 = vmatprep.mubr.bf16.mxu0 0
    %3623 = vmatmul.mubr.bf16.gmra.mrb[0].mxu0 %v3503
    %v3624 = vpop.f32.mrb[0].mxu0
    %v3625 = vadd.f32 0.0, %v3624
    %v3626 = vpop.f32.mrb[0].mxu0
    %v3627 = vpop.f32.mrb[0].mxu0
    %v3628 = vadd.f32 0.0, %v3627
    %v3629 = vpop.f32.mrb[0].mxu0
    %3630 = vmatprep.mubr.bf16.mxu0 0
    %3631 = vmatmul.mubr.bf16.gmra.mrb[0].mxu0 %v3504
    %v3632 = vpop.f32.mrb[0].mxu0
    %v3633 = vadd.f32 0.0, %v3632
    %v3634 = vpop.f32.mrb[0].mxu0
    %v3635 = vpop.f32.mrb[0].mxu0
    %v3636 = vadd.f32 0.0, %v3635
    %v3637 = vpop.f32.mrb[0].mxu0
    %3638 = vmatprep.mubr.bf16.mxu0 0
    %3639 = vmatmul.mubr.bf16.gmra.mrb[0].mxu0 %v3505
    %v3640 = vpop.f32.mrb[0].mxu0
    %v3641 = vadd.f32 0.0, %v3640
    %v3642 = vpop.f32.mrb[0].mxu0
    %v3643 = vpop.f32.mrb[0].mxu0
    %v3644 = vadd.f32 0.0, %v3643
    %v3645 = vpop.f32.mrb[0].mxu0
    %3646 = vmatprep.mubr.bf16.mxu0 0
    %3647 = vmatmul.mubr.bf16.gmra.mrb[0].mxu0 %v3506
    %v3648 = vpop.f32.mrb[0].mxu0
    %v3649 = vadd.f32 0.0, %v3648
    %v3650 = vpop.f32.mrb[0].mxu0
    %v3651 = vpop.f32.mrb[0].mxu0
    %v3652 = vadd.f32 0.0, %v3651
    %v3653 = vpop.f32.mrb[0].mxu0
    %3654 = vmatprep.mubr.bf16.mxu0 0
    %3655 = vmatmul.mubr.bf16.gmra.mrb[0].mxu0 %v3507
    %v3656 = vpop.f32.mrb[0].mxu0
    %v3657 = vadd.f32 0.0, %v3656
    %v3658 = vpop.f32.mrb[0].mxu0
    %v3659 = vpop.f32.mrb[0].mxu0
    %v3660 = vadd.f32 0.0, %v3659
    %v3661 = vpop.f32.mrb[0].mxu0
    %3662 = vmatprep.mubr.bf16.mxu0 0
    %3663 = vmatmul.mubr.bf16.gmra.mrb[0].mxu0 %v3508
    %v3664 = vpop.f32.mrb[0].mxu0
    %v3665 = vadd.f32 0.0, %v3664
    %v3666 = vpop.f32.mrb[0].mxu0
    %v3667 = vpop.f32.mrb[0].mxu0
    %v3668 = vadd.f32 0.0, %v3667
    %v3669 = vpop.f32.mrb[0].mxu0
    %3670 = vmatprep.mubr.bf16.mxu0 0
    %3671 = vmatmul.mubr.bf16.gmra.mrb[0].mxu0 %v3509
    %v3672 = vpop.f32.mrb[0].mxu0
    %v3673 = vadd.f32 0.0, %v3672
    %v3674 = vpop.f32.mrb[0].mxu0
    %v3675 = vpop.f32.mrb[0].mxu0
    %v3676 = vadd.f32 0.0, %v3675
    %v3677 = vpop.f32.mrb[0].mxu0
    %3678 = vmatprep.mubr.bf16.mxu0 0
    %3679 = vmatmul.mubr.bf16.gmra.mrb[0].mxu0 %v3510
    %v3680 = vpop.f32.mrb[0].mxu0
    %v3681 = vadd.f32 0.0, %v3680
    %v3682 = vpop.f32.mrb[0].mxu0
    %v3683 = vpop.f32.mrb[0].mxu0
    %v3684 = vadd.f32 0.0, %v3683
    %v3685 = vpop.f32.mrb[0].mxu0
    %3686 = vmatprep.mubr.bf16.mxu0 0
    %3687 = vmatmul.mubr.bf16.gmra.mrb[0].mxu0 %v3511
    %v3688 = vpop.f32.mrb[0].mxu0
    %v3689 = vadd.f32 0.0, %v3688
    %v3690 = vpop.f32.mrb[0].mxu0
    %v3691 = vpop.f32.mrb[0].mxu0
    %v3692 = vadd.f32 0.0, %v3691
    %v3693 = vpop.f32.mrb[0].mxu0
    %3694 = vmatprep.mubr.bf16.mxu0 0
    %3695 = vmatmul.mubr.bf16.gmra.mrb[0].mxu0 %v3512
    %v3696 = vpop.f32.mrb[0].mxu0
    %v3697 = vadd.f32 0.0, %v3696
    %v3698 = vpop.f32.mrb[0].mxu0
    %v3699 = vpop.f32.mrb[0].mxu0
    %v3700 = vadd.f32 0.0, %v3699
    %v3701 = vpop.f32.mrb[0].mxu0
    %3702 = vmatprep.mubr.bf16.mxu0 0
    %3703 = vmatmul.mubr.bf16.gmra.mrb[0].mxu0 %v3513
    %v3704 = vpop.f32.mrb[0].mxu0
    %v3705 = vadd.f32 0.0, %v3704
    %v3706 = vpop.f32.mrb[0].mxu0
    %v3707 = vpop.f32.mrb[0].mxu0
    %v3708 = vadd.f32 0.0, %v3707
    %v3709 = vpop.f32.mrb[0].mxu0
    %3710 = vmatprep.mubr.bf16.mxu0 0
    %3711 = vmatmul.mubr.bf16.gmra.mrb[0].mxu0 %v3514
    %v3712 = vpop.f32.mrb[0].mxu0
    %v3713 = vadd.f32 0.0, %v3712
    %v3714 = vpop.f32.mrb[0].mxu0
    %v3715 = vpop.f32.mrb[0].mxu0
    %v3716 = vadd.f32 0.0, %v3715
    %v3717 = vpop.f32.mrb[0].mxu0
    %3718 = vmatprep.mubr.bf16.mxu0 0
    %3719 = vmatmul.mubr.bf16.gmra.mrb[0].mxu0 %v3515
    %v3720 = vpop.f32.mrb[0].mxu0
    %v3721 = vadd.f32 0.0, %v3720
    %v3722 = vpop.f32.mrb[0].mxu0
    %v3723 = vpop.f32.mrb[0].mxu0
    %v3724 = vadd.f32 0.0, %v3723
    %v3725 = vpop.f32.mrb[0].mxu0
    %3726 = vmatprep.mubr.bf16.mxu0 0
    %3727 = vmatmul.mubr.bf16.gmra.mrb[0].mxu0 %v3516
    %v3728 = vpop.f32.mrb[0].mxu0
    %v3729 = vadd.f32 0.0, %v3728
    %v3730 = vpop.f32.mrb[0].mxu0
    %v3731 = vpop.f32.mrb[0].mxu0
    %v3732 = vadd.f32 0.0, %v3731
    %v3733 = vpop.f32.mrb[0].mxu0
    %3734 = vmatprep.mubr.bf16.mxu0 0
    %3735 = vmatmul.mubr.bf16.gmra.mrb[0].mxu0 %v3517
    %v3736 = vpop.f32.mrb[0].mxu0
    %v3737 = vadd.f32 0.0, %v3736
    %v3738 = vpop.f32.mrb[0].mxu0
    %v3739 = vpop.f32.mrb[0].mxu0
    %v3740 = vadd.f32 0.0, %v3739
    %v3741 = vpop.f32.mrb[0].mxu0
    %3742 = vmatprep.mubr.bf16.mxu0 0
    %3743 = vmatmul.mubr.bf16.gmra.mrb[0].mxu0 %v3518
    %v3744 = vpop.f32.mrb[0].mxu0
    %v3745 = vadd.f32 0.0, %v3744
    %v3746 = vpop.f32.mrb[0].mxu0
    %v3747 = vpop.f32.mrb[0].mxu0
    %v3748 = vadd.f32 0.0, %v3747
    %v3749 = vpop.f32.mrb[0].mxu0
    %3750 = vmatprep.mubr.bf16.mxu0 0
    %3751 = vmatmul.mubr.bf16.gmra.mrb[0].mxu0 %v3519
    %v3752 = vpop.f32.mrb[0].mxu0
    %v3753 = vadd.f32 0.0, %v3752
    %v3754 = vpop.f32.mrb[0].mxu0
    %v3755 = vpop.f32.mrb[0].mxu0
    %v3756 = vadd.f32 0.0, %v3755
    %v3757 = vpop.f32.mrb[0].mxu0
    %3758 = vmatprep.mubr.bf16.mxu0 0
    %3759 = vmatmul.mubr.bf16.gmra.mrb[0].mxu0 %v3520
    %v3760 = vpop.f32.mrb[0].mxu0
    %v3761 = vadd.f32 0.0, %v3760
    %v3762 = vpop.f32.mrb[0].mxu0
    %v3763 = vpop.f32.mrb[0].mxu0
    %v3764 = vadd.f32 0.0, %v3763
    %v3765 = vpop.f32.mrb[0].mxu0
    %3766 = vmatprep.mubr.bf16.mxu0 0
    %3767 = vmatmul.mubr.bf16.gmra.mrb[0].mxu0 %v3521
    %v3768 = vpop.f32.mrb[0].mxu0
    %v3769 = vadd.f32 0.0, %v3768
    %v3770 = vpop.f32.mrb[0].mxu0
    %v3771 = vpop.f32.mrb[0].mxu0
    %v3772 = vadd.f32 0.0, %v3771
    %v3773 = vpop.f32.mrb[0].mxu0
    %3774 = vmatprep.mubr.bf16.mxu0 0
    %3775 = vmatmul.mubr.bf16.gmra.mrb[0].mxu0 %v3522
    %v3776 = vpop.f32.mrb[0].mxu0
    %v3777 = vadd.f32 0.0, %v3776
    %v3778 = vpop.f32.mrb[0].mxu0
    %v3779 = vpop.f32.mrb[0].mxu0
    %v3780 = vadd.f32 0.0, %v3779
    %v3781 = vpop.f32.mrb[0].mxu0
    %3782 = vmatprep.mubr.bf16.mxu0 0
    %3783 = vmatmul.mubr.bf16.gmra.mrb[0].mxu0 %v3523
    %v3784 = vpop.f32.mrb[0].mxu0
    %v3785 = vadd.f32 0.0, %v3784
    %v3786 = vpop.f32.mrb[0].mxu0
    %v3787 = vpop.f32.mrb[0].mxu0
    %v3788 = vadd.f32 0.0, %v3787
    %v3789 = vpop.f32.mrb[0].mxu0
    %3790 = vmatprep.mubr.bf16.mxu0 0
    %3791 = vmatmul.mubr.bf16.gmra.mrb[0].mxu0 %v3524
    %v3792 = vpop.f32.mrb[0].mxu0
    %v3793 = vadd.f32 0.0, %v3792
    %v3794 = vpop.f32.mrb[0].mxu0
    %v3795 = vpop.f32.mrb[0].mxu0
    %v3796 = vadd.f32 0.0, %v3795
    %v3797 = vpop.f32.mrb[0].mxu0
    %3798 = vmatprep.mubr.bf16.mxu0 0
    %3799 = vmatmul.mubr.bf16.gmra.mrb[0].mxu0 %v3525
    %v3800 = vpop.f32.mrb[0].mxu0
    %v3801 = vadd.f32 0.0, %v3800
    %v3802 = vpop.f32.mrb[0].mxu0
    %v3803 = vpop.f32.mrb[0].mxu0
    %v3804 = vadd.f32 0.0, %v3803
    %v3805 = vpop.f32.mrb[0].mxu0
    %3806 = vmatprep.mubr.bf16.mxu0 0
    %3807 = vmatmul.mubr.bf16.gmra.mrb[0].mxu0 %v3526
    %v3808 = vpop.f32.mrb[0].mxu0
    %v3809 = vadd.f32 0.0, %v3808
    %v3810 = vpop.f32.mrb[0].mxu0
    %v3811 = vpop.f32.mrb[0].mxu0
    %v3812 = vadd.f32 0.0, %v3811
    %v3813 = vpop.f32.mrb[0].mxu0
    %3814 = vmatprep.mubr.bf16.mxu0 0
    %3815 = vmatmul.mubr.bf16.gmra.mrb[0].mxu0 %v3527
    %v3816 = vpop.f32.mrb[0].mxu0
    %v3817 = vadd.f32 0.0, %v3816
    %v3818 = vpop.f32.mrb[0].mxu0
    %v3819 = vpop.f32.mrb[0].mxu0
    %v3820 = vadd.f32 0.0, %v3819
    %v3821 = vpop.f32.mrb[0].mxu0
    %3822 = vmatprep.mubr.bf16.mxu0 0
    %3823 = vmatmul.mubr.bf16.gmra.mrb[0].mxu0 %v3528
    %v3824 = vpop.f32.mrb[0].mxu0
    %v3825 = vadd.f32 0.0, %v3824
    %v3826 = vpop.f32.mrb[0].mxu0
    %v3827 = vpop.f32.mrb[0].mxu0
    %v3828 = vadd.f32 0.0, %v3827
    %v3829 = vpop.f32.mrb[0].mxu0
    %3830 = vmatprep.mubr.bf16.mxu0 0
    %3831 = vmatmul.mubr.bf16.gmra.mrb[0].mxu0 %v3529
    %v3832 = vpop.f32.mrb[0].mxu0
    %v3833 = vadd.f32 0.0, %v3832
    %v3834 = vpop.f32.mrb[0].mxu0
    %v3835 = vpop.f32.mrb[0].mxu0
    %v3836 = vadd.f32 0.0, %v3835
    %v3837 = vpop.f32.mrb[0].mxu0
    %3838 = vmatprep.mubr.bf16.mxu0 0
    %3839 = vmatmul.mubr.bf16.gmra.mrb[0].mxu0 %v3530
    %v3840 = vpop.f32.mrb[0].mxu0
    %v3841 = vadd.f32 0.0, %v3840
    %v3842 = vpop.f32.mrb[0].mxu0
    %v3843 = vpop.f32.mrb[0].mxu0
    %v3844 = vadd.f32 0.0, %v3843
    %v3845 = vpop.f32.mrb[0].mxu0
    %3846 = vmatprep.mubr.bf16.mxu0 0
    %3847 = vmatmul.mubr.bf16.gmra.mrb[0].mxu0 %v3531
    %v3848 = vpop.f32.mrb[0].mxu0
    %v3849 = vadd.f32 0.0, %v3848
    %v3850 = vpop.f32.mrb[0].mxu0
    %v3851 = vpop.f32.mrb[0].mxu0
    %v3852 = vadd.f32 0.0, %v3851
    %v3853 = vpop.f32.mrb[0].mxu0
    %3854 = vmatprep.mubr.bf16.mxu0 0
    %3855 = vmatmul.mubr.bf16.gmra.mrb[0].mxu0 %v3532
    %v3856 = vpop.f32.mrb[0].mxu0
    %v3857 = vadd.f32 0.0, %v3856
    %v3858 = vpop.f32.mrb[0].mxu0
    %v3859 = vpop.f32.mrb[0].mxu0
    %v3860 = vadd.f32 0.0, %v3859
    %v3861 = vpop.f32.mrb[0].mxu0
    %3862 = vmatprep.mubr.bf16.mxu0 0
    %3863 = vmatmul.mubr.bf16.gmra.mrb[0].mxu0 %v3533
    %v3864 = vpop.f32.mrb[0].mxu0
    %v3865 = vadd.f32 0.0, %v3864
    %v3866 = vpop.f32.mrb[0].mxu0
    %v3867 = vpop.f32.mrb[0].mxu0
    %v3868 = vadd.f32 0.0, %v3867
    %v3869 = vpop.f32.mrb[0].mxu0
    %3870 = vdwg.mxu0
    %v3871 = vadd.f32 %v3617, %v3620
    %v3872 = vadd.f32 %v3871, %v3625
    %v3873 = vadd.f32 %v3872, %v3628
    %v3874 = vadd.f32 %v3873, %v3633
    %v3875 = vadd.f32 %v3874, %v3636
    %v3876 = vadd.f32 %v3875, %v3641
    %v3877 = vadd.f32 %v3876, %v3644
    %v3878 = vadd.f32 %v3877, %v3649
    %v3879 = vadd.f32 %v3878, %v3652
    %v3880 = vadd.f32 %v3879, %v3657
    %v3881 = vadd.f32 %v3880, %v3660
    %v3882 = vadd.f32 %v3881, %v3665
    %v3883 = vadd.f32 %v3882, %v3668
    %v3884 = vadd.f32 %v3883, %v3673
    %v3885 = vadd.f32 %v3884, %v3676
    %v3886 = vadd.f32 %v3885, %v3681
    %v3887 = vadd.f32 %v3886, %v3684
    %v3888 = vadd.f32 %v3887, %v3689
    %v3889 = vadd.f32 %v3888, %v3692
    %v3890 = vadd.f32 %v3889, %v3697
    %v3891 = vadd.f32 %v3890, %v3700
    %v3892 = vadd.f32 %v3891, %v3705
    %v3893 = vadd.f32 %v3892, %v3708
    %v3894 = vadd.f32 %v3893, %v3713
    %v3895 = vadd.f32 %v3894, %v3716
    %v3896 = vadd.f32 %v3895, %v3721
    %v3897 = vadd.f32 %v3896, %v3724
    %v3898 = vadd.f32 %v3897, %v3729
    %v3899 = vadd.f32 %v3898, %v3732
    %v3900 = vadd.f32 %v3899, %v3737
    %v3901 = vadd.f32 %v3900, %v3740
    %v3902 = vadd.f32 %v3901, %v3745
    %v3903 = vadd.f32 %v3902, %v3748
    %v3904 = vadd.f32 %v3903, %v3753
    %v3905 = vadd.f32 %v3904, %v3756
    %v3906 = vadd.f32 %v3905, %v3761
    %v3907 = vadd.f32 %v3906, %v3764
    %v3908 = vadd.f32 %v3907, %v3769
    %v3909 = vadd.f32 %v3908, %v3772
    %v3910 = vadd.f32 %v3909, %v3777
    %v3911 = vadd.f32 %v3910, %v3780
    %v3912 = vadd.f32 %v3911, %v3785
    %v3913 = vadd.f32 %v3912, %v3788
    %v3914 = vadd.f32 %v3913, %v3793
    %v3915 = vadd.f32 %v3914, %v3796
    %v3916 = vadd.f32 %v3915, %v3801
    %v3917 = vadd.f32 %v3916, %v3804
    %v3918 = vadd.f32 %v3917, %v3809
    %v3919 = vadd.f32 %v3918, %v3812
    %v3920 = vadd.f32 %v3919, %v3817
    %v3921 = vadd.f32 %v3920, %v3820
    %v3922 = vadd.f32 %v3921, %v3825
    %v3923 = vadd.f32 %v3922, %v3828
    %v3924 = vadd.f32 %v3923, %v3833
    %v3925 = vadd.f32 %v3924, %v3836
    %v3926 = vadd.f32 %v3925, %v3841
    %v3927 = vadd.f32 %v3926, %v3844
    %v3928 = vadd.f32 %v3927, %v3849
    %v3929 = vadd.f32 %v3928, %v3852
    %v3930 = vadd.f32 %v3929, %v3857
    %v3931 = vadd.f32 %v3930, %v3860
    %v3932 = vadd.f32 %v3931, %v3865
    %v3933 = vadd.f32 %v3932, %v3868
    %v3934 = vrot.slane %v3933, 4
    %v3935 = vadd.f32 %v3933, %v3934
    %v3936 = vrot.slane %v3935, 2
    %v3937 = vadd.f32 %v3935, %v3936
    %v3938 = vrot.slane %v3937, 1
    %v3939 = vadd.f32 %v3937, %v3938
    %v3940 = vmul.f32 %v3939, %v385
    %v3941 = vmul.f32 %v3617, %v3617
    %v3942 = vmul.f32 %v3620, %v3620
    %v3943 = vmul.f32 %v3625, %v3625
    %v3944 = vmul.f32 %v3628, %v3628
    %v3945 = vmul.f32 %v3633, %v3633
    %v3946 = vmul.f32 %v3636, %v3636
    %v3947 = vmul.f32 %v3641, %v3641
    %v3948 = vmul.f32 %v3644, %v3644
    %v3949 = vmul.f32 %v3649, %v3649
    %v3950 = vmul.f32 %v3652, %v3652
    %v3951 = vmul.f32 %v3657, %v3657
    %v3952 = vmul.f32 %v3660, %v3660
    %v3953 = vmul.f32 %v3665, %v3665
    %v3954 = vmul.f32 %v3668, %v3668
    %v3955 = vmul.f32 %v3673, %v3673
    %v3956 = vmul.f32 %v3676, %v3676
    %v3957 = vmul.f32 %v3681, %v3681
    %v3958 = vmul.f32 %v3684, %v3684
    %v3959 = vmul.f32 %v3689, %v3689
    %v3960 = vmul.f32 %v3692, %v3692
    %v3961 = vmul.f32 %v3697, %v3697
    %v3962 = vmul.f32 %v3700, %v3700
    %v3963 = vmul.f32 %v3705, %v3705
    %v3964 = vmul.f32 %v3708, %v3708
    %v3965 = vmul.f32 %v3713, %v3713
    %v3966 = vmul.f32 %v3716, %v3716
    %v3967 = vmul.f32 %v3721, %v3721
    %v3968 = vmul.f32 %v3724, %v3724
    %v3969 = vmul.f32 %v3729, %v3729
    %v3970 = vmul.f32 %v3732, %v3732
    %v3971 = vmul.f32 %v3737, %v3737
    %v3972 = vmul.f32 %v3740, %v3740
    %v3973 = vmul.f32 %v3745, %v3745
    %v3974 = vmul.f32 %v3748, %v3748
    %v3975 = vmul.f32 %v3753, %v3753
    %v3976 = vmul.f32 %v3756, %v3756
    %v3977 = vmul.f32 %v3761, %v3761
    %v3978 = vmul.f32 %v3764, %v3764
    %v3979 = vmul.f32 %v3769, %v3769
    %v3980 = vmul.f32 %v3772, %v3772
    %v3981 = vmul.f32 %v3777, %v3777
    %v3982 = vmul.f32 %v3780, %v3780
    %v3983 = vmul.f32 %v3785, %v3785
    %v3984 = vmul.f32 %v3788, %v3788
    %v3985 = vmul.f32 %v3793, %v3793
    %v3986 = vmul.f32 %v3796, %v3796
    %v3987 = vmul.f32 %v3801, %v3801
    %v3988 = vmul.f32 %v3804, %v3804
    %v3989 = vmul.f32 %v3809, %v3809
    %v3990 = vmul.f32 %v3812, %v3812
    %v3991 = vmul.f32 %v3817, %v3817
    %v3992 = vmul.f32 %v3820, %v3820
    %v3993 = vmul.f32 %v3825, %v3825
    %v3994 = vmul.f32 %v3828, %v3828
    %v3995 = vmul.f32 %v3833, %v3833
    %v3996 = vmul.f32 %v3836, %v3836
    %v3997 = vmul.f32 %v3841, %v3841
    %v3998 = vmul.f32 %v3844, %v3844
    %v3999 = vmul.f32 %v3849, %v3849
    %v4000 = vmul.f32 %v3852, %v3852
    %v4001 = vmul.f32 %v3857, %v3857
    %v4002 = vmul.f32 %v3860, %v3860
    %v4003 = vmul.f32 %v3865, %v3865
    %v4004 = vmul.f32 %v3868, %v3868
    %v4005 = vadd.f32 %v3941, %v3942
    %v4006 = vadd.f32 %v4005, %v3943
    %v4007 = vadd.f32 %v4006, %v3944
    %v4008 = vadd.f32 %v4007, %v3945
    %v4009 = vadd.f32 %v4008, %v3946
    %v4010 = vadd.f32 %v4009, %v3947
    %v4011 = vadd.f32 %v4010, %v3948
    %v4012 = vadd.f32 %v4011, %v3949
    %v4013 = vadd.f32 %v4012, %v3950
    %v4014 = vadd.f32 %v4013, %v3951
    %v4015 = vadd.f32 %v4014, %v3952
    %v4016 = vadd.f32 %v4015, %v3953
    %v4017 = vadd.f32 %v4016, %v3954
    %v4018 = vadd.f32 %v4017, %v3955
    %v4019 = vadd.f32 %v4018, %v3956
    %v4020 = vadd.f32 %v4019, %v3957
    %v4021 = vadd.f32 %v4020, %v3958
    %v4022 = vadd.f32 %v4021, %v3959
    %v4023 = vadd.f32 %v4022, %v3960
    %v4024 = vadd.f32 %v4023, %v3961
    %v4025 = vadd.f32 %v4024, %v3962
    %v4026 = vadd.f32 %v4025, %v3963
    %v4027 = vadd.f32 %v4026, %v3964
    %v4028 = vadd.f32 %v4027, %v3965
    %v4029 = vadd.f32 %v4028, %v3966
    %v4030 = vadd.f32 %v4029, %v3967
    %v4031 = vadd.f32 %v4030, %v3968
    %v4032 = vadd.f32 %v4031, %v3969
    %v4033 = vadd.f32 %v4032, %v3970
    %v4034 = vadd.f32 %v4033, %v3971
    %v4035 = vadd.f32 %v4034, %v3972
    %v4036 = vadd.f32 %v4035, %v3973
    %v4037 = vadd.f32 %v4036, %v3974
    %v4038 = vadd.f32 %v4037, %v3975
    %v4039 = vadd.f32 %v4038, %v3976
    %v4040 = vadd.f32 %v4039, %v3977
    %v4041 = vadd.f32 %v4040, %v3978
    %v4042 = vadd.f32 %v4041, %v3979
    %v4043 = vadd.f32 %v4042, %v3980
    %v4044 = vadd.f32 %v4043, %v3981
    %v4045 = vadd.f32 %v4044, %v3982
    %v4046 = vadd.f32 %v4045, %v3983
    %v4047 = vadd.f32 %v4046, %v3984
    %v4048 = vadd.f32 %v4047, %v3985
    %v4049 = vadd.f32 %v4048, %v3986
    %v4050 = vadd.f32 %v4049, %v3987
    %v4051 = vadd.f32 %v4050, %v3988
    %v4052 = vadd.f32 %v4051, %v3989
    %v4053 = vadd.f32 %v4052, %v3990
    %v4054 = vadd.f32 %v4053, %v3991
    %v4055 = vadd.f32 %v4054, %v3992
    %v4056 = vadd.f32 %v4055, %v3993
    %v4057 = vadd.f32 %v4056, %v3994
    %v4058 = vadd.f32 %v4057, %v3995
    %v4059 = vadd.f32 %v4058, %v3996
    %v4060 = vadd.f32 %v4059, %v3997
    %v4061 = vadd.f32 %v4060, %v3998
    %v4062 = vadd.f32 %v4061, %v3999
    %v4063 = vadd.f32 %v4062, %v4000
    %v4064 = vadd.f32 %v4063, %v4001
    %v4065 = vadd.f32 %v4064, %v4002
    %v4066 = vadd.f32 %v4065, %v4003
    %v4067 = vadd.f32 %v4066, %v4004
    %v4068 = vrot.slane %v4067, 4
    %v4069 = vadd.f32 %v4067, %v4068
    %v4070 = vrot.slane %v4069, 2
    %v4071 = vadd.f32 %v4069, %v4070
    %v4072 = vrot.slane %v4071, 1
    %v4073 = vadd.f32 %v4071, %v4072
    %v4074 = vmul.f32 %v4073, %v385
    %v4075 = vmul.f32 %v3940, %v3940
    %v4076 = vsub.f32 %v4074, %v4075
    %v4077 = vmax.f32 %v4076, 0.0
    %v4078 = vadd.f32 %v4077, 1e-05
    %v4079 = vrsqrt.pop %v4078
    %v4080 = vmul.f32 %v4079, %v2995
    %v4081 = vsub.f32 %v3617, %v3940
    %v4082 = vsub.f32 %v3620, %v3940
    %v4083 = vsub.f32 %v3625, %v3940
    %v4084 = vsub.f32 %v3628, %v3940
    %v4085 = vsub.f32 %v3633, %v3940
    %v4086 = vsub.f32 %v3636, %v3940
    %v4087 = vsub.f32 %v3641, %v3940
    %v4088 = vsub.f32 %v3644, %v3940
    %v4089 = vsub.f32 %v3649, %v3940
    %v4090 = vsub.f32 %v3652, %v3940
    %v4091 = vsub.f32 %v3657, %v3940
    %v4092 = vsub.f32 %v3660, %v3940
    %v4093 = vsub.f32 %v3665, %v3940
    %v4094 = vsub.f32 %v3668, %v3940
    %v4095 = vsub.f32 %v3673, %v3940
    %v4096 = vsub.f32 %v3676, %v3940
    %v4097 = vsub.f32 %v3681, %v3940
    %v4098 = vsub.f32 %v3684, %v3940
    %v4099 = vsub.f32 %v3689, %v3940
    %v4100 = vsub.f32 %v3692, %v3940
    %v4101 = vsub.f32 %v3697, %v3940
    %v4102 = vsub.f32 %v3700, %v3940
    %v4103 = vsub.f32 %v3705, %v3940
    %v4104 = vsub.f32 %v3708, %v3940
    %v4105 = vsub.f32 %v3713, %v3940
    %v4106 = vsub.f32 %v3716, %v3940
    %v4107 = vsub.f32 %v3721, %v3940
    %v4108 = vsub.f32 %v3724, %v3940
    %v4109 = vsub.f32 %v3729, %v3940
    %v4110 = vsub.f32 %v3732, %v3940
    %v4111 = vsub.f32 %v3737, %v3940
    %v4112 = vsub.f32 %v3740, %v3940
    %v4113 = vsub.f32 %v3745, %v3940
    %v4114 = vsub.f32 %v3748, %v3940
    %v4115 = vsub.f32 %v3753, %v3940
    %v4116 = vsub.f32 %v3756, %v3940
    %v4117 = vsub.f32 %v3761, %v3940
    %v4118 = vsub.f32 %v3764, %v3940
    %v4119 = vsub.f32 %v3769, %v3940
    %v4120 = vsub.f32 %v3772, %v3940
    %v4121 = vsub.f32 %v3777, %v3940
    %v4122 = vsub.f32 %v3780, %v3940
    %v4123 = vsub.f32 %v3785, %v3940
    %v4124 = vsub.f32 %v3788, %v3940
    %v4125 = vsub.f32 %v3793, %v3940
    %v4126 = vsub.f32 %v3796, %v3940
    %v4127 = vsub.f32 %v3801, %v3940
    %v4128 = vsub.f32 %v3804, %v3940
    %v4129 = vsub.f32 %v3809, %v3940
    %v4130 = vsub.f32 %v3812, %v3940
    %v4131 = vsub.f32 %v3817, %v3940
    %v4132 = vsub.f32 %v3820, %v3940
    %v4133 = vsub.f32 %v3825, %v3940
    %v4134 = vsub.f32 %v3828, %v3940
    %v4135 = vsub.f32 %v3833, %v3940
    %v4136 = vsub.f32 %v3836, %v3940
    %v4137 = vsub.f32 %v3841, %v3940
    %v4138 = vsub.f32 %v3844, %v3940
    %v4139 = vsub.f32 %v3849, %v3940
    %v4140 = vsub.f32 %v3852, %v3940
    %v4141 = vsub.f32 %v3857, %v3940
    %v4142 = vsub.f32 %v3860, %v3940
    %v4143 = vsub.f32 %v3865, %v3940
    %v4144 = vsub.f32 %v3868, %v3940
    %v4145 = vlaneseq
    %v4146 = vshrl.u32 %v4145, 7
    %v4147 = vsub.s32 2, %v4146
    %v4148 = vrot.slane %v4080, %v4147
    %v4149 = vmul.f32 %v4081, %v4148
    %v4150 = vmul.f32 %v4082, %v4148
    %v4151 = vmul.f32 %v4083, %v4148
    %v4152 = vmul.f32 %v4084, %v4148
    %v4153 = vmul.f32 %v4085, %v4148
    %v4154 = vmul.f32 %v4086, %v4148
    %v4155 = vmul.f32 %v4087, %v4148
    %v4156 = vmul.f32 %v4088, %v4148
    %v4157 = vmul.f32 %v4089, %v4148
    %v4158 = vmul.f32 %v4090, %v4148
    %v4159 = vmul.f32 %v4091, %v4148
    %v4160 = vmul.f32 %v4092, %v4148
    %v4161 = vmul.f32 %v4093, %v4148
    %v4162 = vmul.f32 %v4094, %v4148
    %v4163 = vmul.f32 %v4095, %v4148
    %v4164 = vmul.f32 %v4096, %v4148
    %v4165 = vmul.f32 %v4097, %v4148
    %v4166 = vmul.f32 %v4098, %v4148
    %v4167 = vmul.f32 %v4099, %v4148
    %v4168 = vmul.f32 %v4100, %v4148
    %v4169 = vmul.f32 %v4101, %v4148
    %v4170 = vmul.f32 %v4102, %v4148
    %v4171 = vmul.f32 %v4103, %v4148
    %v4172 = vmul.f32 %v4104, %v4148
    %v4173 = vmul.f32 %v4105, %v4148
    %v4174 = vmul.f32 %v4106, %v4148
    %v4175 = vmul.f32 %v4107, %v4148
    %v4176 = vmul.f32 %v4108, %v4148
    %v4177 = vmul.f32 %v4109, %v4148
    %v4178 = vmul.f32 %v4110, %v4148
    %v4179 = vmul.f32 %v4111, %v4148
    %v4180 = vmul.f32 %v4112, %v4148
    %v4181 = vmul.f32 %v4113, %v4148
    %v4182 = vmul.f32 %v4114, %v4148
    %v4183 = vmul.f32 %v4115, %v4148
    %v4184 = vmul.f32 %v4116, %v4148
    %v4185 = vmul.f32 %v4117, %v4148
    %v4186 = vmul.f32 %v4118, %v4148
    %v4187 = vmul.f32 %v4119, %v4148
    %v4188 = vmul.f32 %v4120, %v4148
    %v4189 = vmul.f32 %v4121, %v4148
    %v4190 = vmul.f32 %v4122, %v4148
    %v4191 = vmul.f32 %v4123, %v4148
    %v4192 = vmul.f32 %v4124, %v4148
    %v4193 = vmul.f32 %v4125, %v4148
    %v4194 = vmul.f32 %v4126, %v4148
    %v4195 = vmul.f32 %v4127, %v4148
    %v4196 = vmul.f32 %v4128, %v4148
    %v4197 = vmul.f32 %v4129, %v4148
    %v4198 = vmul.f32 %v4130, %v4148
    %v4199 = vmul.f32 %v4131, %v4148
    %v4200 = vmul.f32 %v4132, %v4148
    %v4201 = vmul.f32 %v4133, %v4148
    %v4202 = vmul.f32 %v4134, %v4148
    %v4203 = vmul.f32 %v4135, %v4148
    %v4204 = vmul.f32 %v4136, %v4148
    %v4205 = vmul.f32 %v4137, %v4148
    %v4206 = vmul.f32 %v4138, %v4148
    %v4207 = vmul.f32 %v4139, %v4148
    %v4208 = vmul.f32 %v4140, %v4148
    %v4209 = vmul.f32 %v4141, %v4148
    %v4210 = vmul.f32 %v4142, %v4148
    %v4211 = vmul.f32 %v4143, %v4148
    %v4212 = vmul.f32 %v4144, %v4148
    %v4213 = vlaneseq
    %v4214 = vshrl.u32 %v4213, 7
    %v4215 = vsub.s32 3, %v4214
    %v4216 = vrot.slane %v2995, %v4215
    %v4217 = vadd.f32 %v4149, %v4216
    %v4218 = vadd.f32 %v4150, %v4216
    %v4219 = vadd.f32 %v4151, %v4216
    %v4220 = vadd.f32 %v4152, %v4216
    %v4221 = vadd.f32 %v4153, %v4216
    %v4222 = vadd.f32 %v4154, %v4216
    %v4223 = vadd.f32 %v4155, %v4216
    %v4224 = vadd.f32 %v4156, %v4216
    %v4225 = vadd.f32 %v4157, %v4216
    %v4226 = vadd.f32 %v4158, %v4216
    %v4227 = vadd.f32 %v4159, %v4216
    %v4228 = vadd.f32 %v4160, %v4216
    %v4229 = vadd.f32 %v4161, %v4216
    %v4230 = vadd.f32 %v4162, %v4216
    %v4231 = vadd.f32 %v4163, %v4216
    %v4232 = vadd.f32 %v4164, %v4216
    %v4233 = vadd.f32 %v4165, %v4216
    %v4234 = vadd.f32 %v4166, %v4216
    %v4235 = vadd.f32 %v4167, %v4216
    %v4236 = vadd.f32 %v4168, %v4216
    %v4237 = vadd.f32 %v4169, %v4216
    %v4238 = vadd.f32 %v4170, %v4216
    %v4239 = vadd.f32 %v4171, %v4216
    %v4240 = vadd.f32 %v4172, %v4216
    %v4241 = vadd.f32 %v4173, %v4216
    %v4242 = vadd.f32 %v4174, %v4216
    %v4243 = vadd.f32 %v4175, %v4216
    %v4244 = vadd.f32 %v4176, %v4216
    %v4245 = vadd.f32 %v4177, %v4216
    %v4246 = vadd.f32 %v4178, %v4216
    %v4247 = vadd.f32 %v4179, %v4216
    %v4248 = vadd.f32 %v4180, %v4216
    %v4249 = vadd.f32 %v4181, %v4216
    %v4250 = vadd.f32 %v4182, %v4216
    %v4251 = vadd.f32 %v4183, %v4216
    %v4252 = vadd.f32 %v4184, %v4216
    %v4253 = vadd.f32 %v4185, %v4216
    %v4254 = vadd.f32 %v4186, %v4216
    %v4255 = vadd.f32 %v4187, %v4216
    %v4256 = vadd.f32 %v4188, %v4216
    %v4257 = vadd.f32 %v4189, %v4216
    %v4258 = vadd.f32 %v4190, %v4216
    %v4259 = vadd.f32 %v4191, %v4216
    %v4260 = vadd.f32 %v4192, %v4216
    %v4261 = vadd.f32 %v4193, %v4216
    %v4262 = vadd.f32 %v4194, %v4216
    %v4263 = vadd.f32 %v4195, %v4216
    %v4264 = vadd.f32 %v4196, %v4216
    %v4265 = vadd.f32 %v4197, %v4216
    %v4266 = vadd.f32 %v4198, %v4216
    %v4267 = vadd.f32 %v4199, %v4216
    %v4268 = vadd.f32 %v4200, %v4216
    %v4269 = vadd.f32 %v4201, %v4216
    %v4270 = vadd.f32 %v4202, %v4216
    %v4271 = vadd.f32 %v4203, %v4216
    %v4272 = vadd.f32 %v4204, %v4216
    %v4273 = vadd.f32 %v4205, %v4216
    %v4274 = vadd.f32 %v4206, %v4216
    %v4275 = vadd.f32 %v4207, %v4216
    %v4276 = vadd.f32 %v4208, %v4216
    %v4277 = vadd.f32 %v4209, %v4216
    %v4278 = vadd.f32 %v4210, %v4216
    %v4279 = vadd.f32 %v4211, %v4216
    %v4280 = vadd.f32 %v4212, %v4216
    %v4281 = vmax.f32 %v4217, 0.0
    %v4282 = vmax.f32 %v4218, 0.0
    %v4283 = vmax.f32 %v4219, 0.0
    %v4284 = vmax.f32 %v4220, 0.0
    %v4285 = vmax.f32 %v4221, 0.0
    %v4286 = vmax.f32 %v4222, 0.0
    %v4287 = vmax.f32 %v4223, 0.0
    %v4288 = vmax.f32 %v4224, 0.0
    %v4289 = vmax.f32 %v4225, 0.0
    %v4290 = vmax.f32 %v4226, 0.0
    %v4291 = vmax.f32 %v4227, 0.0
    %v4292 = vmax.f32 %v4228, 0.0
    %v4293 = vmax.f32 %v4229, 0.0
    %v4294 = vmax.f32 %v4230, 0.0
    %v4295 = vmax.f32 %v4231, 0.0
    %v4296 = vmax.f32 %v4232, 0.0
    %v4297 = vmax.f32 %v4233, 0.0
    %v4298 = vmax.f32 %v4234, 0.0
    %v4299 = vmax.f32 %v4235, 0.0
    %v4300 = vmax.f32 %v4236, 0.0
    %v4301 = vmax.f32 %v4237, 0.0
    %v4302 = vmax.f32 %v4238, 0.0
    %v4303 = vmax.f32 %v4239, 0.0
    %v4304 = vmax.f32 %v4240, 0.0
    %v4305 = vmax.f32 %v4241, 0.0
    %v4306 = vmax.f32 %v4242, 0.0
    %v4307 = vmax.f32 %v4243, 0.0
    %v4308 = vmax.f32 %v4244, 0.0
    %v4309 = vmax.f32 %v4245, 0.0
    %v4310 = vmax.f32 %v4246, 0.0
    %v4311 = vmax.f32 %v4247, 0.0
    %v4312 = vmax.f32 %v4248, 0.0
    %v4313 = vmax.f32 %v4249, 0.0
    %v4314 = vmax.f32 %v4250, 0.0
    %v4315 = vmax.f32 %v4251, 0.0
    %v4316 = vmax.f32 %v4252, 0.0
    %v4317 = vmax.f32 %v4253, 0.0
    %v4318 = vmax.f32 %v4254, 0.0
    %v4319 = vmax.f32 %v4255, 0.0
    %v4320 = vmax.f32 %v4256, 0.0
    %v4321 = vmax.f32 %v4257, 0.0
    %v4322 = vmax.f32 %v4258, 0.0
    %v4323 = vmax.f32 %v4259, 0.0
    %v4324 = vmax.f32 %v4260, 0.0
    %v4325 = vmax.f32 %v4261, 0.0
    %v4326 = vmax.f32 %v4262, 0.0
    %v4327 = vmax.f32 %v4263, 0.0
    %v4328 = vmax.f32 %v4264, 0.0
    %v4329 = vmax.f32 %v4265, 0.0
    %v4330 = vmax.f32 %v4266, 0.0
    %v4331 = vmax.f32 %v4267, 0.0
    %v4332 = vmax.f32 %v4268, 0.0
    %v4333 = vmax.f32 %v4269, 0.0
    %v4334 = vmax.f32 %v4270, 0.0
    %v4335 = vmax.f32 %v4271, 0.0
    %v4336 = vmax.f32 %v4272, 0.0
    %v4337 = vmax.f32 %v4273, 0.0
    %v4338 = vmax.f32 %v4274, 0.0
    %v4339 = vmax.f32 %v4275, 0.0
    %v4340 = vmax.f32 %v4276, 0.0
    %v4341 = vmax.f32 %v4277, 0.0
    %v4342 = vmax.f32 %v4278, 0.0
    %v4343 = vmax.f32 %v4279, 0.0
    %v4344 = vmax.f32 %v4280, 0.0
    %v4345 = vpack.c.bf16 %v4282, %v4281
    %v4346 = vpack.c.bf16 %v4284, %v4283
    %v4347 = vpack.c.bf16 %v4286, %v4285
    %v4348 = vpack.c.bf16 %v4288, %v4287
    %v4349 = vpack.c.bf16 %v4290, %v4289
    %v4350 = vpack.c.bf16 %v4292, %v4291
    %v4351 = vpack.c.bf16 %v4294, %v4293
    %v4352 = vpack.c.bf16 %v4296, %v4295
    %v4353 = vpack.c.bf16 %v4298, %v4297
    %v4354 = vpack.c.bf16 %v4300, %v4299
    %v4355 = vpack.c.bf16 %v4302, %v4301
    %v4356 = vpack.c.bf16 %v4304, %v4303
    %v4357 = vpack.c.bf16 %v4306, %v4305
    %v4358 = vpack.c.bf16 %v4308, %v4307
    %v4359 = vpack.c.bf16 %v4310, %v4309
    %v4360 = vpack.c.bf16 %v4312, %v4311
    %v4361 = vpack.c.bf16 %v4314, %v4313
    %v4362 = vpack.c.bf16 %v4316, %v4315
    %v4363 = vpack.c.bf16 %v4318, %v4317
    %v4364 = vpack.c.bf16 %v4320, %v4319
    %v4365 = vpack.c.bf16 %v4322, %v4321
    %v4366 = vpack.c.bf16 %v4324, %v4323
    %v4367 = vpack.c.bf16 %v4326, %v4325
    %v4368 = vpack.c.bf16 %v4328, %v4327
    %v4369 = vpack.c.bf16 %v4330, %v4329
    %v4370 = vpack.c.bf16 %v4332, %v4331
    %v4371 = vpack.c.bf16 %v4334, %v4333
    %v4372 = vpack.c.bf16 %v4336, %v4335
    %v4373 = vpack.c.bf16 %v4338, %v4337
    %v4374 = vpack.c.bf16 %v4340, %v4339
    %v4375 = vpack.c.bf16 %v4342, %v4341
    %v4376 = vpack.c.bf16 %v4344, %v4343
    %v4377 = vlaneseq
    %v4378 = vshrl.u32 %v4377, 7
    %v4379 = vsub.s32 4, %v4378
    %v4380 = vrot.slane %v2995, %v4379
    %v4397 = vunpack.c.l.b16 %v3012
    %v4398 = vunpack.c.l.b16 %v3013
    %v4399 = vunpack.c.l.b16 %v3014
    %v4400 = vunpack.c.l.b16 %v3015
    %v4401 = vunpack.c.l.b16 %v3016
    %v4402 = vunpack.c.l.b16 %v3017
    %v4403 = vunpack.c.l.b16 %v3018
    %v4404 = vunpack.c.l.b16 %v3019
    %v4405 = vunpack.c.l.b16 %v3020
    %v4406 = vunpack.c.l.b16 %v3021
    %v4407 = vunpack.c.l.b16 %v3022
    %v4408 = vunpack.c.l.b16 %v3023
    %v4409 = vunpack.c.l.b16 %v3024
    %v4410 = vunpack.c.l.b16 %v3025
    %v4411 = vunpack.c.l.b16 %v3026
    %v4412 = vunpack.c.l.b16 %v3027
    %v4413 = vpack.c.b16 %v4398, %v4397
    %v4414 = vpack.c.b16 %v4400, %v4399
    %v4415 = vpack.c.b16 %v4402, %v4401
    %v4416 = vpack.c.b16 %v4404, %v4403
    %v4417 = vpack.c.b16 %v4406, %v4405
    %v4418 = vpack.c.b16 %v4408, %v4407
    %v4419 = vpack.c.b16 %v4410, %v4409
    %v4420 = vpack.c.b16 %v4412, %v4411
    %4429 = vmatprep.subr.bf16.mxu0 0
    %4430 = vmatpush1.bf16.msra.mxu0 %v4413
    %4431 = vmatprep.subr.bf16.mxu0 0
    %4432 = vmatpush1.bf16.msra.mxu0 %v4414
    %4433 = vmatprep.subr.bf16.mxu0 0
    %4434 = vmatpush1.bf16.msra.mxu0 %v4415
    %4435 = vmatprep.subr.bf16.mxu0 0
    %4436 = vmatpush1.bf16.msra.mxu0 %v4416
    %4437 = vmatprep.subr.bf16.mxu0 0
    %4438 = vmatpush1.bf16.msra.mxu0 %v4417
    %4439 = vmatprep.subr.bf16.mxu0 0
    %4440 = vmatpush1.bf16.msra.mxu0 %v4418
    %4441 = vmatprep.subr.bf16.mxu0 0
    %4442 = vmatpush1.bf16.msra.mxu0 %v4419
    %4443 = vmatprep.subr.bf16.mxu0 0
    %4444 = vmatpush1.bf16.msra.mxu0 %v4420
    %4445 = vmatprep.subr.bf16.mxu0 0
    %4446 = vmatpush1.bf16.msra.mxu0 0
    %4447 = vmatprep.subr.bf16.mxu0 0
    %4448 = vmatpush1.bf16.msra.mxu0 0
    %4449 = vmatprep.subr.bf16.mxu0 0
    %4450 = vmatpush1.bf16.msra.mxu0 0
    %4451 = vmatprep.subr.bf16.mxu0 0
    %4452 = vmatpush1.bf16.msra.mxu0 0
    %4453 = vmatprep.subr.bf16.mxu0 0
    %4454 = vmatpush1.bf16.msra.mxu0 0
    %4455 = vmatprep.subr.bf16.mxu0 0
    %4456 = vmatpush1.bf16.msra.mxu0 0
    %4457 = vmatprep.subr.bf16.mxu0 0
    %4458 = vmatpush1.bf16.msra.mxu0 0
    %4459 = vmatprep.subr.bf16.mxu0 0
    %4460 = vmatpush1.bf16.msra.mxu0 0
    %4461 = vmatprep.mubr.bf16.mxu0 0
    %4462 = vmatmul.mubr.bf16.gmra.mrb[0].mxu0 %v4345
    %v4463 = vpop.f32.mrb[0].mxu0
    %v4464 = vadd.f32 %v4380, %v4463
    %v4465 = vpop.f32.mrb[0].mxu0
    %v4466 = vpop.f32.mrb[0].mxu0
    %v4467 = vadd.f32 %v4380, %v4466
    %v4468 = vpop.f32.mrb[0].mxu0
    %4469 = vmatprep.mubr.bf16.mxu0 0
    %4470 = vmatmul.mubr.bf16.gmra.mrb[0].mxu0 %v4346
    %v4471 = vpop.f32.mrb[0].mxu0
    %v4472 = vadd.f32 %v4380, %v4471
    %v4473 = vpop.f32.mrb[0].mxu0
    %v4474 = vpop.f32.mrb[0].mxu0
    %v4475 = vadd.f32 %v4380, %v4474
    %v4476 = vpop.f32.mrb[0].mxu0
    %4477 = vmatprep.mubr.bf16.mxu0 0
    %4478 = vmatmul.mubr.bf16.gmra.mrb[0].mxu0 %v4347
    %v4479 = vpop.f32.mrb[0].mxu0
    %v4480 = vadd.f32 %v4380, %v4479
    %v4481 = vpop.f32.mrb[0].mxu0
    %v4482 = vpop.f32.mrb[0].mxu0
    %v4483 = vadd.f32 %v4380, %v4482
    %v4484 = vpop.f32.mrb[0].mxu0
    %4485 = vmatprep.mubr.bf16.mxu0 0
    %4486 = vmatmul.mubr.bf16.gmra.mrb[0].mxu0 %v4348
    %v4487 = vpop.f32.mrb[0].mxu0
    %v4488 = vadd.f32 %v4380, %v4487
    %v4489 = vpop.f32.mrb[0].mxu0
    %v4490 = vpop.f32.mrb[0].mxu0
    %v4491 = vadd.f32 %v4380, %v4490
    %v4492 = vpop.f32.mrb[0].mxu0
    %4493 = vmatprep.mubr.bf16.mxu0 0
    %4494 = vmatmul.mubr.bf16.gmra.mrb[0].mxu0 %v4349
    %v4495 = vpop.f32.mrb[0].mxu0
    %v4496 = vadd.f32 %v4380, %v4495
    %v4497 = vpop.f32.mrb[0].mxu0
    %v4498 = vpop.f32.mrb[0].mxu0
    %v4499 = vadd.f32 %v4380, %v4498
    %v4500 = vpop.f32.mrb[0].mxu0
    %4501 = vmatprep.mubr.bf16.mxu0 0
    %4502 = vmatmul.mubr.bf16.gmra.mrb[0].mxu0 %v4350
    %v4503 = vpop.f32.mrb[0].mxu0
    %v4504 = vadd.f32 %v4380, %v4503
    %v4505 = vpop.f32.mrb[0].mxu0
    %v4506 = vpop.f32.mrb[0].mxu0
    %v4507 = vadd.f32 %v4380, %v4506
    %v4508 = vpop.f32.mrb[0].mxu0
    %4509 = vmatprep.mubr.bf16.mxu0 0
    %4510 = vmatmul.mubr.bf16.gmra.mrb[0].mxu0 %v4351
    %v4511 = vpop.f32.mrb[0].mxu0
    %v4512 = vadd.f32 %v4380, %v4511
    %v4513 = vpop.f32.mrb[0].mxu0
    %v4514 = vpop.f32.mrb[0].mxu0
    %v4515 = vadd.f32 %v4380, %v4514
    %v4516 = vpop.f32.mrb[0].mxu0
    %4517 = vmatprep.mubr.bf16.mxu0 0
    %4518 = vmatmul.mubr.bf16.gmra.mrb[0].mxu0 %v4352
    %v4519 = vpop.f32.mrb[0].mxu0
    %v4520 = vadd.f32 %v4380, %v4519
    %v4521 = vpop.f32.mrb[0].mxu0
    %v4522 = vpop.f32.mrb[0].mxu0
    %v4523 = vadd.f32 %v4380, %v4522
    %v4524 = vpop.f32.mrb[0].mxu0
    %4525 = vmatprep.mubr.bf16.mxu0 0
    %4526 = vmatmul.mubr.bf16.gmra.mrb[0].mxu0 %v4353
    %v4527 = vpop.f32.mrb[0].mxu0
    %v4528 = vadd.f32 %v4380, %v4527
    %v4529 = vpop.f32.mrb[0].mxu0
    %v4530 = vpop.f32.mrb[0].mxu0
    %v4531 = vadd.f32 %v4380, %v4530
    %v4532 = vpop.f32.mrb[0].mxu0
    %4533 = vmatprep.mubr.bf16.mxu0 0
    %4534 = vmatmul.mubr.bf16.gmra.mrb[0].mxu0 %v4354
    %v4535 = vpop.f32.mrb[0].mxu0
    %v4536 = vadd.f32 %v4380, %v4535
    %v4537 = vpop.f32.mrb[0].mxu0
    %v4538 = vpop.f32.mrb[0].mxu0
    %v4539 = vadd.f32 %v4380, %v4538
    %v4540 = vpop.f32.mrb[0].mxu0
    %4541 = vmatprep.mubr.bf16.mxu0 0
    %4542 = vmatmul.mubr.bf16.gmra.mrb[0].mxu0 %v4355
    %v4543 = vpop.f32.mrb[0].mxu0
    %v4544 = vadd.f32 %v4380, %v4543
    %v4545 = vpop.f32.mrb[0].mxu0
    %v4546 = vpop.f32.mrb[0].mxu0
    %v4547 = vadd.f32 %v4380, %v4546
    %v4548 = vpop.f32.mrb[0].mxu0
    %4549 = vmatprep.mubr.bf16.mxu0 0
    %4550 = vmatmul.mubr.bf16.gmra.mrb[0].mxu0 %v4356
    %v4551 = vpop.f32.mrb[0].mxu0
    %v4552 = vadd.f32 %v4380, %v4551
    %v4553 = vpop.f32.mrb[0].mxu0
    %v4554 = vpop.f32.mrb[0].mxu0
    %v4555 = vadd.f32 %v4380, %v4554
    %v4556 = vpop.f32.mrb[0].mxu0
    %4557 = vmatprep.mubr.bf16.mxu0 0
    %4558 = vmatmul.mubr.bf16.gmra.mrb[0].mxu0 %v4357
    %v4559 = vpop.f32.mrb[0].mxu0
    %v4560 = vadd.f32 %v4380, %v4559
    %v4561 = vpop.f32.mrb[0].mxu0
    %v4562 = vpop.f32.mrb[0].mxu0
    %v4563 = vadd.f32 %v4380, %v4562
    %v4564 = vpop.f32.mrb[0].mxu0
    %4565 = vmatprep.mubr.bf16.mxu0 0
    %4566 = vmatmul.mubr.bf16.gmra.mrb[0].mxu0 %v4358
    %v4567 = vpop.f32.mrb[0].mxu0
    %v4568 = vadd.f32 %v4380, %v4567
    %v4569 = vpop.f32.mrb[0].mxu0
    %v4570 = vpop.f32.mrb[0].mxu0
    %v4571 = vadd.f32 %v4380, %v4570
    %v4572 = vpop.f32.mrb[0].mxu0
    %4573 = vmatprep.mubr.bf16.mxu0 0
    %4574 = vmatmul.mubr.bf16.gmra.mrb[0].mxu0 %v4359
    %v4575 = vpop.f32.mrb[0].mxu0
    %v4576 = vadd.f32 %v4380, %v4575
    %v4577 = vpop.f32.mrb[0].mxu0
    %v4578 = vpop.f32.mrb[0].mxu0
    %v4579 = vadd.f32 %v4380, %v4578
    %v4580 = vpop.f32.mrb[0].mxu0
    %4581 = vmatprep.mubr.bf16.mxu0 0
    %4582 = vmatmul.mubr.bf16.gmra.mrb[0].mxu0 %v4360
    %v4583 = vpop.f32.mrb[0].mxu0
    %v4584 = vadd.f32 %v4380, %v4583
    %v4585 = vpop.f32.mrb[0].mxu0
    %v4586 = vpop.f32.mrb[0].mxu0
    %v4587 = vadd.f32 %v4380, %v4586
    %v4588 = vpop.f32.mrb[0].mxu0
    %4589 = vmatprep.mubr.bf16.mxu0 0
    %4590 = vmatmul.mubr.bf16.gmra.mrb[0].mxu0 %v4361
    %v4591 = vpop.f32.mrb[0].mxu0
    %v4592 = vadd.f32 %v4380, %v4591
    %v4593 = vpop.f32.mrb[0].mxu0
    %v4594 = vpop.f32.mrb[0].mxu0
    %v4595 = vadd.f32 %v4380, %v4594
    %v4596 = vpop.f32.mrb[0].mxu0
    %4597 = vmatprep.mubr.bf16.mxu0 0
    %4598 = vmatmul.mubr.bf16.gmra.mrb[0].mxu0 %v4362
    %v4599 = vpop.f32.mrb[0].mxu0
    %v4600 = vadd.f32 %v4380, %v4599
    %v4601 = vpop.f32.mrb[0].mxu0
    %v4602 = vpop.f32.mrb[0].mxu0
    %v4603 = vadd.f32 %v4380, %v4602
    %v4604 = vpop.f32.mrb[0].mxu0
    %4605 = vmatprep.mubr.bf16.mxu0 0
    %4606 = vmatmul.mubr.bf16.gmra.mrb[0].mxu0 %v4363
    %v4607 = vpop.f32.mrb[0].mxu0
    %v4608 = vadd.f32 %v4380, %v4607
    %v4609 = vpop.f32.mrb[0].mxu0
    %v4610 = vpop.f32.mrb[0].mxu0
    %v4611 = vadd.f32 %v4380, %v4610
    %v4612 = vpop.f32.mrb[0].mxu0
    %4613 = vmatprep.mubr.bf16.mxu0 0
    %4614 = vmatmul.mubr.bf16.gmra.mrb[0].mxu0 %v4364
    %v4615 = vpop.f32.mrb[0].mxu0
    %v4616 = vadd.f32 %v4380, %v4615
    %v4617 = vpop.f32.mrb[0].mxu0
    %v4618 = vpop.f32.mrb[0].mxu0
    %v4619 = vadd.f32 %v4380, %v4618
    %v4620 = vpop.f32.mrb[0].mxu0
    %4621 = vmatprep.mubr.bf16.mxu0 0
    %4622 = vmatmul.mubr.bf16.gmra.mrb[0].mxu0 %v4365
    %v4623 = vpop.f32.mrb[0].mxu0
    %v4624 = vadd.f32 %v4380, %v4623
    %v4625 = vpop.f32.mrb[0].mxu0
    %v4626 = vpop.f32.mrb[0].mxu0
    %v4627 = vadd.f32 %v4380, %v4626
    %v4628 = vpop.f32.mrb[0].mxu0
    %4629 = vmatprep.mubr.bf16.mxu0 0
    %4630 = vmatmul.mubr.bf16.gmra.mrb[0].mxu0 %v4366
    %v4631 = vpop.f32.mrb[0].mxu0
    %v4632 = vadd.f32 %v4380, %v4631
    %v4633 = vpop.f32.mrb[0].mxu0
    %v4634 = vpop.f32.mrb[0].mxu0
    %v4635 = vadd.f32 %v4380, %v4634
    %v4636 = vpop.f32.mrb[0].mxu0
    %4637 = vmatprep.mubr.bf16.mxu0 0
    %4638 = vmatmul.mubr.bf16.gmra.mrb[0].mxu0 %v4367
    %v4639 = vpop.f32.mrb[0].mxu0
    %v4640 = vadd.f32 %v4380, %v4639
    %v4641 = vpop.f32.mrb[0].mxu0
    %v4642 = vpop.f32.mrb[0].mxu0
    %v4643 = vadd.f32 %v4380, %v4642
    %v4644 = vpop.f32.mrb[0].mxu0
    %4645 = vmatprep.mubr.bf16.mxu0 0
    %4646 = vmatmul.mubr.bf16.gmra.mrb[0].mxu0 %v4368
    %v4647 = vpop.f32.mrb[0].mxu0
    %v4648 = vadd.f32 %v4380, %v4647
    %v4649 = vpop.f32.mrb[0].mxu0
    %v4650 = vpop.f32.mrb[0].mxu0
    %v4651 = vadd.f32 %v4380, %v4650
    %v4652 = vpop.f32.mrb[0].mxu0
    %4653 = vmatprep.mubr.bf16.mxu0 0
    %4654 = vmatmul.mubr.bf16.gmra.mrb[0].mxu0 %v4369
    %v4655 = vpop.f32.mrb[0].mxu0
    %v4656 = vadd.f32 %v4380, %v4655
    %v4657 = vpop.f32.mrb[0].mxu0
    %v4658 = vpop.f32.mrb[0].mxu0
    %v4659 = vadd.f32 %v4380, %v4658
    %v4660 = vpop.f32.mrb[0].mxu0
    %4661 = vmatprep.mubr.bf16.mxu0 0
    %4662 = vmatmul.mubr.bf16.gmra.mrb[0].mxu0 %v4370
    %v4663 = vpop.f32.mrb[0].mxu0
    %v4664 = vadd.f32 %v4380, %v4663
    %v4665 = vpop.f32.mrb[0].mxu0
    %v4666 = vpop.f32.mrb[0].mxu0
    %v4667 = vadd.f32 %v4380, %v4666
    %v4668 = vpop.f32.mrb[0].mxu0
    %4669 = vmatprep.mubr.bf16.mxu0 0
    %4670 = vmatmul.mubr.bf16.gmra.mrb[0].mxu0 %v4371
    %v4671 = vpop.f32.mrb[0].mxu0
    %v4672 = vadd.f32 %v4380, %v4671
    %v4673 = vpop.f32.mrb[0].mxu0
    %v4674 = vpop.f32.mrb[0].mxu0
    %v4675 = vadd.f32 %v4380, %v4674
    %v4676 = vpop.f32.mrb[0].mxu0
    %4677 = vmatprep.mubr.bf16.mxu0 0
    %4678 = vmatmul.mubr.bf16.gmra.mrb[0].mxu0 %v4372
    %v4679 = vpop.f32.mrb[0].mxu0
    %v4680 = vadd.f32 %v4380, %v4679
    %v4681 = vpop.f32.mrb[0].mxu0
    %v4682 = vpop.f32.mrb[0].mxu0
    %v4683 = vadd.f32 %v4380, %v4682
    %v4684 = vpop.f32.mrb[0].mxu0
    %4685 = vmatprep.mubr.bf16.mxu0 0
    %4686 = vmatmul.mubr.bf16.gmra.mrb[0].mxu0 %v4373
    %v4687 = vpop.f32.mrb[0].mxu0
    %v4688 = vadd.f32 %v4380, %v4687
    %v4689 = vpop.f32.mrb[0].mxu0
    %v4690 = vpop.f32.mrb[0].mxu0
    %v4691 = vadd.f32 %v4380, %v4690
    %v4692 = vpop.f32.mrb[0].mxu0
    %4693 = vmatprep.mubr.bf16.mxu0 0
    %4694 = vmatmul.mubr.bf16.gmra.mrb[0].mxu0 %v4374
    %v4695 = vpop.f32.mrb[0].mxu0
    %v4696 = vadd.f32 %v4380, %v4695
    %v4697 = vpop.f32.mrb[0].mxu0
    %v4698 = vpop.f32.mrb[0].mxu0
    %v4699 = vadd.f32 %v4380, %v4698
    %v4700 = vpop.f32.mrb[0].mxu0
    %4701 = vmatprep.mubr.bf16.mxu0 0
    %4702 = vmatmul.mubr.bf16.gmra.mrb[0].mxu0 %v4375
    %v4703 = vpop.f32.mrb[0].mxu0
    %v4704 = vadd.f32 %v4380, %v4703
    %v4705 = vpop.f32.mrb[0].mxu0
    %v4706 = vpop.f32.mrb[0].mxu0
    %v4707 = vadd.f32 %v4380, %v4706
    %v4708 = vpop.f32.mrb[0].mxu0
    %4709 = vmatprep.mubr.bf16.mxu0 0
    %4710 = vmatmul.mubr.bf16.gmra.mrb[0].mxu0 %v4376
    %v4711 = vpop.f32.mrb[0].mxu0
    %v4712 = vadd.f32 %v4380, %v4711
    %v4713 = vpop.f32.mrb[0].mxu0
    %v4714 = vpop.f32.mrb[0].mxu0
    %v4715 = vadd.f32 %v4380, %v4714
    %v4716 = vpop.f32.mrb[0].mxu0
    %4717 = vdwg.mxu0
    %v4718 = vadd.f32 %v2931, %v4464
    %v4719 = vadd.f32 %v2932, %v4467
    %v4720 = vadd.f32 %v2933, %v4472
    %v4721 = vadd.f32 %v2934, %v4475
    %v4722 = vadd.f32 %v2935, %v4480
    %v4723 = vadd.f32 %v2936, %v4483
    %v4724 = vadd.f32 %v2937, %v4488
    %v4725 = vadd.f32 %v2938, %v4491
    %v4726 = vadd.f32 %v2939, %v4496
    %v4727 = vadd.f32 %v2940, %v4499
    %v4728 = vadd.f32 %v2941, %v4504
    %v4729 = vadd.f32 %v2942, %v4507
    %v4730 = vadd.f32 %v2943, %v4512
    %v4731 = vadd.f32 %v2944, %v4515
    %v4732 = vadd.f32 %v2945, %v4520
    %v4733 = vadd.f32 %v2946, %v4523
    %v4734 = vadd.f32 %v2947, %v4528
    %v4735 = vadd.f32 %v2948, %v4531
    %v4736 = vadd.f32 %v2949, %v4536
    %v4737 = vadd.f32 %v2950, %v4539
    %v4738 = vadd.f32 %v2951, %v4544
    %v4739 = vadd.f32 %v2952, %v4547
    %v4740 = vadd.f32 %v2953, %v4552
    %v4741 = vadd.f32 %v2954, %v4555
    %v4742 = vadd.f32 %v2955, %v4560
    %v4743 = vadd.f32 %v2956, %v4563
    %v4744 = vadd.f32 %v2957, %v4568
    %v4745 = vadd.f32 %v2958, %v4571
    %v4746 = vadd.f32 %v2959, %v4576
    %v4747 = vadd.f32 %v2960, %v4579
    %v4748 = vadd.f32 %v2961, %v4584
    %v4749 = vadd.f32 %v2962, %v4587
    %v4750 = vadd.f32 %v2963, %v4592
    %v4751 = vadd.f32 %v2964, %v4595
    %v4752 = vadd.f32 %v2965, %v4600
    %v4753 = vadd.f32 %v2966, %v4603
    %v4754 = vadd.f32 %v2967, %v4608
    %v4755 = vadd.f32 %v2968, %v4611
    %v4756 = vadd.f32 %v2969, %v4616
    %v4757 = vadd.f32 %v2970, %v4619
    %v4758 = vadd.f32 %v2971, %v4624
    %v4759 = vadd.f32 %v2972, %v4627
    %v4760 = vadd.f32 %v2973, %v4632
    %v4761 = vadd.f32 %v2974, %v4635
    %v4762 = vadd.f32 %v2975, %v4640
    %v4763 = vadd.f32 %v2976, %v4643
    %v4764 = vadd.f32 %v2977, %v4648
    %v4765 = vadd.f32 %v2978, %v4651
    %v4766 = vadd.f32 %v2979, %v4656
    %v4767 = vadd.f32 %v2980, %v4659
    %v4768 = vadd.f32 %v2981, %v4664
    %v4769 = vadd.f32 %v2982, %v4667
    %v4770 = vadd.f32 %v2983, %v4672
    %v4771 = vadd.f32 %v2984, %v4675
    %v4772 = vadd.f32 %v2985, %v4680
    %v4773 = vadd.f32 %v2986, %v4683
    %v4774 = vadd.f32 %v2987, %v4688
    %v4775 = vadd.f32 %v2988, %v4691
    %v4776 = vadd.f32 %v2989, %v4696
    %v4777 = vadd.f32 %v2990, %v4699
    %v4778 = vadd.f32 %v2991, %v4704
    %v4779 = vadd.f32 %v2992, %v4707
    %v4780 = vadd.f32 %v2993, %v4712
    %v4781 = vadd.f32 %v2994, %v4715
    %4782 = vst [vmem:[#allocation2] sm:$0xff] %v4718
    %4783 = vst [vmem:[#allocation2 + $0x8] sm:$0xff] %v4719
    %4784 = vst [vmem:[#allocation2 + $0x10] sm:$0xff] %v4720
    %4785 = vst [vmem:[#allocation2 + $0x18] sm:$0xff] %v4721
    %4786 = vst [vmem:[#allocation2 + $0x20] sm:$0xff] %v4722
    %4787 = vst [vmem:[#allocation2 + $0x28] sm:$0xff] %v4723
    %4788 = vst [vmem:[#allocation2 + $0x30] sm:$0xff] %v4724
    %4789 = vst [vmem:[#allocation2 + $0x38] sm:$0xff] %v4725
    %4790 = vst [vmem:[#allocation2 + $0x40] sm:$0xff] %v4726
    %4791 = vst [vmem:[#allocation2 + $0x48] sm:$0xff] %v4727
    %4792 = vst [vmem:[#allocation2 + $0x50] sm:$0xff] %v4728
    %4793 = vst [vmem:[#allocation2 + $0x58] sm:$0xff] %v4729
    %4794 = vst [vmem:[#allocation2 + $0x60] sm:$0xff] %v4730
    %4795 = vst [vmem:[#allocation2 + $0x68] sm:$0xff] %v4731
    %4796 = vst [vmem:[#allocation2 + $0x70] sm:$0xff] %v4732
    %4797 = vst [vmem:[#allocation2 + $0x78] sm:$0xff] %v4733
    %4798 = vst [vmem:[#allocation2 + $0x80] sm:$0xff] %v4734
    %4799 = vst [vmem:[#allocation2 + $0x88] sm:$0xff] %v4735
    %4800 = vst [vmem:[#allocation2 + $0x90] sm:$0xff] %v4736
    %4801 = vst [vmem:[#allocation2 + $0x98] sm:$0xff] %v4737
    %4802 = vst [vmem:[#allocation2 + $0xa0] sm:$0xff] %v4738
    %4803 = vst [vmem:[#allocation2 + $0xa8] sm:$0xff] %v4739
    %4804 = vst [vmem:[#allocation2 + $0xb0] sm:$0xff] %v4740
    %4805 = vst [vmem:[#allocation2 + $0xb8] sm:$0xff] %v4741
    %4806 = vst [vmem:[#allocation2 + $0xc0] sm:$0xff] %v4742
    %4807 = vst [vmem:[#allocation2 + $0xc8] sm:$0xff] %v4743
    %4808 = vst [vmem:[#allocation2 + $0xd0] sm:$0xff] %v4744
    %4809 = vst [vmem:[#allocation2 + $0xd8] sm:$0xff] %v4745
    %4810 = vst [vmem:[#allocation2 + $0xe0] sm:$0xff] %v4746
    %4811 = vst [vmem:[#allocation2 + $0xe8] sm:$0xff] %v4747
    %4812 = vst [vmem:[#allocation2 + $0xf0] sm:$0xff] %v4748
    %4813 = vst [vmem:[#allocation2 + $0xf8] sm:$0xff] %v4749
    %4814 = vst [vmem:[#allocation2 + $0x100] sm:$0xff] %v4750
    %4815 = vst [vmem:[#allocation2 + $0x108] sm:$0xff] %v4751
    %4816 = vst [vmem:[#allocation2 + $0x110] sm:$0xff] %v4752
    %4817 = vst [vmem:[#allocation2 + $0x118] sm:$0xff] %v4753
    %4818 = vst [vmem:[#allocation2 + $0x120] sm:$0xff] %v4754
    %4819 = vst [vmem:[#allocation2 + $0x128] sm:$0xff] %v4755
    %4820 = vst [vmem:[#allocation2 + $0x130] sm:$0xff] %v4756
    %4821 = vst [vmem:[#allocation2 + $0x138] sm:$0xff] %v4757
    %4822 = vst [vmem:[#allocation2 + $0x140] sm:$0xff] %v4758
    %4823 = vst [vmem:[#allocation2 + $0x148] sm:$0xff] %v4759
    %4824 = vst [vmem:[#allocation2 + $0x150] sm:$0xff] %v4760
    %4825 = vst [vmem:[#allocation2 + $0x158] sm:$0xff] %v4761
    %4826 = vst [vmem:[#allocation2 + $0x160] sm:$0xff] %v4762
    %4827 = vst [vmem:[#allocation2 + $0x168] sm:$0xff] %v4763
    %4828 = vst [vmem:[#allocation2 + $0x170] sm:$0xff] %v4764
    %4829 = vst [vmem:[#allocation2 + $0x178] sm:$0xff] %v4765
    %4830 = vst [vmem:[#allocation2 + $0x180] sm:$0xff] %v4766
    %4831 = vst [vmem:[#allocation2 + $0x188] sm:$0xff] %v4767
    %4832 = vst [vmem:[#allocation2 + $0x190] sm:$0xff] %v4768
    %4833 = vst [vmem:[#allocation2 + $0x198] sm:$0xff] %v4769
    %4834 = vst [vmem:[#allocation2 + $0x1a0] sm:$0xff] %v4770
    %4835 = vst [vmem:[#allocation2 + $0x1a8] sm:$0xff] %v4771
    %4836 = vst [vmem:[#allocation2 + $0x1b0] sm:$0xff] %v4772
    %4837 = vst [vmem:[#allocation2 + $0x1b8] sm:$0xff] %v4773
    %4838 = vst [vmem:[#allocation2 + $0x1c0] sm:$0xff] %v4774
    %4839 = vst [vmem:[#allocation2 + $0x1c8] sm:$0xff] %v4775
    %4840 = vst [vmem:[#allocation2 + $0x1d0] sm:$0xff] %v4776
    %4841 = vst [vmem:[#allocation2 + $0x1d8] sm:$0xff] %v4777
    %4842 = vst [vmem:[#allocation2 + $0x1e0] sm:$0xff] %v4778
    %4843 = vst [vmem:[#allocation2 + $0x1e8] sm:$0xff] %v4779
    %4844 = vst [vmem:[#allocation2 + $0x1f0] sm:$0xff] %v4780
    %4845 = vst [vmem:[#allocation2 + $0x1f8] sm:$0xff] %v4781
    %v4846 = vld [vmem:[#allocation2] sm:$0xff]
    %v4847 = vld [vmem:[#allocation2 + $0x8] sm:$0xff]
    %v4848 = vld [vmem:[#allocation2 + $0x10] sm:$0xff]
    %v4849 = vld [vmem:[#allocation2 + $0x18] sm:$0xff]
    %v4850 = vld [vmem:[#allocation2 + $0x20] sm:$0xff]
    %v4851 = vld [vmem:[#allocation2 + $0x28] sm:$0xff]
    %v4852 = vld [vmem:[#allocation2 + $0x30] sm:$0xff]
    %v4853 = vld [vmem:[#allocation2 + $0x38] sm:$0xff]
    %v4854 = vld [vmem:[#allocation2 + $0x40] sm:$0xff]
    %v4855 = vld [vmem:[#allocation2 + $0x48] sm:$0xff]
    %v4856 = vld [vmem:[#allocation2 + $0x50] sm:$0xff]
    %v4857 = vld [vmem:[#allocation2 + $0x58] sm:$0xff]
    %v4858 = vld [vmem:[#allocation2 + $0x60] sm:$0xff]
    %v4859 = vld [vmem:[#allocation2 + $0x68] sm:$0xff]
    %v4860 = vld [vmem:[#allocation2 + $0x70] sm:$0xff]
    %v4861 = vld [vmem:[#allocation2 + $0x78] sm:$0xff]
    %v4862 = vld [vmem:[#allocation2 + $0x80] sm:$0xff]
    %v4863 = vld [vmem:[#allocation2 + $0x88] sm:$0xff]
    %v4864 = vld [vmem:[#allocation2 + $0x90] sm:$0xff]
    %v4865 = vld [vmem:[#allocation2 + $0x98] sm:$0xff]
    %v4866 = vld [vmem:[#allocation2 + $0xa0] sm:$0xff]
    %v4867 = vld [vmem:[#allocation2 + $0xa8] sm:$0xff]
    %v4868 = vld [vmem:[#allocation2 + $0xb0] sm:$0xff]
    %v4869 = vld [vmem:[#allocation2 + $0xb8] sm:$0xff]
    %v4870 = vld [vmem:[#allocation2 + $0xc0] sm:$0xff]
    %v4871 = vld [vmem:[#allocation2 + $0xc8] sm:$0xff]
    %v4872 = vld [vmem:[#allocation2 + $0xd0] sm:$0xff]
    %v4873 = vld [vmem:[#allocation2 + $0xd8] sm:$0xff]
    %v4874 = vld [vmem:[#allocation2 + $0xe0] sm:$0xff]
    %v4875 = vld [vmem:[#allocation2 + $0xe8] sm:$0xff]
    %v4876 = vld [vmem:[#allocation2 + $0xf0] sm:$0xff]
    %v4877 = vld [vmem:[#allocation2 + $0xf8] sm:$0xff]
    %v4878 = vld [vmem:[#allocation2 + $0x100] sm:$0xff]
    %v4879 = vld [vmem:[#allocation2 + $0x108] sm:$0xff]
    %v4880 = vld [vmem:[#allocation2 + $0x110] sm:$0xff]
    %v4881 = vld [vmem:[#allocation2 + $0x118] sm:$0xff]
    %v4882 = vld [vmem:[#allocation2 + $0x120] sm:$0xff]
    %v4883 = vld [vmem:[#allocation2 + $0x128] sm:$0xff]
    %v4884 = vld [vmem:[#allocation2 + $0x130] sm:$0xff]
    %v4885 = vld [vmem:[#allocation2 + $0x138] sm:$0xff]
    %v4886 = vld [vmem:[#allocation2 + $0x140] sm:$0xff]
    %v4887 = vld [vmem:[#allocation2 + $0x148] sm:$0xff]
    %v4888 = vld [vmem:[#allocation2 + $0x150] sm:$0xff]
    %v4889 = vld [vmem:[#allocation2 + $0x158] sm:$0xff]
    %v4890 = vld [vmem:[#allocation2 + $0x160] sm:$0xff]
    %v4891 = vld [vmem:[#allocation2 + $0x168] sm:$0xff]
    %v4892 = vld [vmem:[#allocation2 + $0x170] sm:$0xff]
    %v4893 = vld [vmem:[#allocation2 + $0x178] sm:$0xff]
    %v4894 = vld [vmem:[#allocation2 + $0x180] sm:$0xff]
    %v4895 = vld [vmem:[#allocation2 + $0x188] sm:$0xff]
    %v4896 = vld [vmem:[#allocation2 + $0x190] sm:$0xff]
    %v4897 = vld [vmem:[#allocation2 + $0x198] sm:$0xff]
    %v4898 = vld [vmem:[#allocation2 + $0x1a0] sm:$0xff]
    %v4899 = vld [vmem:[#allocation2 + $0x1a8] sm:$0xff]
    %v4900 = vld [vmem:[#allocation2 + $0x1b0] sm:$0xff]
    %v4901 = vld [vmem:[#allocation2 + $0x1b8] sm:$0xff]
    %v4902 = vld [vmem:[#allocation2 + $0x1c0] sm:$0xff]
    %v4903 = vld [vmem:[#allocation2 + $0x1c8] sm:$0xff]
    %v4904 = vld [vmem:[#allocation2 + $0x1d0] sm:$0xff]
    %v4905 = vld [vmem:[#allocation2 + $0x1d8] sm:$0xff]
    %v4906 = vld [vmem:[#allocation2 + $0x1e0] sm:$0xff]
    %v4907 = vld [vmem:[#allocation2 + $0x1e8] sm:$0xff]
    %v4908 = vld [vmem:[#allocation2 + $0x1f0] sm:$0xff]
    %v4909 = vld [vmem:[#allocation2 + $0x1f8] sm:$0xff]
    %vm4910 = vcmask 261120
    %4911 = vst.msk [vmem:[#allocation3] sm:$0xff] %vm4910, %v4846
    %4912 = vst.msk [vmem:[#allocation3 + $0x8] sm:$0xff] %vm4910, %v4847
    %4913 = vst.msk [vmem:[#allocation3 + $0x10] sm:$0xff] %vm4910, %v4848
    %4914 = vst.msk [vmem:[#allocation3 + $0x18] sm:$0xff] %vm4910, %v4849
    %4915 = vst.msk [vmem:[#allocation3 + $0x20] sm:$0xff] %vm4910, %v4850
    %4916 = vst.msk [vmem:[#allocation3 + $0x28] sm:$0xff] %vm4910, %v4851
    %4917 = vst.msk [vmem:[#allocation3 + $0x30] sm:$0xff] %vm4910, %v4852
    %4918 = vst.msk [vmem:[#allocation3 + $0x38] sm:$0xff] %vm4910, %v4853
    %4919 = vst.msk [vmem:[#allocation3 + $0x40] sm:$0xff] %vm4910, %v4854
    %4920 = vst.msk [vmem:[#allocation3 + $0x48] sm:$0xff] %vm4910, %v4855
    %4921 = vst.msk [vmem:[#allocation3 + $0x50] sm:$0xff] %vm4910, %v4856
    %4922 = vst.msk [vmem:[#allocation3 + $0x58] sm:$0xff] %vm4910, %v4857
    %4923 = vst.msk [vmem:[#allocation3 + $0x60] sm:$0xff] %vm4910, %v4858
    %4924 = vst.msk [vmem:[#allocation3 + $0x68] sm:$0xff] %vm4910, %v4859
    %4925 = vst.msk [vmem:[#allocation3 + $0x70] sm:$0xff] %vm4910, %v4860
    %4926 = vst.msk [vmem:[#allocation3 + $0x78] sm:$0xff] %vm4910, %v4861
    %4927 = vst.msk [vmem:[#allocation3 + $0x80] sm:$0xff] %vm4910, %v4862
    %4928 = vst.msk [vmem:[#allocation3 + $0x88] sm:$0xff] %vm4910, %v4863
    %4929 = vst.msk [vmem:[#allocation3 + $0x90] sm:$0xff] %vm4910, %v4864
    %4930 = vst.msk [vmem:[#allocation3 + $0x98] sm:$0xff] %vm4910, %v4865
    %4931 = vst.msk [vmem:[#allocation3 + $0xa0] sm:$0xff] %vm4910, %v4866
    %4932 = vst.msk [vmem:[#allocation3 + $0xa8] sm:$0xff] %vm4910, %v4867
    %4933 = vst.msk [vmem:[#allocation3 + $0xb0] sm:$0xff] %vm4910, %v4868
    %4934 = vst.msk [vmem:[#allocation3 + $0xb8] sm:$0xff] %vm4910, %v4869
    %4935 = vst.msk [vmem:[#allocation3 + $0xc0] sm:$0xff] %vm4910, %v4870
    %4936 = vst.msk [vmem:[#allocation3 + $0xc8] sm:$0xff] %vm4910, %v4871
    %4937 = vst.msk [vmem:[#allocation3 + $0xd0] sm:$0xff] %vm4910, %v4872
    %4938 = vst.msk [vmem:[#allocation3 + $0xd8] sm:$0xff] %vm4910, %v4873
    %4939 = vst.msk [vmem:[#allocation3 + $0xe0] sm:$0xff] %vm4910, %v4874
    %4940 = vst.msk [vmem:[#allocation3 + $0xe8] sm:$0xff] %vm4910, %v4875
    %4941 = vst.msk [vmem:[#allocation3 + $0xf0] sm:$0xff] %vm4910, %v4876
    %4942 = vst.msk [vmem:[#allocation3 + $0xf8] sm:$0xff] %vm4910, %v4877
    %4943 = vst.msk [vmem:[#allocation3 + $0x100] sm:$0xff] %vm4910, %v4878
    %4944 = vst.msk [vmem:[#allocation3 + $0x108] sm:$0xff] %vm4910, %v4879
    %4945 = vst.msk [vmem:[#allocation3 + $0x110] sm:$0xff] %vm4910, %v4880
    %4946 = vst.msk [vmem:[#allocation3 + $0x118] sm:$0xff] %vm4910, %v4881
    %4947 = vst.msk [vmem:[#allocation3 + $0x120] sm:$0xff] %vm4910, %v4882
    %4948 = vst.msk [vmem:[#allocation3 + $0x128] sm:$0xff] %vm4910, %v4883
    %4949 = vst.msk [vmem:[#allocation3 + $0x130] sm:$0xff] %vm4910, %v4884
    %4950 = vst.msk [vmem:[#allocation3 + $0x138] sm:$0xff] %vm4910, %v4885
    %4951 = vst.msk [vmem:[#allocation3 + $0x140] sm:$0xff] %vm4910, %v4886
    %4952 = vst.msk [vmem:[#allocation3 + $0x148] sm:$0xff] %vm4910, %v4887
    %4953 = vst.msk [vmem:[#allocation3 + $0x150] sm:$0xff] %vm4910, %v4888
    %4954 = vst.msk [vmem:[#allocation3 + $0x158] sm:$0xff] %vm4910, %v4889
    %4955 = vst.msk [vmem:[#allocation3 + $0x160] sm:$0xff] %vm4910, %v4890
    %4956 = vst.msk [vmem:[#allocation3 + $0x168] sm:$0xff] %vm4910, %v4891
    %4957 = vst.msk [vmem:[#allocation3 + $0x170] sm:$0xff] %vm4910, %v4892
    %4958 = vst.msk [vmem:[#allocation3 + $0x178] sm:$0xff] %vm4910, %v4893
    %4959 = vst.msk [vmem:[#allocation3 + $0x180] sm:$0xff] %vm4910, %v4894
    %4960 = vst.msk [vmem:[#allocation3 + $0x188] sm:$0xff] %vm4910, %v4895
    %4961 = vst.msk [vmem:[#allocation3 + $0x190] sm:$0xff] %vm4910, %v4896
    %4962 = vst.msk [vmem:[#allocation3 + $0x198] sm:$0xff] %vm4910, %v4897
    %4963 = vst.msk [vmem:[#allocation3 + $0x1a0] sm:$0xff] %vm4910, %v4898
    %4964 = vst.msk [vmem:[#allocation3 + $0x1a8] sm:$0xff] %vm4910, %v4899
    %4965 = vst.msk [vmem:[#allocation3 + $0x1b0] sm:$0xff] %vm4910, %v4900
    %4966 = vst.msk [vmem:[#allocation3 + $0x1b8] sm:$0xff] %vm4910, %v4901
    %4967 = vst.msk [vmem:[#allocation3 + $0x1c0] sm:$0xff] %vm4910, %v4902
    %4968 = vst.msk [vmem:[#allocation3 + $0x1c8] sm:$0xff] %vm4910, %v4903
    %4969 = vst.msk [vmem:[#allocation3 + $0x1d0] sm:$0xff] %vm4910, %v4904
    %4970 = vst.msk [vmem:[#allocation3 + $0x1d8] sm:$0xff] %vm4910, %v4905
    %4971 = vst.msk [vmem:[#allocation3 + $0x1e0] sm:$0xff] %vm4910, %v4906
    %4972 = vst.msk [vmem:[#allocation3 + $0x1e8] sm:$0xff] %vm4910, %v4907
    %4973 = vst.msk [vmem:[#allocation3 + $0x1f0] sm:$0xff] %vm4910, %v4908
    %4974 = vst.msk [vmem:[#allocation3 + $0x1f8] sm:$0xff] %vm4910, %v4909
    // Predicated region
    $region26: #{kernel_one_resnet_forward.1} parent=1 // pred_check
      _
    $region27: #{kernel_one_resnet_forward.1} parent=1 // pred_check_branch
      %4976 = sbr.rel (0) target = $region29
    $region28: #{kernel_one_resnet_forward.1} parent=1 // pred_region
      %s4978 = ssub.s32 8192, 8192
      %4979 = vsyncadd [#allocation4], %s4978
      %s4980 = sshll.u32 [#allocation3], 4
      %s4981 = int_to_ptr.vmem [resolvable:$true] %s4980
      %4986 = dma.vmem_to_hbm [thread:$0]  %s4981, 8192, %s6, [#allocation4], 128, 128, 8
    $region29: #{kernel_one_resnet_forward.1} parent=1 // pred_fallthru
      _
    // Predicated region
    $region30: #{kernel_one_resnet_forward.1} parent=1 // pred_check
      _
    $region31: #{kernel_one_resnet_forward.1} parent=1 // pred_check_branch
      %4988 = sbr.rel (0) target = $region33
    $region32: #{kernel_one_resnet_forward.1} parent=1 // pred_region
      %4989 = dma.done [#allocation4], 8192
    $region33: #{kernel_one_resnet_forward.1} parent=1 // pred_fallthru
      _
    %4990 = vsyncpa [#allocation4], 1

</llo_original>
